<compile_context>
chip_gen: v5e
topology: v5e:2x2
jax: 0.10.0
libtpu: 0.0.40
codegen_flags: <defaults>
</compile_context>

<pallas_src>
import jax
import jax.numpy as jnp
from jax import lax
from jax.experimental import pallas as pl
from jax.experimental.pallas import tpu as pltpu


def _birnn_attention_kernel(
    x_ref, len_ref,
    w_in_f_ref, w_in_b_ref, b_in_f_ref, b_in_b_ref,
    whf_ref, whb_ref, bhn_f_ref, bhn_b_ref,
    wlin_ref, blin_ref, watt_ref,
    out_ref,
    gi_f_ref, gi_b_ref, enc_ref,
):
    T, Bt, I = x_ref.shape
    H = whf_ref.shape[0]
    H2 = 2 * H

    # ---- hoisted input projections: bf16 MXU operands, f32 accumulation, written
    #      directly into the per-direction (T, Bt, 3H) scratch (no temp + slab copy).
    x_flat = x_ref[...].reshape(T * Bt, I).astype(jnp.bfloat16)
    gi_f_ref[...] = (
        jnp.dot(x_flat, w_in_f_ref[...], preferred_element_type=jnp.float32)
        + b_in_f_ref[...]).reshape(T, Bt, 3 * H)
    gi_b_ref[...] = (
        jnp.dot(x_flat, w_in_b_ref[...], preferred_element_type=jnp.float32)
        + b_in_b_ref[...]).reshape(T, Bt, 3 * H)

    whf = whf_ref[...]          # (H, 3H) bf16
    whb = whb_ref[...]
    bhn_f = bhn_f_ref[...]      # (1, H) f32, n-gate hidden bias
    bhn_b = bhn_b_ref[...]

    def sigmoid(v):             # one EUP tanh instead of exp+add+divide
        return 0.5 * jnp.tanh(0.5 * v) + 0.5

    h0 = jnp.zeros((Bt, H), jnp.float32)

    # ---- fused forward/backward GRU recurrence, fully unrolled (T small/static).
    # TODO(synk): hold whf/whb in MXU staging registers (push_rhs once, acc per step).
    # TODO(synk): PyTorch packed sequences start the reverse GRU at each sequence's
    # own last valid step; here it starts at T-1 for every row (exact match when
    # all lengths == T; padded steps are hidden by the masked softmax).
    def step(t, carry):
        hf, hb = carry
        tb = T - 1 - t
        gif = gi_f_ref[t]       # (Bt, 3H) f32, biases already folded
        gib = gi_b_ref[tb]

        # one merged-gate hidden matmul per direction per step (bf16 operands).
        ghf = jnp.dot(hf.astype(jnp.bfloat16), whf,
                      preferred_element_type=jnp.float32)
        ghb = jnp.dot(hb.astype(jnp.bfloat16), whb,
                      preferred_element_type=jnp.float32)

        rf = sigmoid(gif[:, 0:H] + ghf[:, 0:H])
        zf = sigmoid(gif[:, H:2 * H] + ghf[:, H:2 * H])
        nf = jnp.tanh(gif[:, 2 * H:] + rf * (ghf[:, 2 * H:] + bhn_f))
        hf_new = (1.0 - zf) * nf + zf * hf

        rb = sigmoid(gib[:, 0:H] + ghb[:, 0:H])
        zb = sigmoid(gib[:, H:2 * H] + ghb[:, H:2 * H])
        nb = jnp.tanh(gib[:, 2 * H:] + rb * (ghb[:, 2 * H:] + bhn_b))
        hb_new = (1.0 - zb) * nb + zb * hb

        enc_ref[t, :, 0:H] = hf_new          # encoder = [hf | hb] per timestep
        enc_ref[tb, :, H:2 * H] = hb_new
        return hf_new, hb_new

    # TODO(synk): switch to unroll=2..4 for large T to stay inside the vreg file.
    lax.fori_loop(0, T, step, (h0, h0), unroll=True)

    # ---- attention projection: one (T*B, 2H) x (2H, 2H) matmul, bf16 operands.
    enc = enc_ref[...]                                    # (T, Bt, 2H) f32
    enc_flat = enc.reshape(T * Bt, H2)
    emb = jnp.tanh(
        jnp.dot(enc_flat.astype(jnp.bfloat16), wlin_ref[...],
                preferred_element_type=jnp.float32) + blin_ref[...])

    # attention logit = VPU multiply + lane reduction (keeps the MXU free).
    att = jnp.sum(emb * watt_ref[...], axis=-1, keepdims=True).reshape(T, Bt, 1)

    # ---- masked softmax over time, exactly as EmbedAttention._masked_softmax
    #      (no max-subtraction, +1e-4 in the denominator).
    # TODO(synk): faithful no-max-subtraction softmax can overflow for huge logits.
    lens = len_ref[...]                                   # (Bt, 1) int32
    idx = lax.broadcasted_iota(jnp.int32, (T, Bt, 1), 0)
    mask = (idx < lens[None, :, :]).astype(jnp.float32)   # (T, Bt, 1)
    e = jnp.exp(att) * mask
    denom = jnp.sum(e, axis=0, keepdims=True) + 0.0001
    alpha = e * pl.reciprocal(denom, approx=True)         # (T, Bt, 1)

    # ---- attention-weighted pooling; single lane-dense (Bt, 2H) output store.
    out_ref[...] = jnp.sum(alpha * enc, axis=0)


def attentional_birnn(x, len_s, p, hid_size, *, batch_tile=None):
    """x: (T, B, I) f32, len_s: (B,) int, params in torch layout. Returns (B, 2H) f32."""
    T, B, I = x.shape
    H = hid_size
    bf16 = jnp.bfloat16

    # Batch grid: on v7x (2 TensorCores) split the batch in two when the tile
    # keeps sublane alignment; otherwise one grid step (v5e/v6e: a grid is a
    # serial loop, extra steps only add overhead).
    if batch_tile is None:
        half = B // 2
        batch_tile = half if (B % 2 == 0 and half % 8 == 0) else B
    assert B % batch_tile == 0
    assert batch_tile == B or batch_tile % 8 == 0, "batch tile must be a multiple of 8"
    Bt = batch_tile
    grid = (B // Bt,)

    # ---- parameter reshaping / folding (plain JAX, outside the kernel) ----
    # gate order (r, z, n); b_ih (+ b_hh for r/z gates) folded into the hoisted
    # input projection; the n-gate hidden bias stays inside r*(W_hn h + b_hn).
    def fold_bias(b_ih, b_hh):
        return jnp.concatenate([b_ih[:2 * H] + b_hh[:2 * H], b_ih[2 * H:]])[None, :]

    inputs = (
        x,                                               # f32; cast to bf16 in-kernel
        len_s.reshape(B, 1).astype(jnp.int32),
        p["w_ih_f"].T.astype(bf16),                      # (I, 3H)
        p["w_ih_b"].T.astype(bf16),
        fold_bias(p["b_ih_f"], p["b_hh_f"]),             # (1, 3H) f32
        fold_bias(p["b_ih_b"], p["b_hh_b"]),
        p["w_hh_f"].T.astype(bf16),                      # (H, 3H)
        p["w_hh_b"].T.astype(bf16),
        p["b_hh_f"][None, 2 * H:],                       # (1, H) f32
        p["b_hh_b"][None, 2 * H:],
        p["w_lin"].T.astype(bf16),                       # (2H, 2H)
        p["b_lin"][None, :],                             # (1, 2H) f32
        p["w_att"],                                      # (1, 2H) f32, VPU mul+reduce
    )

    def rep_spec(arr):  # weights: full-array block, replicated across the grid
        zeros = (0,) * arr.ndim
        return pl.BlockSpec(arr.shape, lambda b, _z=zeros: _z)

    in_specs = [
        pl.BlockSpec((T, Bt, I), lambda b: (0, b, 0)),   # x, batch-tiled
        pl.BlockSpec((Bt, 1), lambda b: (b, 0)),         # lengths, batch-tiled
    ] + [rep_spec(a) for a in inputs[2:]]

    return pl.pallas_call(
        _birnn_attention_kernel,
        out_shape=jax.ShapeDtypeStruct((B, 2 * H), jnp.float32),
        grid=grid,
        in_specs=in_specs,
        out_specs=pl.BlockSpec((Bt, 2 * H), lambda b: (b, 0)),
        scratch_shapes=[
            pltpu.VMEM((T, Bt, 3 * H), jnp.float32),     # fwd input projections
            pltpu.VMEM((T, Bt, 3 * H), jnp.float32),     # bwd input projections
            pltpu.VMEM((T, Bt, 2 * H), jnp.float32),     # encoder states [hf | hb]
        ],
        compiler_params=pltpu.CompilerParams(
            dimension_semantics=("parallel",),
            vmem_limit_bytes=48 * 1024 * 1024,
        ),
    )(*inputs)


def init_params(key, inp_size, hid_size):
    natt = 2 * hid_size
    ks = jax.random.split(key, 11)
    s = 0.2
    u = lambda k, shape: jax.random.uniform(k, shape, jnp.float32, -s, s)
    return dict(
        w_ih_f=u(ks[0], (3 * hid_size, inp_size)),
        w_hh_f=u(ks[1], (3 * hid_size, hid_size)),
        b_ih_f=u(ks[2], (3 * hid_size,)),
        b_hh_f=u(ks[3], (3 * hid_size,)),
        w_ih_b=u(ks[4], (3 * hid_size, inp_size)),
        w_hh_b=u(ks[5], (3 * hid_size, hid_size)),
        b_ih_b=u(ks[6], (3 * hid_size,)),
        b_hh_b=u(ks[7], (3 * hid_size,)),
        w_lin=u(ks[8], (natt, natt)),
        b_lin=u(ks[9], (natt,)),
        w_att=u(ks[10], (1, natt)),
    )


def reference(x, len_s, p, H, matmul_dtype=jnp.float32):
    """Pure-JAX reference mirroring the PyTorch forward pass.

    matmul_dtype=jnp.bfloat16 mimics the kernel's bf16 MXU operands (f32 accum)
    so the check stays tight; jnp.float32 gives the exact f32 semantics.
    """
    T, B, I = x.shape

    def dot(a, b):
        return jnp.dot(a.astype(matmul_dtype), b.astype(matmul_dtype),
                       preferred_element_type=jnp.float32)

    def gru(xs, wi, wh, bi, bh):
        def step(h, x_t):
            gi = dot(x_t, wi.T) + bi
            gh = dot(h, wh.T) + bh
            r = jax.nn.sigmoid(gi[:, :H] + gh[:, :H])
            z = jax.nn.sigmoid(gi[:, H:2 * H] + gh[:, H:2 * H])
            n = jnp.tanh(gi[:, 2 * H:] + r * gh[:, 2 * H:])
            h = (1 - z) * n + z * h
            return h, h
        _, hs = lax.scan(step, jnp.zeros((B, H), jnp.float32), xs)
        return hs

    hf = gru(x, p["w_ih_f"], p["w_hh_f"], p["b_ih_f"], p["b_hh_f"])
    hb = gru(x[::-1], p["w_ih_b"], p["w_hh_b"], p["b_ih_b"], p["b_hh_b"])[::-1]
    enc = jnp.concatenate([hf, hb], axis=-1)                    # (T, B, 2H)
    emb = jnp.tanh(
        dot(enc.reshape(T * B, 2 * H), p["w_lin"].T).reshape(T, B, 2 * H)
        + p["b_lin"])
    att = (emb @ p["w_att"].T)[..., 0]                          # (T, B) f32
    idx = jnp.arange(T)[:, None]
    mask = (idx < len_s[None, :]).astype(jnp.float32)
    e = jnp.exp(att) * mask
    alpha = e / (e.sum(0, keepdims=True) + 0.0001)
    return (alpha[..., None] * enc).sum(0)                      # (B, 2H)


if __name__ == "__main__":
    T, B, I, H = 8, 8, 32, 64          # 2H = 128 -> lane-dense output store
    key = jax.random.PRNGKey(0)
    kx, kp = jax.random.split(key)
    x = jax.random.normal(kx, (T, B, I), jnp.float32)
    # descending lengths, max == T (pack_padded_sequence convention)
    len_s = jnp.array([8, 8, 7, 6, 6, 5, 4, 3], dtype=jnp.int32)
    params = init_params(kp, I, H)

    out = attentional_birnn(x, len_s, params, H)
    out = jax.block_until_ready(out)
    assert out.shape == (B, 2 * H), out.shape

    # Tight check vs a reference that mirrors the kernel's bf16 MXU operands.
    ref_bf16 = reference(x, len_s, params, H, matmul_dtype=jnp.bfloat16)
    err = float(jnp.max(jnp.abs(out - ref_bf16)))
    assert err < 1e-2, ("kernel/bf16-reference mismatch", err)

    # Loose sanity check vs exact f32 semantics (bounds the bf16 quantization).
    ref_f32 = reference(x, len_s, params, H, matmul_dtype=jnp.float32)
    err32 = float(jnp.max(jnp.abs(out - ref_f32)))
    assert err32 < 1e-1, ("kernel/f32-reference mismatch", err32)

    print("KERNEL_OK")
</pallas_src>

<mosaic_0001>
module attributes {stable_mosaic.version = 11 : i64} {
  func.func @_birnn_attention_kernel(%arg0: i32, %arg1: memref<8x8x32xf32, #tpu.memory_space<vmem>>, %arg2: memref<8x1xi32, #tpu.memory_space<vmem>>, %arg3: memref<32x192xbf16, #tpu.memory_space<vmem>>, %arg4: memref<32x192xbf16, #tpu.memory_space<vmem>>, %arg5: memref<1x192xf32, #tpu.memory_space<vmem>>, %arg6: memref<1x192xf32, #tpu.memory_space<vmem>>, %arg7: memref<64x192xbf16, #tpu.memory_space<vmem>>, %arg8: memref<64x192xbf16, #tpu.memory_space<vmem>>, %arg9: memref<1x64xf32, #tpu.memory_space<vmem>>, %arg10: memref<1x64xf32, #tpu.memory_space<vmem>>, %arg11: memref<128x128xbf16, #tpu.memory_space<vmem>>, %arg12: memref<1x128xf32, #tpu.memory_space<vmem>>, %arg13: memref<1x128xf32, #tpu.memory_space<vmem>>, %arg14: memref<8x128xf32, #tpu.memory_space<vmem>>, %arg15: memref<8x8x192xf32, #tpu.memory_space<vmem>>, %arg16: memref<8x8x192xf32, #tpu.memory_space<vmem>>, %arg17: memref<8x8x128xf32, #tpu.memory_space<vmem>>) attributes {dimension_semantics = [#tpu.dimension_semantics<parallel>], iteration_bounds = array<i64: 1>, scalar_prefetch = 0 : i64, scratch_operands = 3 : i64, tpu.core_type = #tpu.core_type<tc>, window_params = [{transform_indices = @transform_0, window_bounds = array<i64: 8, 8, 32>}, {transform_indices = @transform_1, window_bounds = array<i64: 8, 1>}, {pipeline_mode = #tpu.pipeline_mode<synchronous>, transform_indices = @transform_2, window_bounds = array<i64: 32, 192>}, {pipeline_mode = #tpu.pipeline_mode<synchronous>, transform_indices = @transform_3, window_bounds = array<i64: 32, 192>}, {pipeline_mode = #tpu.pipeline_mode<synchronous>, transform_indices = @transform_4, window_bounds = array<i64: 1, 192>}, {pipeline_mode = #tpu.pipeline_mode<synchronous>, transform_indices = @transform_5, window_bounds = array<i64: 1, 192>}, {pipeline_mode = #tpu.pipeline_mode<synchronous>, transform_indices = @transform_6, window_bounds = array<i64: 64, 192>}, {pipeline_mode = #tpu.pipeline_mode<synchronous>, transform_indices = @transform_7, window_bounds = array<i64: 64, 192>}, {pipeline_mode = #tpu.pipeline_mode<synchronous>, transform_indices = @transform_8, window_bounds = array<i64: 1, 64>}, {pipeline_mode = #tpu.pipeline_mode<synchronous>, transform_indices = @transform_9, window_bounds = array<i64: 1, 64>}, {pipeline_mode = #tpu.pipeline_mode<synchronous>, transform_indices = @transform_10, window_bounds = array<i64: 128, 128>}, {pipeline_mode = #tpu.pipeline_mode<synchronous>, transform_indices = @transform_11, window_bounds = array<i64: 1, 128>}, {pipeline_mode = #tpu.pipeline_mode<synchronous>, transform_indices = @transform_12, window_bounds = array<i64: 1, 128>}, {transform_indices = @transform_13, window_bounds = array<i64: 8, 128>}]} {
    %c0 = arith.constant 0 : index
    %c0_0 = arith.constant 0 : index
    %c0_1 = arith.constant 0 : index
    %0 = vector.load %arg1[%c0, %c0_0, %c0_1] : memref<8x8x32xf32, #tpu.memory_space<vmem>>, vector<8x8x32xf32>
    %1 = vector.shape_cast %0 : vector<8x8x32xf32> to vector<64x32xf32>
    %2 = arith.truncf %1 : vector<64x32xf32> to vector<64x32xbf16>
    %c0_2 = arith.constant 0 : index
    %c0_3 = arith.constant 0 : index
    %3 = vector.load %arg3[%c0_2, %c0_3] : memref<32x192xbf16, #tpu.memory_space<vmem>>, vector<32x192xbf16>
    %cst = arith.constant dense<0.000000e+00> : vector<64x192xf32>
    %4 = tpu.matmul %2, %3, %cst {dimension_numbers = #tpu.dot_dimension_numbers<[1], [0], [0], [1], [0, 0, 1, 1], [], []>} : vector<64x32xbf16>, vector<32x192xbf16>, vector<64x192xf32> -> vector<64x192xf32>
    %c0_4 = arith.constant 0 : index
    %c0_5 = arith.constant 0 : index
    %5 = vector.load %arg5[%c0_4, %c0_5] : memref<1x192xf32, #tpu.memory_space<vmem>>, vector<1x192xf32>
    %6 = vector.broadcast %5 : vector<1x192xf32> to vector<64x192xf32>
    %7 = arith.addf %4, %6 : vector<64x192xf32>
    %8 = vector.shape_cast %7 : vector<64x192xf32> to vector<8x8x192xf32>
    %c0_6 = arith.constant 0 : index
    %c0_7 = arith.constant 0 : index
    %c0_8 = arith.constant 0 : index
    %9 = vector.load %arg15[%c0_6, %c0_7, %c0_8] : memref<8x8x192xf32, #tpu.memory_space<vmem>>, vector<8x8x192xf32>
    tpu.vector_store %arg15[%c0_6, %c0_7, %c0_8], %8 {strides = array<i32>} : memref<8x8x192xf32, #tpu.memory_space<vmem>>, vector<8x8x192xf32>,
    %c0_9 = arith.constant 0 : index
    %c0_10 = arith.constant 0 : index
    %10 = vector.load %arg4[%c0_9, %c0_10] : memref<32x192xbf16, #tpu.memory_space<vmem>>, vector<32x192xbf16>
    %cst_11 = arith.constant dense<0.000000e+00> : vector<64x192xf32>
    %11 = tpu.matmul %2, %10, %cst_11 {dimension_numbers = #tpu.dot_dimension_numbers<[1], [0], [0], [1], [0, 0, 1, 1], [], []>} : vector<64x32xbf16>, vector<32x192xbf16>, vector<64x192xf32> -> vector<64x192xf32>
    %c0_12 = arith.constant 0 : index
    %c0_13 = arith.constant 0 : index
    %12 = vector.load %arg6[%c0_12, %c0_13] : memref<1x192xf32, #tpu.memory_space<vmem>>, vector<1x192xf32>
    %13 = vector.broadcast %12 : vector<1x192xf32> to vector<64x192xf32>
    %14 = arith.addf %11, %13 : vector<64x192xf32>
    %15 = vector.shape_cast %14 : vector<64x192xf32> to vector<8x8x192xf32>
    %c0_14 = arith.constant 0 : index
    %c0_15 = arith.constant 0 : index
    %c0_16 = arith.constant 0 : index
    %16 = vector.load %arg16[%c0_14, %c0_15, %c0_16] : memref<8x8x192xf32, #tpu.memory_space<vmem>>, vector<8x8x192xf32>
    tpu.vector_store %arg16[%c0_14, %c0_15, %c0_16], %15 {strides = array<i32>} : memref<8x8x192xf32, #tpu.memory_space<vmem>>, vector<8x8x192xf32>,
    %c0_17 = arith.constant 0 : index
    %c0_18 = arith.constant 0 : index
    %17 = vector.load %arg7[%c0_17, %c0_18] : memref<64x192xbf16, #tpu.memory_space<vmem>>, vector<64x192xbf16>
    %c0_19 = arith.constant 0 : index
    %c0_20 = arith.constant 0 : index
    %18 = vector.load %arg8[%c0_19, %c0_20] : memref<64x192xbf16, #tpu.memory_space<vmem>>, vector<64x192xbf16>
    %c0_21 = arith.constant 0 : index
    %c0_22 = arith.constant 0 : index
    %19 = vector.load %arg9[%c0_21, %c0_22] : memref<1x64xf32, #tpu.memory_space<vmem>>, vector<1x64xf32>
    %c0_23 = arith.constant 0 : index
    %c0_24 = arith.constant 0 : index
    %20 = vector.load %arg10[%c0_23, %c0_24] : memref<1x64xf32, #tpu.memory_space<vmem>>, vector<1x64xf32>
    %cst_25 = arith.constant 0.000000e+00 : f32
    %21 = vector.broadcast %cst_25 : f32 to vector<8x64xf32>
    %c0_i32 = arith.constant 0 : i32
    %c7_i32 = arith.constant 7 : i32
    %22 = arith.subi %c7_i32, %c0_i32 : i32
    %23 = arith.index_cast %c0_i32 : i32 to index
    %c0_26 = arith.constant 0 : index
    %c0_27 = arith.constant 0 : index
    %24 = vector.load %arg15[%23, %c0_26, %c0_27] : memref<8x8x192xf32, #tpu.memory_space<vmem>>, vector<1x8x192xf32>
    %25 = vector.shape_cast %24 : vector<1x8x192xf32> to vector<8x192xf32>
    %26 = arith.index_cast %22 : i32 to index
    %c0_28 = arith.constant 0 : index
    %c0_29 = arith.constant 0 : index
    %27 = vector.load %arg16[%26, %c0_28, %c0_29] : memref<8x8x192xf32, #tpu.memory_space<vmem>>, vector<1x8x192xf32>
    %28 = vector.shape_cast %27 : vector<1x8x192xf32> to vector<8x192xf32>
    %29 = arith.truncf %21 : vector<8x64xf32> to vector<8x64xbf16>
    %cst_30 = arith.constant dense<0.000000e+00> : vector<8x192xf32>
    %30 = tpu.matmul %29, %17, %cst_30 {dimension_numbers = #tpu.dot_dimension_numbers<[1], [0], [0], [1], [0, 0, 1, 1], [], []>} : vector<8x64xbf16>, vector<64x192xbf16>, vector<8x192xf32> -> vector<8x192xf32>
    %31 = arith.truncf %21 : vector<8x64xf32> to vector<8x64xbf16>
    %cst_31 = arith.constant dense<0.000000e+00> : vector<8x192xf32>
    %32 = tpu.matmul %31, %18, %cst_31 {dimension_numbers = #tpu.dot_dimension_numbers<[1], [0], [0], [1], [0, 0, 1, 1], [], []>} : vector<8x64xbf16>, vector<64x192xbf16>, vector<8x192xf32> -> vector<8x192xf32>
    %33 = vector.extract_strided_slice %25 {offsets = [0, 0], sizes = [8, 64], strides = [1, 1]} : vector<8x192xf32> to vector<8x64xf32>
    %34 = vector.extract_strided_slice %30 {offsets = [0, 0], sizes = [8, 64], strides = [1, 1]} : vector<8x192xf32> to vector<8x64xf32>
    %35 = arith.addf %33, %34 : vector<8x64xf32>
    %cst_32 = arith.constant 5.000000e-01 : f32
    %36 = vector.broadcast %cst_32 : f32 to vector<8x64xf32>
    %37 = arith.mulf %36, %35 : vector<8x64xf32>
    %38 = math.tanh %37 : vector<8x64xf32>
    %cst_33 = arith.constant 5.000000e-01 : f32
    %39 = vector.broadcast %cst_33 : f32 to vector<8x64xf32>
    %40 = arith.mulf %39, %38 : vector<8x64xf32>
    %cst_34 = arith.constant 5.000000e-01 : f32
    %41 = vector.broadcast %cst_34 : f32 to vector<8x64xf32>
    %42 = arith.addf %40, %41 : vector<8x64xf32>
    %43 = vector.extract_strided_slice %25 {offsets = [0, 64], sizes = [8, 64], strides = [1, 1]} : vector<8x192xf32> to vector<8x64xf32>
    %44 = vector.extract_strided_slice %30 {offsets = [0, 64], sizes = [8, 64], strides = [1, 1]} : vector<8x192xf32> to vector<8x64xf32>
    %45 = arith.addf %43, %44 : vector<8x64xf32>
    %cst_35 = arith.constant 5.000000e-01 : f32
    %46 = vector.broadcast %cst_35 : f32 to vector<8x64xf32>
    %47 = arith.mulf %46, %45 : vector<8x64xf32>
    %48 = math.tanh %47 : vector<8x64xf32>
    %cst_36 = arith.constant 5.000000e-01 : f32
    %49 = vector.broadcast %cst_36 : f32 to vector<8x64xf32>
    %50 = arith.mulf %49, %48 : vector<8x64xf32>
    %cst_37 = arith.constant 5.000000e-01 : f32
    %51 = vector.broadcast %cst_37 : f32 to vector<8x64xf32>
    %52 = arith.addf %50, %51 : vector<8x64xf32>
    %53 = vector.extract_strided_slice %25 {offsets = [0, 128], sizes = [8, 64], strides = [1, 1]} : vector<8x192xf32> to vector<8x64xf32>
    %54 = vector.extract_strided_slice %30 {offsets = [0, 128], sizes = [8, 64], strides = [1, 1]} : vector<8x192xf32> to vector<8x64xf32>
    %55 = vector.broadcast %19 : vector<1x64xf32> to vector<8x64xf32>
    %56 = arith.addf %54, %55 : vector<8x64xf32>
    %57 = arith.mulf %42, %56 : vector<8x64xf32>
    %58 = arith.addf %53, %57 : vector<8x64xf32>
    %59 = math.tanh %58 : vector<8x64xf32>
    %cst_38 = arith.constant 1.000000e+00 : f32
    %60 = vector.broadcast %cst_38 : f32 to vector<8x64xf32>
    %61 = arith.subf %60, %52 : vector<8x64xf32>
    %62 = arith.mulf %61, %59 : vector<8x64xf32>
    %63 = arith.mulf %52, %21 : vector<8x64xf32>
    %64 = arith.addf %62, %63 : vector<8x64xf32>
    %65 = vector.extract_strided_slice %28 {offsets = [0, 0], sizes = [8, 64], strides = [1, 1]} : vector<8x192xf32> to vector<8x64xf32>
    %66 = vector.extract_strided_slice %32 {offsets = [0, 0], sizes = [8, 64], strides = [1, 1]} : vector<8x192xf32> to vector<8x64xf32>
    %67 = arith.addf %65, %66 : vector<8x64xf32>
    %cst_39 = arith.constant 5.000000e-01 : f32
    %68 = vector.broadcast %cst_39 : f32 to vector<8x64xf32>
    %69 = arith.mulf %68, %67 : vector<8x64xf32>
    %70 = math.tanh %69 : vector<8x64xf32>
    %cst_40 = arith.constant 5.000000e-01 : f32
    %71 = vector.broadcast %cst_40 : f32 to vector<8x64xf32>
    %72 = arith.mulf %71, %70 : vector<8x64xf32>
    %cst_41 = arith.constant 5.000000e-01 : f32
    %73 = vector.broadcast %cst_41 : f32 to vector<8x64xf32>
    %74 = arith.addf %72, %73 : vector<8x64xf32>
    %75 = vector.extract_strided_slice %28 {offsets = [0, 64], sizes = [8, 64], strides = [1, 1]} : vector<8x192xf32> to vector<8x64xf32>
    %76 = vector.extract_strided_slice %32 {offsets = [0, 64], sizes = [8, 64], strides = [1, 1]} : vector<8x192xf32> to vector<8x64xf32>
    %77 = arith.addf %75, %76 : vector<8x64xf32>
    %cst_42 = arith.constant 5.000000e-01 : f32
    %78 = vector.broadcast %cst_42 : f32 to vector<8x64xf32>
    %79 = arith.mulf %78, %77 : vector<8x64xf32>
    %80 = math.tanh %79 : vector<8x64xf32>
    %cst_43 = arith.constant 5.000000e-01 : f32
    %81 = vector.broadcast %cst_43 : f32 to vector<8x64xf32>
    %82 = arith.mulf %81, %80 : vector<8x64xf32>
    %cst_44 = arith.constant 5.000000e-01 : f32
    %83 = vector.broadcast %cst_44 : f32 to vector<8x64xf32>
    %84 = arith.addf %82, %83 : vector<8x64xf32>
    %85 = vector.extract_strided_slice %28 {offsets = [0, 128], sizes = [8, 64], strides = [1, 1]} : vector<8x192xf32> to vector<8x64xf32>
    %86 = vector.extract_strided_slice %32 {offsets = [0, 128], sizes = [8, 64], strides = [1, 1]} : vector<8x192xf32> to vector<8x64xf32>
    %87 = vector.broadcast %20 : vector<1x64xf32> to vector<8x64xf32>
    %88 = arith.addf %86, %87 : vector<8x64xf32>
    %89 = arith.mulf %74, %88 : vector<8x64xf32>
    %90 = arith.addf %85, %89 : vector<8x64xf32>
    %91 = math.tanh %90 : vector<8x64xf32>
    %cst_45 = arith.constant 1.000000e+00 : f32
    %92 = vector.broadcast %cst_45 : f32 to vector<8x64xf32>
    %93 = arith.subf %92, %84 : vector<8x64xf32>
    %94 = arith.mulf %93, %91 : vector<8x64xf32>
    %95 = arith.mulf %84, %21 : vector<8x64xf32>
    %96 = arith.addf %94, %95 : vector<8x64xf32>
    %97 = arith.index_cast %c0_i32 : i32 to index
    %c0_46 = arith.constant 0 : index
    %c0_47 = arith.constant 0 : index
    %98 = vector.load %arg17[%97, %c0_46, %c0_47] : memref<8x8x128xf32, #tpu.memory_space<vmem>>, vector<1x8x64xf32>
    %99 = vector.shape_cast %98 : vector<1x8x64xf32> to vector<8x64xf32>
    %100 = vector.shape_cast %64 : vector<8x64xf32> to vector<1x8x64xf32>
    tpu.vector_store %arg17[%97, %c0_46, %c0_47], %100 {strides = array<i32>} : memref<8x8x128xf32, #tpu.memory_space<vmem>>, vector<1x8x64xf32>,
    %101 = arith.index_cast %22 : i32 to index
    %c0_48 = arith.constant 0 : index
    %c64 = arith.constant 64 : index
    %102 = vector.load %arg17[%101, %c0_48, %c64] : memref<8x8x128xf32, #tpu.memory_space<vmem>>, vector<1x8x64xf32>
    %103 = vector.shape_cast %102 : vector<1x8x64xf32> to vector<8x64xf32>
    %104 = vector.shape_cast %96 : vector<8x64xf32> to vector<1x8x64xf32>
    tpu.vector_store %arg17[%101, %c0_48, %c64], %104 {strides = array<i32>} : memref<8x8x128xf32, #tpu.memory_space<vmem>>, vector<1x8x64xf32>,
    %c1_i32 = arith.constant 1 : i32
    %c7_i32_49 = arith.constant 7 : i32
    %105 = arith.subi %c7_i32_49, %c1_i32 : i32
    %106 = arith.index_cast %c1_i32 : i32 to index
    %c0_50 = arith.constant 0 : index
    %c0_51 = arith.constant 0 : index
    %107 = vector.load %arg15[%106, %c0_50, %c0_51] : memref<8x8x192xf32, #tpu.memory_space<vmem>>, vector<1x8x192xf32>
    %108 = vector.shape_cast %107 : vector<1x8x192xf32> to vector<8x192xf32>
    %109 = arith.index_cast %105 : i32 to index
    %c0_52 = arith.constant 0 : index
    %c0_53 = arith.constant 0 : index
    %110 = vector.load %arg16[%109, %c0_52, %c0_53] : memref<8x8x192xf32, #tpu.memory_space<vmem>>, vector<1x8x192xf32>
    %111 = vector.shape_cast %110 : vector<1x8x192xf32> to vector<8x192xf32>
    %112 = arith.truncf %64 : vector<8x64xf32> to vector<8x64xbf16>
    %cst_54 = arith.constant dense<0.000000e+00> : vector<8x192xf32>
    %113 = tpu.matmul %112, %17, %cst_54 {dimension_numbers = #tpu.dot_dimension_numbers<[1], [0], [0], [1], [0, 0, 1, 1], [], []>} : vector<8x64xbf16>, vector<64x192xbf16>, vector<8x192xf32> -> vector<8x192xf32>
    %114 = arith.truncf %96 : vector<8x64xf32> to vector<8x64xbf16>
    %cst_55 = arith.constant dense<0.000000e+00> : vector<8x192xf32>
    %115 = tpu.matmul %114, %18, %cst_55 {dimension_numbers = #tpu.dot_dimension_numbers<[1], [0], [0], [1], [0, 0, 1, 1], [], []>} : vector<8x64xbf16>, vector<64x192xbf16>, vector<8x192xf32> -> vector<8x192xf32>
    %116 = vector.extract_strided_slice %108 {offsets = [0, 0], sizes = [8, 64], strides = [1, 1]} : vector<8x192xf32> to vector<8x64xf32>
    %117 = vector.extract_strided_slice %113 {offsets = [0, 0], sizes = [8, 64], strides = [1, 1]} : vector<8x192xf32> to vector<8x64xf32>
    %118 = arith.addf %116, %117 : vector<8x64xf32>
    %cst_56 = arith.constant 5.000000e-01 : f32
    %119 = vector.broadcast %cst_56 : f32 to vector<8x64xf32>
    %120 = arith.mulf %119, %118 : vector<8x64xf32>
    %121 = math.tanh %120 : vector<8x64xf32>
    %cst_57 = arith.constant 5.000000e-01 : f32
    %122 = vector.broadcast %cst_57 : f32 to vector<8x64xf32>
    %123 = arith.mulf %122, %121 : vector<8x64xf32>
    %cst_58 = arith.constant 5.000000e-01 : f32
    %124 = vector.broadcast %cst_58 : f32 to vector<8x64xf32>
    %125 = arith.addf %123, %124 : vector<8x64xf32>
    %126 = vector.extract_strided_slice %108 {offsets = [0, 64], sizes = [8, 64], strides = [1, 1]} : vector<8x192xf32> to vector<8x64xf32>
    %127 = vector.extract_strided_slice %113 {offsets = [0, 64], sizes = [8, 64], strides = [1, 1]} : vector<8x192xf32> to vector<8x64xf32>
    %128 = arith.addf %126, %127 : vector<8x64xf32>
    %cst_59 = arith.constant 5.000000e-01 : f32
    %129 = vector.broadcast %cst_59 : f32 to vector<8x64xf32>
    %130 = arith.mulf %129, %128 : vector<8x64xf32>
    %131 = math.tanh %130 : vector<8x64xf32>
    %cst_60 = arith.constant 5.000000e-01 : f32
    %132 = vector.broadcast %cst_60 : f32 to vector<8x64xf32>
    %133 = arith.mulf %132, %131 : vector<8x64xf32>
    %cst_61 = arith.constant 5.000000e-01 : f32
    %134 = vector.broadcast %cst_61 : f32 to vector<8x64xf32>
    %135 = arith.addf %133, %134 : vector<8x64xf32>
    %136 = vector.extract_strided_slice %108 {offsets = [0, 128], sizes = [8, 64], strides = [1, 1]} : vector<8x192xf32> to vector<8x64xf32>
    %137 = vector.extract_strided_slice %113 {offsets = [0, 128], sizes = [8, 64], strides = [1, 1]} : vector<8x192xf32> to vector<8x64xf32>
    %138 = vector.broadcast %19 : vector<1x64xf32> to vector<8x64xf32>
    %139 = arith.addf %137, %138 : vector<8x64xf32>
    %140 = arith.mulf %125, %139 : vector<8x64xf32>
    %141 = arith.addf %136, %140 : vector<8x64xf32>
    %142 = math.tanh %141 : vector<8x64xf32>
    %cst_62 = arith.constant 1.000000e+00 : f32
    %143 = vector.broadcast %cst_62 : f32 to vector<8x64xf32>
    %144 = arith.subf %143, %135 : vector<8x64xf32>
    %145 = arith.mulf %144, %142 : vector<8x64xf32>
    %146 = arith.mulf %135, %64 : vector<8x64xf32>
    %147 = arith.addf %145, %146 : vector<8x64xf32>
    %148 = vector.extract_strided_slice %111 {offsets = [0, 0], sizes = [8, 64], strides = [1, 1]} : vector<8x192xf32> to vector<8x64xf32>
    %149 = vector.extract_strided_slice %115 {offsets = [0, 0], sizes = [8, 64], strides = [1, 1]} : vector<8x192xf32> to vector<8x64xf32>
    %150 = arith.addf %148, %149 : vector<8x64xf32>
    %cst_63 = arith.constant 5.000000e-01 : f32
    %151 = vector.broadcast %cst_63 : f32 to vector<8x64xf32>
    %152 = arith.mulf %151, %150 : vector<8x64xf32>
    %153 = math.tanh %152 : vector<8x64xf32>
    %cst_64 = arith.constant 5.000000e-01 : f32
    %154 = vector.broadcast %cst_64 : f32 to vector<8x64xf32>
    %155 = arith.mulf %154, %153 : vector<8x64xf32>
    %cst_65 = arith.constant 5.000000e-01 : f32
    %156 = vector.broadcast %cst_65 : f32 to vector<8x64xf32>
    %157 = arith.addf %155, %156 : vector<8x64xf32>
    %158 = vector.extract_strided_slice %111 {offsets = [0, 64], sizes = [8, 64], strides = [1, 1]} : vector<8x192xf32> to vector<8x64xf32>
    %159 = vector.extract_strided_slice %115 {offsets = [0, 64], sizes = [8, 64], strides = [1, 1]} : vector<8x192xf32> to vector<8x64xf32>
    %160 = arith.addf %158, %159 : vector<8x64xf32>
    %cst_66 = arith.constant 5.000000e-01 : f32
    %161 = vector.broadcast %cst_66 : f32 to vector<8x64xf32>
    %162 = arith.mulf %161, %160 : vector<8x64xf32>
    %163 = math.tanh %162 : vector<8x64xf32>
    %cst_67 = arith.constant 5.000000e-01 : f32
    %164 = vector.broadcast %cst_67 : f32 to vector<8x64xf32>
    %165 = arith.mulf %164, %163 : vector<8x64xf32>
    %cst_68 = arith.constant 5.000000e-01 : f32
    %166 = vector.broadcast %cst_68 : f32 to vector<8x64xf32>
    %167 = arith.addf %165, %166 : vector<8x64xf32>
    %168 = vector.extract_strided_slice %111 {offsets = [0, 128], sizes = [8, 64], strides = [1, 1]} : vector<8x192xf32> to vector<8x64xf32>
    %169 = vector.extract_strided_slice %115 {offsets = [0, 128], sizes = [8, 64], strides = [1, 1]} : vector<8x192xf32> to vector<8x64xf32>
    %170 = vector.broadcast %20 : vector<1x64xf32> to vector<8x64xf32>
    %171 = arith.addf %169, %170 : vector<8x64xf32>
    %172 = arith.mulf %157, %171 : vector<8x64xf32>
    %173 = arith.addf %168, %172 : vector<8x64xf32>
    %174 = math.tanh %173 : vector<8x64xf32>
    %cst_69 = arith.constant 1.000000e+00 : f32
    %175 = vector.broadcast %cst_69 : f32 to vector<8x64xf32>
    %176 = arith.subf %175, %167 : vector<8x64xf32>
    %177 = arith.mulf %176, %174 : vector<8x64xf32>
    %178 = arith.mulf %167, %96 : vector<8x64xf32>
    %179 = arith.addf %177, %178 : vector<8x64xf32>
    %180 = arith.index_cast %c1_i32 : i32 to index
    %c0_70 = arith.constant 0 : index
    %c0_71 = arith.constant 0 : index
    %181 = vector.load %arg17[%180, %c0_70, %c0_71] : memref<8x8x128xf32, #tpu.memory_space<vmem>>, vector<1x8x64xf32>
    %182 = vector.shape_cast %181 : vector<1x8x64xf32> to vector<8x64xf32>
    %183 = vector.shape_cast %147 : vector<8x64xf32> to vector<1x8x64xf32>
    tpu.vector_store %arg17[%180, %c0_70, %c0_71], %183 {strides = array<i32>} : memref<8x8x128xf32, #tpu.memory_space<vmem>>, vector<1x8x64xf32>,
    %184 = arith.index_cast %105 : i32 to index
    %c0_72 = arith.constant 0 : index
    %c64_73 = arith.constant 64 : index
    %185 = vector.load %arg17[%184, %c0_72, %c64_73] : memref<8x8x128xf32, #tpu.memory_space<vmem>>, vector<1x8x64xf32>
    %186 = vector.shape_cast %185 : vector<1x8x64xf32> to vector<8x64xf32>
    %187 = vector.shape_cast %179 : vector<8x64xf32> to vector<1x8x64xf32>
    tpu.vector_store %arg17[%184, %c0_72, %c64_73], %187 {strides = array<i32>} : memref<8x8x128xf32, #tpu.memory_space<vmem>>, vector<1x8x64xf32>,
    %c2_i32 = arith.constant 2 : i32
    %c7_i32_74 = arith.constant 7 : i32
    %188 = arith.subi %c7_i32_74, %c2_i32 : i32
    %189 = arith.index_cast %c2_i32 : i32 to index
    %c0_75 = arith.constant 0 : index
    %c0_76 = arith.constant 0 : index
    %190 = vector.load %arg15[%189, %c0_75, %c0_76] : memref<8x8x192xf32, #tpu.memory_space<vmem>>, vector<1x8x192xf32>
    %191 = vector.shape_cast %190 : vector<1x8x192xf32> to vector<8x192xf32>
    %192 = arith.index_cast %188 : i32 to index
    %c0_77 = arith.constant 0 : index
    %c0_78 = arith.constant 0 : index
    %193 = vector.load %arg16[%192, %c0_77, %c0_78] : memref<8x8x192xf32, #tpu.memory_space<vmem>>, vector<1x8x192xf32>
    %194 = vector.shape_cast %193 : vector<1x8x192xf32> to vector<8x192xf32>
    %195 = arith.truncf %147 : vector<8x64xf32> to vector<8x64xbf16>
    %cst_79 = arith.constant dense<0.000000e+00> : vector<8x192xf32>
    %196 = tpu.matmul %195, %17, %cst_79 {dimension_numbers = #tpu.dot_dimension_numbers<[1], [0], [0], [1], [0, 0, 1, 1], [], []>} : vector<8x64xbf16>, vector<64x192xbf16>, vector<8x192xf32> -> vector<8x192xf32>
    %197 = arith.truncf %179 : vector<8x64xf32> to vector<8x64xbf16>
    %cst_80 = arith.constant dense<0.000000e+00> : vector<8x192xf32>
    %198 = tpu.matmul %197, %18, %cst_80 {dimension_numbers = #tpu.dot_dimension_numbers<[1], [0], [0], [1], [0, 0, 1, 1], [], []>} : vector<8x64xbf16>, vector<64x192xbf16>, vector<8x192xf32> -> vector<8x192xf32>
    %199 = vector.extract_strided_slice %191 {offsets = [0, 0], sizes = [8, 64], strides = [1, 1]} : vector<8x192xf32> to vector<8x64xf32>
    %200 = vector.extract_strided_slice %196 {offsets = [0, 0], sizes = [8, 64], strides = [1, 1]} : vector<8x192xf32> to vector<8x64xf32>
    %201 = arith.addf %199, %200 : vector<8x64xf32>
    %cst_81 = arith.constant 5.000000e-01 : f32
    %202 = vector.broadcast %cst_81 : f32 to vector<8x64xf32>
    %203 = arith.mulf %202, %201 : vector<8x64xf32>
    %204 = math.tanh %203 : vector<8x64xf32>
    %cst_82 = arith.constant 5.000000e-01 : f32
    %205 = vector.broadcast %cst_82 : f32 to vector<8x64xf32>
    %206 = arith.mulf %205, %204 : vector<8x64xf32>
    %cst_83 = arith.constant 5.000000e-01 : f32
    %207 = vector.broadcast %cst_83 : f32 to vector<8x64xf32>
    %208 = arith.addf %206, %207 : vector<8x64xf32>
    %209 = vector.extract_strided_slice %191 {offsets = [0, 64], sizes = [8, 64], strides = [1, 1]} : vector<8x192xf32> to vector<8x64xf32>
    %210 = vector.extract_strided_slice %196 {offsets = [0, 64], sizes = [8, 64], strides = [1, 1]} : vector<8x192xf32> to vector<8x64xf32>
    %211 = arith.addf %209, %210 : vector<8x64xf32>
    %cst_84 = arith.constant 5.000000e-01 : f32
    %212 = vector.broadcast %cst_84 : f32 to vector<8x64xf32>
    %213 = arith.mulf %212, %211 : vector<8x64xf32>
    %214 = math.tanh %213 : vector<8x64xf32>
    %cst_85 = arith.constant 5.000000e-01 : f32
    %215 = vector.broadcast %cst_85 : f32 to vector<8x64xf32>
    %216 = arith.mulf %215, %214 : vector<8x64xf32>
    %cst_86 = arith.constant 5.000000e-01 : f32
    %217 = vector.broadcast %cst_86 : f32 to vector<8x64xf32>
    %218 = arith.addf %216, %217 : vector<8x64xf32>
    %219 = vector.extract_strided_slice %191 {offsets = [0, 128], sizes = [8, 64], strides = [1, 1]} : vector<8x192xf32> to vector<8x64xf32>
    %220 = vector.extract_strided_slice %196 {offsets = [0, 128], sizes = [8, 64], strides = [1, 1]} : vector<8x192xf32> to vector<8x64xf32>
    %221 = vector.broadcast %19 : vector<1x64xf32> to vector<8x64xf32>
    %222 = arith.addf %220, %221 : vector<8x64xf32>
    %223 = arith.mulf %208, %222 : vector<8x64xf32>
    %224 = arith.addf %219, %223 : vector<8x64xf32>
    %225 = math.tanh %224 : vector<8x64xf32>
    %cst_87 = arith.constant 1.000000e+00 : f32
    %226 = vector.broadcast %cst_87 : f32 to vector<8x64xf32>
    %227 = arith.subf %226, %218 : vector<8x64xf32>
    %228 = arith.mulf %227, %225 : vector<8x64xf32>
    %229 = arith.mulf %218, %147 : vector<8x64xf32>
    %230 = arith.addf %228, %229 : vector<8x64xf32>
    %231 = vector.extract_strided_slice %194 {offsets = [0, 0], sizes = [8, 64], strides = [1, 1]} : vector<8x192xf32> to vector<8x64xf32>
    %232 = vector.extract_strided_slice %198 {offsets = [0, 0], sizes = [8, 64], strides = [1, 1]} : vector<8x192xf32> to vector<8x64xf32>
    %233 = arith.addf %231, %232 : vector<8x64xf32>
    %cst_88 = arith.constant 5.000000e-01 : f32
    %234 = vector.broadcast %cst_88 : f32 to vector<8x64xf32>
    %235 = arith.mulf %234, %233 : vector<8x64xf32>
    %236 = math.tanh %235 : vector<8x64xf32>
    %cst_89 = arith.constant 5.000000e-01 : f32
    %237 = vector.broadcast %cst_89 : f32 to vector<8x64xf32>
    %238 = arith.mulf %237, %236 : vector<8x64xf32>
    %cst_90 = arith.constant 5.000000e-01 : f32
    %239 = vector.broadcast %cst_90 : f32 to vector<8x64xf32>
    %240 = arith.addf %238, %239 : vector<8x64xf32>
    %241 = vector.extract_strided_slice %194 {offsets = [0, 64], sizes = [8, 64], strides = [1, 1]} : vector<8x192xf32> to vector<8x64xf32>
    %242 = vector.extract_strided_slice %198 {offsets = [0, 64], sizes = [8, 64], strides = [1, 1]} : vector<8x192xf32> to vector<8x64xf32>
    %243 = arith.addf %241, %242 : vector<8x64xf32>
    %cst_91 = arith.constant 5.000000e-01 : f32
    %244 = vector.broadcast %cst_91 : f32 to vector<8x64xf32>
    %245 = arith.mulf %244, %243 : vector<8x64xf32>
    %246 = math.tanh %245 : vector<8x64xf32>
    %cst_92 = arith.constant 5.000000e-01 : f32
    %247 = vector.broadcast %cst_92 : f32 to vector<8x64xf32>
    %248 = arith.mulf %247, %246 : vector<8x64xf32>
    %cst_93 = arith.constant 5.000000e-01 : f32
    %249 = vector.broadcast %cst_93 : f32 to vector<8x64xf32>
    %250 = arith.addf %248, %249 : vector<8x64xf32>
    %251 = vector.extract_strided_slice %194 {offsets = [0, 128], sizes = [8, 64], strides = [1, 1]} : vector<8x192xf32> to vector<8x64xf32>
    %252 = vector.extract_strided_slice %198 {offsets = [0, 128], sizes = [8, 64], strides = [1, 1]} : vector<8x192xf32> to vector<8x64xf32>
    %253 = vector.broadcast %20 : vector<1x64xf32> to vector<8x64xf32>
    %254 = arith.addf %252, %253 : vector<8x64xf32>
    %255 = arith.mulf %240, %254 : vector<8x64xf32>
    %256 = arith.addf %251, %255 : vector<8x64xf32>
    %257 = math.tanh %256 : vector<8x64xf32>
    %cst_94 = arith.constant 1.000000e+00 : f32
    %258 = vector.broadcast %cst_94 : f32 to vector<8x64xf32>
    %259 = arith.subf %258, %250 : vector<8x64xf32>
    %260 = arith.mulf %259, %257 : vector<8x64xf32>
    %261 = arith.mulf %250, %179 : vector<8x64xf32>
    %262 = arith.addf %260, %261 : vector<8x64xf32>
    %263 = arith.index_cast %c2_i32 : i32 to index
    %c0_95 = arith.constant 0 : index
    %c0_96 = arith.constant 0 : index
    %264 = vector.load %arg17[%263, %c0_95, %c0_96] : memref<8x8x128xf32, #tpu.memory_space<vmem>>, vector<1x8x64xf32>
    %265 = vector.shape_cast %264 : vector<1x8x64xf32> to vector<8x64xf32>
    %266 = vector.shape_cast %230 : vector<8x64xf32> to vector<1x8x64xf32>
    tpu.vector_store %arg17[%263, %c0_95, %c0_96], %266 {strides = array<i32>} : memref<8x8x128xf32, #tpu.memory_space<vmem>>, vector<1x8x64xf32>,
    %267 = arith.index_cast %188 : i32 to index
    %c0_97 = arith.constant 0 : index
    %c64_98 = arith.constant 64 : index
    %268 = vector.load %arg17[%267, %c0_97, %c64_98] : memref<8x8x128xf32, #tpu.memory_space<vmem>>, vector<1x8x64xf32>
    %269 = vector.shape_cast %268 : vector<1x8x64xf32> to vector<8x64xf32>
    %270 = vector.shape_cast %262 : vector<8x64xf32> to vector<1x8x64xf32>
    tpu.vector_store %arg17[%267, %c0_97, %c64_98], %270 {strides = array<i32>} : memref<8x8x128xf32, #tpu.memory_space<vmem>>, vector<1x8x64xf32>,
    %c3_i32 = arith.constant 3 : i32
    %c7_i32_99 = arith.constant 7 : i32
    %271 = arith.subi %c7_i32_99, %c3_i32 : i32
    %272 = arith.index_cast %c3_i32 : i32 to index
    %c0_100 = arith.constant 0 : index
    %c0_101 = arith.constant 0 : index
    %273 = vector.load %arg15[%272, %c0_100, %c0_101] : memref<8x8x192xf32, #tpu.memory_space<vmem>>, vector<1x8x192xf32>
    %274 = vector.shape_cast %273 : vector<1x8x192xf32> to vector<8x192xf32>
    %275 = arith.index_cast %271 : i32 to index
    %c0_102 = arith.constant 0 : index
    %c0_103 = arith.constant 0 : index
    %276 = vector.load %arg16[%275, %c0_102, %c0_103] : memref<8x8x192xf32, #tpu.memory_space<vmem>>, vector<1x8x192xf32>
    %277 = vector.shape_cast %276 : vector<1x8x192xf32> to vector<8x192xf32>
    %278 = arith.truncf %230 : vector<8x64xf32> to vector<8x64xbf16>
    %cst_104 = arith.constant dense<0.000000e+00> : vector<8x192xf32>
    %279 = tpu.matmul %278, %17, %cst_104 {dimension_numbers = #tpu.dot_dimension_numbers<[1], [0], [0], [1], [0, 0, 1, 1], [], []>} : vector<8x64xbf16>, vector<64x192xbf16>, vector<8x192xf32> -> vector<8x192xf32>
    %280 = arith.truncf %262 : vector<8x64xf32> to vector<8x64xbf16>
    %cst_105 = arith.constant dense<0.000000e+00> : vector<8x192xf32>
    %281 = tpu.matmul %280, %18, %cst_105 {dimension_numbers = #tpu.dot_dimension_numbers<[1], [0], [0], [1], [0, 0, 1, 1], [], []>} : vector<8x64xbf16>, vector<64x192xbf16>, vector<8x192xf32> -> vector<8x192xf32>
    %282 = vector.extract_strided_slice %274 {offsets = [0, 0], sizes = [8, 64], strides = [1, 1]} : vector<8x192xf32> to vector<8x64xf32>
    %283 = vector.extract_strided_slice %279 {offsets = [0, 0], sizes = [8, 64], strides = [1, 1]} : vector<8x192xf32> to vector<8x64xf32>
    %284 = arith.addf %282, %283 : vector<8x64xf32>
    %cst_106 = arith.constant 5.000000e-01 : f32
    %285 = vector.broadcast %cst_106 : f32 to vector<8x64xf32>
    %286 = arith.mulf %285, %284 : vector<8x64xf32>
    %287 = math.tanh %286 : vector<8x64xf32>
    %cst_107 = arith.constant 5.000000e-01 : f32
    %288 = vector.broadcast %cst_107 : f32 to vector<8x64xf32>
    %289 = arith.mulf %288, %287 : vector<8x64xf32>
    %cst_108 = arith.constant 5.000000e-01 : f32
    %290 = vector.broadcast %cst_108 : f32 to vector<8x64xf32>
    %291 = arith.addf %289, %290 : vector<8x64xf32>
    %292 = vector.extract_strided_slice %274 {offsets = [0, 64], sizes = [8, 64], strides = [1, 1]} : vector<8x192xf32> to vector<8x64xf32>
    %293 = vector.extract_strided_slice %279 {offsets = [0, 64], sizes = [8, 64], strides = [1, 1]} : vector<8x192xf32> to vector<8x64xf32>
    %294 = arith.addf %292, %293 : vector<8x64xf32>
    %cst_109 = arith.constant 5.000000e-01 : f32
    %295 = vector.broadcast %cst_109 : f32 to vector<8x64xf32>
    %296 = arith.mulf %295, %294 : vector<8x64xf32>
    %297 = math.tanh %296 : vector<8x64xf32>
    %cst_110 = arith.constant 5.000000e-01 : f32
    %298 = vector.broadcast %cst_110 : f32 to vector<8x64xf32>
    %299 = arith.mulf %298, %297 : vector<8x64xf32>
    %cst_111 = arith.constant 5.000000e-01 : f32
    %300 = vector.broadcast %cst_111 : f32 to vector<8x64xf32>
    %301 = arith.addf %299, %300 : vector<8x64xf32>
    %302 = vector.extract_strided_slice %274 {offsets = [0, 128], sizes = [8, 64], strides = [1, 1]} : vector<8x192xf32> to vector<8x64xf32>
    %303 = vector.extract_strided_slice %279 {offsets = [0, 128], sizes = [8, 64], strides = [1, 1]} : vector<8x192xf32> to vector<8x64xf32>
    %304 = vector.broadcast %19 : vector<1x64xf32> to vector<8x64xf32>
    %305 = arith.addf %303, %304 : vector<8x64xf32>
    %306 = arith.mulf %291, %305 : vector<8x64xf32>
    %307 = arith.addf %302, %306 : vector<8x64xf32>
    %308 = math.tanh %307 : vector<8x64xf32>
    %cst_112 = arith.constant 1.000000e+00 : f32
    %309 = vector.broadcast %cst_112 : f32 to vector<8x64xf32>
    %310 = arith.subf %309, %301 : vector<8x64xf32>
    %311 = arith.mulf %310, %308 : vector<8x64xf32>
    %312 = arith.mulf %301, %230 : vector<8x64xf32>
    %313 = arith.addf %311, %312 : vector<8x64xf32>
    %314 = vector.extract_strided_slice %277 {offsets = [0, 0], sizes = [8, 64], strides = [1, 1]} : vector<8x192xf32> to vector<8x64xf32>
    %315 = vector.extract_strided_slice %281 {offsets = [0, 0], sizes = [8, 64], strides = [1, 1]} : vector<8x192xf32> to vector<8x64xf32>
    %316 = arith.addf %314, %315 : vector<8x64xf32>
    %cst_113 = arith.constant 5.000000e-01 : f32
    %317 = vector.broadcast %cst_113 : f32 to vector<8x64xf32>
    %318 = arith.mulf %317, %316 : vector<8x64xf32>
    %319 = math.tanh %318 : vector<8x64xf32>
    %cst_114 = arith.constant 5.000000e-01 : f32
    %320 = vector.broadcast %cst_114 : f32 to vector<8x64xf32>
    %321 = arith.mulf %320, %319 : vector<8x64xf32>
    %cst_115 = arith.constant 5.000000e-01 : f32
    %322 = vector.broadcast %cst_115 : f32 to vector<8x64xf32>
    %323 = arith.addf %321, %322 : vector<8x64xf32>
    %324 = vector.extract_strided_slice %277 {offsets = [0, 64], sizes = [8, 64], strides = [1, 1]} : vector<8x192xf32> to vector<8x64xf32>
    %325 = vector.extract_strided_slice %281 {offsets = [0, 64], sizes = [8, 64], strides = [1, 1]} : vector<8x192xf32> to vector<8x64xf32>
    %326 = arith.addf %324, %325 : vector<8x64xf32>
    %cst_116 = arith.constant 5.000000e-01 : f32
    %327 = vector.broadcast %cst_116 : f32 to vector<8x64xf32>
    %328 = arith.mulf %327, %326 : vector<8x64xf32>
    %329 = math.tanh %328 : vector<8x64xf32>
    %cst_117 = arith.constant 5.000000e-01 : f32
    %330 = vector.broadcast %cst_117 : f32 to vector<8x64xf32>
    %331 = arith.mulf %330, %329 : vector<8x64xf32>
    %cst_118 = arith.constant 5.000000e-01 : f32
    %332 = vector.broadcast %cst_118 : f32 to vector<8x64xf32>
    %333 = arith.addf %331, %332 : vector<8x64xf32>
    %334 = vector.extract_strided_slice %277 {offsets = [0, 128], sizes = [8, 64], strides = [1, 1]} : vector<8x192xf32> to vector<8x64xf32>
    %335 = vector.extract_strided_slice %281 {offsets = [0, 128], sizes = [8, 64], strides = [1, 1]} : vector<8x192xf32> to vector<8x64xf32>
    %336 = vector.broadcast %20 : vector<1x64xf32> to vector<8x64xf32>
    %337 = arith.addf %335, %336 : vector<8x64xf32>
    %338 = arith.mulf %323, %337 : vector<8x64xf32>
    %339 = arith.addf %334, %338 : vector<8x64xf32>
    %340 = math.tanh %339 : vector<8x64xf32>
    %cst_119 = arith.constant 1.000000e+00 : f32
    %341 = vector.broadcast %cst_119 : f32 to vector<8x64xf32>
    %342 = arith.subf %341, %333 : vector<8x64xf32>
    %343 = arith.mulf %342, %340 : vector<8x64xf32>
    %344 = arith.mulf %333, %262 : vector<8x64xf32>
    %345 = arith.addf %343, %344 : vector<8x64xf32>
    %346 = arith.index_cast %c3_i32 : i32 to index
    %c0_120 = arith.constant 0 : index
    %c0_121 = arith.constant 0 : index
    %347 = vector.load %arg17[%346, %c0_120, %c0_121] : memref<8x8x128xf32, #tpu.memory_space<vmem>>, vector<1x8x64xf32>
    %348 = vector.shape_cast %347 : vector<1x8x64xf32> to vector<8x64xf32>
    %349 = vector.shape_cast %313 : vector<8x64xf32> to vector<1x8x64xf32>
    tpu.vector_store %arg17[%346, %c0_120, %c0_121], %349 {strides = array<i32>} : memref<8x8x128xf32, #tpu.memory_space<vmem>>, vector<1x8x64xf32>,
    %350 = arith.index_cast %271 : i32 to index
    %c0_122 = arith.constant 0 : index
    %c64_123 = arith.constant 64 : index
    %351 = vector.load %arg17[%350, %c0_122, %c64_123] : memref<8x8x128xf32, #tpu.memory_space<vmem>>, vector<1x8x64xf32>
    %352 = vector.shape_cast %351 : vector<1x8x64xf32> to vector<8x64xf32>
    %353 = vector.shape_cast %345 : vector<8x64xf32> to vector<1x8x64xf32>
    tpu.vector_store %arg17[%350, %c0_122, %c64_123], %353 {strides = array<i32>} : memref<8x8x128xf32, #tpu.memory_space<vmem>>, vector<1x8x64xf32>,
    %c4_i32 = arith.constant 4 : i32
    %c7_i32_124 = arith.constant 7 : i32
    %354 = arith.subi %c7_i32_124, %c4_i32 : i32
    %355 = arith.index_cast %c4_i32 : i32 to index
    %c0_125 = arith.constant 0 : index
    %c0_126 = arith.constant 0 : index
    %356 = vector.load %arg15[%355, %c0_125, %c0_126] : memref<8x8x192xf32, #tpu.memory_space<vmem>>, vector<1x8x192xf32>
    %357 = vector.shape_cast %356 : vector<1x8x192xf32> to vector<8x192xf32>
    %358 = arith.index_cast %354 : i32 to index
    %c0_127 = arith.constant 0 : index
    %c0_128 = arith.constant 0 : index
    %359 = vector.load %arg16[%358, %c0_127, %c0_128] : memref<8x8x192xf32, #tpu.memory_space<vmem>>, vector<1x8x192xf32>
    %360 = vector.shape_cast %359 : vector<1x8x192xf32> to vector<8x192xf32>
    %361 = arith.truncf %313 : vector<8x64xf32> to vector<8x64xbf16>
    %cst_129 = arith.constant dense<0.000000e+00> : vector<8x192xf32>
    %362 = tpu.matmul %361, %17, %cst_129 {dimension_numbers = #tpu.dot_dimension_numbers<[1], [0], [0], [1], [0, 0, 1, 1], [], []>} : vector<8x64xbf16>, vector<64x192xbf16>, vector<8x192xf32> -> vector<8x192xf32>
    %363 = arith.truncf %345 : vector<8x64xf32> to vector<8x64xbf16>
    %cst_130 = arith.constant dense<0.000000e+00> : vector<8x192xf32>
    %364 = tpu.matmul %363, %18, %cst_130 {dimension_numbers = #tpu.dot_dimension_numbers<[1], [0], [0], [1], [0, 0, 1, 1], [], []>} : vector<8x64xbf16>, vector<64x192xbf16>, vector<8x192xf32> -> vector<8x192xf32>
    %365 = vector.extract_strided_slice %357 {offsets = [0, 0], sizes = [8, 64], strides = [1, 1]} : vector<8x192xf32> to vector<8x64xf32>
    %366 = vector.extract_strided_slice %362 {offsets = [0, 0], sizes = [8, 64], strides = [1, 1]} : vector<8x192xf32> to vector<8x64xf32>
    %367 = arith.addf %365, %366 : vector<8x64xf32>
    %cst_131 = arith.constant 5.000000e-01 : f32
    %368 = vector.broadcast %cst_131 : f32 to vector<8x64xf32>
    %369 = arith.mulf %368, %367 : vector<8x64xf32>
    %370 = math.tanh %369 : vector<8x64xf32>
    %cst_132 = arith.constant 5.000000e-01 : f32
    %371 = vector.broadcast %cst_132 : f32 to vector<8x64xf32>
    %372 = arith.mulf %371, %370 : vector<8x64xf32>
    %cst_133 = arith.constant 5.000000e-01 : f32
    %373 = vector.broadcast %cst_133 : f32 to vector<8x64xf32>
    %374 = arith.addf %372, %373 : vector<8x64xf32>
    %375 = vector.extract_strided_slice %357 {offsets = [0, 64], sizes = [8, 64], strides = [1, 1]} : vector<8x192xf32> to vector<8x64xf32>
    %376 = vector.extract_strided_slice %362 {offsets = [0, 64], sizes = [8, 64], strides = [1, 1]} : vector<8x192xf32> to vector<8x64xf32>
    %377 = arith.addf %375, %376 : vector<8x64xf32>
    %cst_134 = arith.constant 5.000000e-01 : f32
    %378 = vector.broadcast %cst_134 : f32 to vector<8x64xf32>
    %379 = arith.mulf %378, %377 : vector<8x64xf32>
    %380 = math.tanh %379 : vector<8x64xf32>
    %cst_135 = arith.constant 5.000000e-01 : f32
    %381 = vector.broadcast %cst_135 : f32 to vector<8x64xf32>
    %382 = arith.mulf %381, %380 : vector<8x64xf32>
    %cst_136 = arith.constant 5.000000e-01 : f32
    %383 = vector.broadcast %cst_136 : f32 to vector<8x64xf32>
    %384 = arith.addf %382, %383 : vector<8x64xf32>
    %385 = vector.extract_strided_slice %357 {offsets = [0, 128], sizes = [8, 64], strides = [1, 1]} : vector<8x192xf32> to vector<8x64xf32>
    %386 = vector.extract_strided_slice %362 {offsets = [0, 128], sizes = [8, 64], strides = [1, 1]} : vector<8x192xf32> to vector<8x64xf32>
    %387 = vector.broadcast %19 : vector<1x64xf32> to vector<8x64xf32>
    %388 = arith.addf %386, %387 : vector<8x64xf32>
    %389 = arith.mulf %374, %388 : vector<8x64xf32>
    %390 = arith.addf %385, %389 : vector<8x64xf32>
    %391 = math.tanh %390 : vector<8x64xf32>
    %cst_137 = arith.constant 1.000000e+00 : f32
    %392 = vector.broadcast %cst_137 : f32 to vector<8x64xf32>
    %393 = arith.subf %392, %384 : vector<8x64xf32>
    %394 = arith.mulf %393, %391 : vector<8x64xf32>
    %395 = arith.mulf %384, %313 : vector<8x64xf32>
    %396 = arith.addf %394, %395 : vector<8x64xf32>
    %397 = vector.extract_strided_slice %360 {offsets = [0, 0], sizes = [8, 64], strides = [1, 1]} : vector<8x192xf32> to vector<8x64xf32>
    %398 = vector.extract_strided_slice %364 {offsets = [0, 0], sizes = [8, 64], strides = [1, 1]} : vector<8x192xf32> to vector<8x64xf32>
    %399 = arith.addf %397, %398 : vector<8x64xf32>
    %cst_138 = arith.constant 5.000000e-01 : f32
    %400 = vector.broadcast %cst_138 : f32 to vector<8x64xf32>
    %401 = arith.mulf %400, %399 : vector<8x64xf32>
    %402 = math.tanh %401 : vector<8x64xf32>
    %cst_139 = arith.constant 5.000000e-01 : f32
    %403 = vector.broadcast %cst_139 : f32 to vector<8x64xf32>
    %404 = arith.mulf %403, %402 : vector<8x64xf32>
    %cst_140 = arith.constant 5.000000e-01 : f32
    %405 = vector.broadcast %cst_140 : f32 to vector<8x64xf32>
    %406 = arith.addf %404, %405 : vector<8x64xf32>
    %407 = vector.extract_strided_slice %360 {offsets = [0, 64], sizes = [8, 64], strides = [1, 1]} : vector<8x192xf32> to vector<8x64xf32>
    %408 = vector.extract_strided_slice %364 {offsets = [0, 64], sizes = [8, 64], strides = [1, 1]} : vector<8x192xf32> to vector<8x64xf32>
    %409 = arith.addf %407, %408 : vector<8x64xf32>
    %cst_141 = arith.constant 5.000000e-01 : f32
    %410 = vector.broadcast %cst_141 : f32 to vector<8x64xf32>
    %411 = arith.mulf %410, %409 : vector<8x64xf32>
    %412 = math.tanh %411 : vector<8x64xf32>
    %cst_142 = arith.constant 5.000000e-01 : f32
    %413 = vector.broadcast %cst_142 : f32 to vector<8x64xf32>
    %414 = arith.mulf %413, %412 : vector<8x64xf32>
    %cst_143 = arith.constant 5.000000e-01 : f32
    %415 = vector.broadcast %cst_143 : f32 to vector<8x64xf32>
    %416 = arith.addf %414, %415 : vector<8x64xf32>
    %417 = vector.extract_strided_slice %360 {offsets = [0, 128], sizes = [8, 64], strides = [1, 1]} : vector<8x192xf32> to vector<8x64xf32>
    %418 = vector.extract_strided_slice %364 {offsets = [0, 128], sizes = [8, 64], strides = [1, 1]} : vector<8x192xf32> to vector<8x64xf32>
    %419 = vector.broadcast %20 : vector<1x64xf32> to vector<8x64xf32>
    %420 = arith.addf %418, %419 : vector<8x64xf32>
    %421 = arith.mulf %406, %420 : vector<8x64xf32>
    %422 = arith.addf %417, %421 : vector<8x64xf32>
    %423 = math.tanh %422 : vector<8x64xf32>
    %cst_144 = arith.constant 1.000000e+00 : f32
    %424 = vector.broadcast %cst_144 : f32 to vector<8x64xf32>
    %425 = arith.subf %424, %416 : vector<8x64xf32>
    %426 = arith.mulf %425, %423 : vector<8x64xf32>
    %427 = arith.mulf %416, %345 : vector<8x64xf32>
    %428 = arith.addf %426, %427 : vector<8x64xf32>
    %429 = arith.index_cast %c4_i32 : i32 to index
    %c0_145 = arith.constant 0 : index
    %c0_146 = arith.constant 0 : index
    %430 = vector.load %arg17[%429, %c0_145, %c0_146] : memref<8x8x128xf32, #tpu.memory_space<vmem>>, vector<1x8x64xf32>
    %431 = vector.shape_cast %430 : vector<1x8x64xf32> to vector<8x64xf32>
    %432 = vector.shape_cast %396 : vector<8x64xf32> to vector<1x8x64xf32>
    tpu.vector_store %arg17[%429, %c0_145, %c0_146], %432 {strides = array<i32>} : memref<8x8x128xf32, #tpu.memory_space<vmem>>, vector<1x8x64xf32>,
    %433 = arith.index_cast %354 : i32 to index
    %c0_147 = arith.constant 0 : index
    %c64_148 = arith.constant 64 : index
    %434 = vector.load %arg17[%433, %c0_147, %c64_148] : memref<8x8x128xf32, #tpu.memory_space<vmem>>, vector<1x8x64xf32>
    %435 = vector.shape_cast %434 : vector<1x8x64xf32> to vector<8x64xf32>
    %436 = vector.shape_cast %428 : vector<8x64xf32> to vector<1x8x64xf32>
    tpu.vector_store %arg17[%433, %c0_147, %c64_148], %436 {strides = array<i32>} : memref<8x8x128xf32, #tpu.memory_space<vmem>>, vector<1x8x64xf32>,
    %c5_i32 = arith.constant 5 : i32
    %c7_i32_149 = arith.constant 7 : i32
    %437 = arith.subi %c7_i32_149, %c5_i32 : i32
    %438 = arith.index_cast %c5_i32 : i32 to index
    %c0_150 = arith.constant 0 : index
    %c0_151 = arith.constant 0 : index
    %439 = vector.load %arg15[%438, %c0_150, %c0_151] : memref<8x8x192xf32, #tpu.memory_space<vmem>>, vector<1x8x192xf32>
    %440 = vector.shape_cast %439 : vector<1x8x192xf32> to vector<8x192xf32>
    %441 = arith.index_cast %437 : i32 to index
    %c0_152 = arith.constant 0 : index
    %c0_153 = arith.constant 0 : index
    %442 = vector.load %arg16[%441, %c0_152, %c0_153] : memref<8x8x192xf32, #tpu.memory_space<vmem>>, vector<1x8x192xf32>
    %443 = vector.shape_cast %442 : vector<1x8x192xf32> to vector<8x192xf32>
    %444 = arith.truncf %396 : vector<8x64xf32> to vector<8x64xbf16>
    %cst_154 = arith.constant dense<0.000000e+00> : vector<8x192xf32>
    %445 = tpu.matmul %444, %17, %cst_154 {dimension_numbers = #tpu.dot_dimension_numbers<[1], [0], [0], [1], [0, 0, 1, 1], [], []>} : vector<8x64xbf16>, vector<64x192xbf16>, vector<8x192xf32> -> vector<8x192xf32>
    %446 = arith.truncf %428 : vector<8x64xf32> to vector<8x64xbf16>
    %cst_155 = arith.constant dense<0.000000e+00> : vector<8x192xf32>
    %447 = tpu.matmul %446, %18, %cst_155 {dimension_numbers = #tpu.dot_dimension_numbers<[1], [0], [0], [1], [0, 0, 1, 1], [], []>} : vector<8x64xbf16>, vector<64x192xbf16>, vector<8x192xf32> -> vector<8x192xf32>
    %448 = vector.extract_strided_slice %440 {offsets = [0, 0], sizes = [8, 64], strides = [1, 1]} : vector<8x192xf32> to vector<8x64xf32>
    %449 = vector.extract_strided_slice %445 {offsets = [0, 0], sizes = [8, 64], strides = [1, 1]} : vector<8x192xf32> to vector<8x64xf32>
    %450 = arith.addf %448, %449 : vector<8x64xf32>
    %cst_156 = arith.constant 5.000000e-01 : f32
    %451 = vector.broadcast %cst_156 : f32 to vector<8x64xf32>
    %452 = arith.mulf %451, %450 : vector<8x64xf32>
    %453 = math.tanh %452 : vector<8x64xf32>
    %cst_157 = arith.constant 5.000000e-01 : f32
    %454 = vector.broadcast %cst_157 : f32 to vector<8x64xf32>
    %455 = arith.mulf %454, %453 : vector<8x64xf32>
    %cst_158 = arith.constant 5.000000e-01 : f32
    %456 = vector.broadcast %cst_158 : f32 to vector<8x64xf32>
    %457 = arith.addf %455, %456 : vector<8x64xf32>
    %458 = vector.extract_strided_slice %440 {offsets = [0, 64], sizes = [8, 64], strides = [1, 1]} : vector<8x192xf32> to vector<8x64xf32>
    %459 = vector.extract_strided_slice %445 {offsets = [0, 64], sizes = [8, 64], strides = [1, 1]} : vector<8x192xf32> to vector<8x64xf32>
    %460 = arith.addf %458, %459 : vector<8x64xf32>
    %cst_159 = arith.constant 5.000000e-01 : f32
    %461 = vector.broadcast %cst_159 : f32 to vector<8x64xf32>
    %462 = arith.mulf %461, %460 : vector<8x64xf32>
    %463 = math.tanh %462 : vector<8x64xf32>
    %cst_160 = arith.constant 5.000000e-01 : f32
    %464 = vector.broadcast %cst_160 : f32 to vector<8x64xf32>
    %465 = arith.mulf %464, %463 : vector<8x64xf32>
    %cst_161 = arith.constant 5.000000e-01 : f32
    %466 = vector.broadcast %cst_161 : f32 to vector<8x64xf32>
    %467 = arith.addf %465, %466 : vector<8x64xf32>
    %468 = vector.extract_strided_slice %440 {offsets = [0, 128], sizes = [8, 64], strides = [1, 1]} : vector<8x192xf32> to vector<8x64xf32>
    %469 = vector.extract_strided_slice %445 {offsets = [0, 128], sizes = [8, 64], strides = [1, 1]} : vector<8x192xf32> to vector<8x64xf32>
    %470 = vector.broadcast %19 : vector<1x64xf32> to vector<8x64xf32>
    %471 = arith.addf %469, %470 : vector<8x64xf32>
    %472 = arith.mulf %457, %471 : vector<8x64xf32>
    %473 = arith.addf %468, %472 : vector<8x64xf32>
    %474 = math.tanh %473 : vector<8x64xf32>
    %cst_162 = arith.constant 1.000000e+00 : f32
    %475 = vector.broadcast %cst_162 : f32 to vector<8x64xf32>
    %476 = arith.subf %475, %467 : vector<8x64xf32>
    %477 = arith.mulf %476, %474 : vector<8x64xf32>
    %478 = arith.mulf %467, %396 : vector<8x64xf32>
    %479 = arith.addf %477, %478 : vector<8x64xf32>
    %480 = vector.extract_strided_slice %443 {offsets = [0, 0], sizes = [8, 64], strides = [1, 1]} : vector<8x192xf32> to vector<8x64xf32>
    %481 = vector.extract_strided_slice %447 {offsets = [0, 0], sizes = [8, 64], strides = [1, 1]} : vector<8x192xf32> to vector<8x64xf32>
    %482 = arith.addf %480, %481 : vector<8x64xf32>
    %cst_163 = arith.constant 5.000000e-01 : f32
    %483 = vector.broadcast %cst_163 : f32 to vector<8x64xf32>
    %484 = arith.mulf %483, %482 : vector<8x64xf32>
    %485 = math.tanh %484 : vector<8x64xf32>
    %cst_164 = arith.constant 5.000000e-01 : f32
    %486 = vector.broadcast %cst_164 : f32 to vector<8x64xf32>
    %487 = arith.mulf %486, %485 : vector<8x64xf32>
    %cst_165 = arith.constant 5.000000e-01 : f32
    %488 = vector.broadcast %cst_165 : f32 to vector<8x64xf32>
    %489 = arith.addf %487, %488 : vector<8x64xf32>
    %490 = vector.extract_strided_slice %443 {offsets = [0, 64], sizes = [8, 64], strides = [1, 1]} : vector<8x192xf32> to vector<8x64xf32>
    %491 = vector.extract_strided_slice %447 {offsets = [0, 64], sizes = [8, 64], strides = [1, 1]} : vector<8x192xf32> to vector<8x64xf32>
    %492 = arith.addf %490, %491 : vector<8x64xf32>
    %cst_166 = arith.constant 5.000000e-01 : f32
    %493 = vector.broadcast %cst_166 : f32 to vector<8x64xf32>
    %494 = arith.mulf %493, %492 : vector<8x64xf32>
    %495 = math.tanh %494 : vector<8x64xf32>
    %cst_167 = arith.constant 5.000000e-01 : f32
    %496 = vector.broadcast %cst_167 : f32 to vector<8x64xf32>
    %497 = arith.mulf %496, %495 : vector<8x64xf32>
    %cst_168 = arith.constant 5.000000e-01 : f32
    %498 = vector.broadcast %cst_168 : f32 to vector<8x64xf32>
    %499 = arith.addf %497, %498 : vector<8x64xf32>
    %500 = vector.extract_strided_slice %443 {offsets = [0, 128], sizes = [8, 64], strides = [1, 1]} : vector<8x192xf32> to vector<8x64xf32>
    %501 = vector.extract_strided_slice %447 {offsets = [0, 128], sizes = [8, 64], strides = [1, 1]} : vector<8x192xf32> to vector<8x64xf32>
    %502 = vector.broadcast %20 : vector<1x64xf32> to vector<8x64xf32>
    %503 = arith.addf %501, %502 : vector<8x64xf32>
    %504 = arith.mulf %489, %503 : vector<8x64xf32>
    %505 = arith.addf %500, %504 : vector<8x64xf32>
    %506 = math.tanh %505 : vector<8x64xf32>
    %cst_169 = arith.constant 1.000000e+00 : f32
    %507 = vector.broadcast %cst_169 : f32 to vector<8x64xf32>
    %508 = arith.subf %507, %499 : vector<8x64xf32>
    %509 = arith.mulf %508, %506 : vector<8x64xf32>
    %510 = arith.mulf %499, %428 : vector<8x64xf32>
    %511 = arith.addf %509, %510 : vector<8x64xf32>
    %512 = arith.index_cast %c5_i32 : i32 to index
    %c0_170 = arith.constant 0 : index
    %c0_171 = arith.constant 0 : index
    %513 = vector.load %arg17[%512, %c0_170, %c0_171] : memref<8x8x128xf32, #tpu.memory_space<vmem>>, vector<1x8x64xf32>
    %514 = vector.shape_cast %513 : vector<1x8x64xf32> to vector<8x64xf32>
    %515 = vector.shape_cast %479 : vector<8x64xf32> to vector<1x8x64xf32>
    tpu.vector_store %arg17[%512, %c0_170, %c0_171], %515 {strides = array<i32>} : memref<8x8x128xf32, #tpu.memory_space<vmem>>, vector<1x8x64xf32>,
    %516 = arith.index_cast %437 : i32 to index
    %c0_172 = arith.constant 0 : index
    %c64_173 = arith.constant 64 : index
    %517 = vector.load %arg17[%516, %c0_172, %c64_173] : memref<8x8x128xf32, #tpu.memory_space<vmem>>, vector<1x8x64xf32>
    %518 = vector.shape_cast %517 : vector<1x8x64xf32> to vector<8x64xf32>
    %519 = vector.shape_cast %511 : vector<8x64xf32> to vector<1x8x64xf32>
    tpu.vector_store %arg17[%516, %c0_172, %c64_173], %519 {strides = array<i32>} : memref<8x8x128xf32, #tpu.memory_space<vmem>>, vector<1x8x64xf32>,
    %c6_i32 = arith.constant 6 : i32
    %c7_i32_174 = arith.constant 7 : i32
    %520 = arith.subi %c7_i32_174, %c6_i32 : i32
    %521 = arith.index_cast %c6_i32 : i32 to index
    %c0_175 = arith.constant 0 : index
    %c0_176 = arith.constant 0 : index
    %522 = vector.load %arg15[%521, %c0_175, %c0_176] : memref<8x8x192xf32, #tpu.memory_space<vmem>>, vector<1x8x192xf32>
    %523 = vector.shape_cast %522 : vector<1x8x192xf32> to vector<8x192xf32>
    %524 = arith.index_cast %520 : i32 to index
    %c0_177 = arith.constant 0 : index
    %c0_178 = arith.constant 0 : index
    %525 = vector.load %arg16[%524, %c0_177, %c0_178] : memref<8x8x192xf32, #tpu.memory_space<vmem>>, vector<1x8x192xf32>
    %526 = vector.shape_cast %525 : vector<1x8x192xf32> to vector<8x192xf32>
    %527 = arith.truncf %479 : vector<8x64xf32> to vector<8x64xbf16>
    %cst_179 = arith.constant dense<0.000000e+00> : vector<8x192xf32>
    %528 = tpu.matmul %527, %17, %cst_179 {dimension_numbers = #tpu.dot_dimension_numbers<[1], [0], [0], [1], [0, 0, 1, 1], [], []>} : vector<8x64xbf16>, vector<64x192xbf16>, vector<8x192xf32> -> vector<8x192xf32>
    %529 = arith.truncf %511 : vector<8x64xf32> to vector<8x64xbf16>
    %cst_180 = arith.constant dense<0.000000e+00> : vector<8x192xf32>
    %530 = tpu.matmul %529, %18, %cst_180 {dimension_numbers = #tpu.dot_dimension_numbers<[1], [0], [0], [1], [0, 0, 1, 1], [], []>} : vector<8x64xbf16>, vector<64x192xbf16>, vector<8x192xf32> -> vector<8x192xf32>
    %531 = vector.extract_strided_slice %523 {offsets = [0, 0], sizes = [8, 64], strides = [1, 1]} : vector<8x192xf32> to vector<8x64xf32>
    %532 = vector.extract_strided_slice %528 {offsets = [0, 0], sizes = [8, 64], strides = [1, 1]} : vector<8x192xf32> to vector<8x64xf32>
    %533 = arith.addf %531, %532 : vector<8x64xf32>
    %cst_181 = arith.constant 5.000000e-01 : f32
    %534 = vector.broadcast %cst_181 : f32 to vector<8x64xf32>
    %535 = arith.mulf %534, %533 : vector<8x64xf32>
    %536 = math.tanh %535 : vector<8x64xf32>
    %cst_182 = arith.constant 5.000000e-01 : f32
    %537 = vector.broadcast %cst_182 : f32 to vector<8x64xf32>
    %538 = arith.mulf %537, %536 : vector<8x64xf32>
    %cst_183 = arith.constant 5.000000e-01 : f32
    %539 = vector.broadcast %cst_183 : f32 to vector<8x64xf32>
    %540 = arith.addf %538, %539 : vector<8x64xf32>
    %541 = vector.extract_strided_slice %523 {offsets = [0, 64], sizes = [8, 64], strides = [1, 1]} : vector<8x192xf32> to vector<8x64xf32>
    %542 = vector.extract_strided_slice %528 {offsets = [0, 64], sizes = [8, 64], strides = [1, 1]} : vector<8x192xf32> to vector<8x64xf32>
    %543 = arith.addf %541, %542 : vector<8x64xf32>
    %cst_184 = arith.constant 5.000000e-01 : f32
    %544 = vector.broadcast %cst_184 : f32 to vector<8x64xf32>
    %545 = arith.mulf %544, %543 : vector<8x64xf32>
    %546 = math.tanh %545 : vector<8x64xf32>
    %cst_185 = arith.constant 5.000000e-01 : f32
    %547 = vector.broadcast %cst_185 : f32 to vector<8x64xf32>
    %548 = arith.mulf %547, %546 : vector<8x64xf32>
    %cst_186 = arith.constant 5.000000e-01 : f32
    %549 = vector.broadcast %cst_186 : f32 to vector<8x64xf32>
    %550 = arith.addf %548, %549 : vector<8x64xf32>
    %551 = vector.extract_strided_slice %523 {offsets = [0, 128], sizes = [8, 64], strides = [1, 1]} : vector<8x192xf32> to vector<8x64xf32>
    %552 = vector.extract_strided_slice %528 {offsets = [0, 128], sizes = [8, 64], strides = [1, 1]} : vector<8x192xf32> to vector<8x64xf32>
    %553 = vector.broadcast %19 : vector<1x64xf32> to vector<8x64xf32>
    %554 = arith.addf %552, %553 : vector<8x64xf32>
    %555 = arith.mulf %540, %554 : vector<8x64xf32>
    %556 = arith.addf %551, %555 : vector<8x64xf32>
    %557 = math.tanh %556 : vector<8x64xf32>
    %cst_187 = arith.constant 1.000000e+00 : f32
    %558 = vector.broadcast %cst_187 : f32 to vector<8x64xf32>
    %559 = arith.subf %558, %550 : vector<8x64xf32>
    %560 = arith.mulf %559, %557 : vector<8x64xf32>
    %561 = arith.mulf %550, %479 : vector<8x64xf32>
    %562 = arith.addf %560, %561 : vector<8x64xf32>
    %563 = vector.extract_strided_slice %526 {offsets = [0, 0], sizes = [8, 64], strides = [1, 1]} : vector<8x192xf32> to vector<8x64xf32>
    %564 = vector.extract_strided_slice %530 {offsets = [0, 0], sizes = [8, 64], strides = [1, 1]} : vector<8x192xf32> to vector<8x64xf32>
    %565 = arith.addf %563, %564 : vector<8x64xf32>
    %cst_188 = arith.constant 5.000000e-01 : f32
    %566 = vector.broadcast %cst_188 : f32 to vector<8x64xf32>
    %567 = arith.mulf %566, %565 : vector<8x64xf32>
    %568 = math.tanh %567 : vector<8x64xf32>
    %cst_189 = arith.constant 5.000000e-01 : f32
    %569 = vector.broadcast %cst_189 : f32 to vector<8x64xf32>
    %570 = arith.mulf %569, %568 : vector<8x64xf32>
    %cst_190 = arith.constant 5.000000e-01 : f32
    %571 = vector.broadcast %cst_190 : f32 to vector<8x64xf32>
    %572 = arith.addf %570, %571 : vector<8x64xf32>
    %573 = vector.extract_strided_slice %526 {offsets = [0, 64], sizes = [8, 64], strides = [1, 1]} : vector<8x192xf32> to vector<8x64xf32>
    %574 = vector.extract_strided_slice %530 {offsets = [0, 64], sizes = [8, 64], strides = [1, 1]} : vector<8x192xf32> to vector<8x64xf32>
    %575 = arith.addf %573, %574 : vector<8x64xf32>
    %cst_191 = arith.constant 5.000000e-01 : f32
    %576 = vector.broadcast %cst_191 : f32 to vector<8x64xf32>
    %577 = arith.mulf %576, %575 : vector<8x64xf32>
    %578 = math.tanh %577 : vector<8x64xf32>
    %cst_192 = arith.constant 5.000000e-01 : f32
    %579 = vector.broadcast %cst_192 : f32 to vector<8x64xf32>
    %580 = arith.mulf %579, %578 : vector<8x64xf32>
    %cst_193 = arith.constant 5.000000e-01 : f32
    %581 = vector.broadcast %cst_193 : f32 to vector<8x64xf32>
    %582 = arith.addf %580, %581 : vector<8x64xf32>
    %583 = vector.extract_strided_slice %526 {offsets = [0, 128], sizes = [8, 64], strides = [1, 1]} : vector<8x192xf32> to vector<8x64xf32>
    %584 = vector.extract_strided_slice %530 {offsets = [0, 128], sizes = [8, 64], strides = [1, 1]} : vector<8x192xf32> to vector<8x64xf32>
    %585 = vector.broadcast %20 : vector<1x64xf32> to vector<8x64xf32>
    %586 = arith.addf %584, %585 : vector<8x64xf32>
    %587 = arith.mulf %572, %586 : vector<8x64xf32>
    %588 = arith.addf %583, %587 : vector<8x64xf32>
    %589 = math.tanh %588 : vector<8x64xf32>
    %cst_194 = arith.constant 1.000000e+00 : f32
    %590 = vector.broadcast %cst_194 : f32 to vector<8x64xf32>
    %591 = arith.subf %590, %582 : vector<8x64xf32>
    %592 = arith.mulf %591, %589 : vector<8x64xf32>
    %593 = arith.mulf %582, %511 : vector<8x64xf32>
    %594 = arith.addf %592, %593 : vector<8x64xf32>
    %595 = arith.index_cast %c6_i32 : i32 to index
    %c0_195 = arith.constant 0 : index
    %c0_196 = arith.constant 0 : index
    %596 = vector.load %arg17[%595, %c0_195, %c0_196] : memref<8x8x128xf32, #tpu.memory_space<vmem>>, vector<1x8x64xf32>
    %597 = vector.shape_cast %596 : vector<1x8x64xf32> to vector<8x64xf32>
    %598 = vector.shape_cast %562 : vector<8x64xf32> to vector<1x8x64xf32>
    tpu.vector_store %arg17[%595, %c0_195, %c0_196], %598 {strides = array<i32>} : memref<8x8x128xf32, #tpu.memory_space<vmem>>, vector<1x8x64xf32>,
    %599 = arith.index_cast %520 : i32 to index
    %c0_197 = arith.constant 0 : index
    %c64_198 = arith.constant 64 : index
    %600 = vector.load %arg17[%599, %c0_197, %c64_198] : memref<8x8x128xf32, #tpu.memory_space<vmem>>, vector<1x8x64xf32>
    %601 = vector.shape_cast %600 : vector<1x8x64xf32> to vector<8x64xf32>
    %602 = vector.shape_cast %594 : vector<8x64xf32> to vector<1x8x64xf32>
    tpu.vector_store %arg17[%599, %c0_197, %c64_198], %602 {strides = array<i32>} : memref<8x8x128xf32, #tpu.memory_space<vmem>>, vector<1x8x64xf32>,
    %c7_i32_199 = arith.constant 7 : i32
    %c7_i32_200 = arith.constant 7 : i32
    %603 = arith.subi %c7_i32_200, %c7_i32_199 : i32
    %604 = arith.index_cast %c7_i32_199 : i32 to index
    %c0_201 = arith.constant 0 : index
    %c0_202 = arith.constant 0 : index
    %605 = vector.load %arg15[%604, %c0_201, %c0_202] : memref<8x8x192xf32, #tpu.memory_space<vmem>>, vector<1x8x192xf32>
    %606 = vector.shape_cast %605 : vector<1x8x192xf32> to vector<8x192xf32>
    %607 = arith.index_cast %603 : i32 to index
    %c0_203 = arith.constant 0 : index
    %c0_204 = arith.constant 0 : index
    %608 = vector.load %arg16[%607, %c0_203, %c0_204] : memref<8x8x192xf32, #tpu.memory_space<vmem>>, vector<1x8x192xf32>
    %609 = vector.shape_cast %608 : vector<1x8x192xf32> to vector<8x192xf32>
    %610 = arith.truncf %562 : vector<8x64xf32> to vector<8x64xbf16>
    %cst_205 = arith.constant dense<0.000000e+00> : vector<8x192xf32>
    %611 = tpu.matmul %610, %17, %cst_205 {dimension_numbers = #tpu.dot_dimension_numbers<[1], [0], [0], [1], [0, 0, 1, 1], [], []>} : vector<8x64xbf16>, vector<64x192xbf16>, vector<8x192xf32> -> vector<8x192xf32>
    %612 = arith.truncf %594 : vector<8x64xf32> to vector<8x64xbf16>
    %cst_206 = arith.constant dense<0.000000e+00> : vector<8x192xf32>
    %613 = tpu.matmul %612, %18, %cst_206 {dimension_numbers = #tpu.dot_dimension_numbers<[1], [0], [0], [1], [0, 0, 1, 1], [], []>} : vector<8x64xbf16>, vector<64x192xbf16>, vector<8x192xf32> -> vector<8x192xf32>
    %614 = vector.extract_strided_slice %606 {offsets = [0, 0], sizes = [8, 64], strides = [1, 1]} : vector<8x192xf32> to vector<8x64xf32>
    %615 = vector.extract_strided_slice %611 {offsets = [0, 0], sizes = [8, 64], strides = [1, 1]} : vector<8x192xf32> to vector<8x64xf32>
    %616 = arith.addf %614, %615 : vector<8x64xf32>
    %cst_207 = arith.constant 5.000000e-01 : f32
    %617 = vector.broadcast %cst_207 : f32 to vector<8x64xf32>
    %618 = arith.mulf %617, %616 : vector<8x64xf32>
    %619 = math.tanh %618 : vector<8x64xf32>
    %cst_208 = arith.constant 5.000000e-01 : f32
    %620 = vector.broadcast %cst_208 : f32 to vector<8x64xf32>
    %621 = arith.mulf %620, %619 : vector<8x64xf32>
    %cst_209 = arith.constant 5.000000e-01 : f32
    %622 = vector.broadcast %cst_209 : f32 to vector<8x64xf32>
    %623 = arith.addf %621, %622 : vector<8x64xf32>
    %624 = vector.extract_strided_slice %606 {offsets = [0, 64], sizes = [8, 64], strides = [1, 1]} : vector<8x192xf32> to vector<8x64xf32>
    %625 = vector.extract_strided_slice %611 {offsets = [0, 64], sizes = [8, 64], strides = [1, 1]} : vector<8x192xf32> to vector<8x64xf32>
    %626 = arith.addf %624, %625 : vector<8x64xf32>
    %cst_210 = arith.constant 5.000000e-01 : f32
    %627 = vector.broadcast %cst_210 : f32 to vector<8x64xf32>
    %628 = arith.mulf %627, %626 : vector<8x64xf32>
    %629 = math.tanh %628 : vector<8x64xf32>
    %cst_211 = arith.constant 5.000000e-01 : f32
    %630 = vector.broadcast %cst_211 : f32 to vector<8x64xf32>
    %631 = arith.mulf %630, %629 : vector<8x64xf32>
    %cst_212 = arith.constant 5.000000e-01 : f32
    %632 = vector.broadcast %cst_212 : f32 to vector<8x64xf32>
    %633 = arith.addf %631, %632 : vector<8x64xf32>
    %634 = vector.extract_strided_slice %606 {offsets = [0, 128], sizes = [8, 64], strides = [1, 1]} : vector<8x192xf32> to vector<8x64xf32>
    %635 = vector.extract_strided_slice %611 {offsets = [0, 128], sizes = [8, 64], strides = [1, 1]} : vector<8x192xf32> to vector<8x64xf32>
    %636 = vector.broadcast %19 : vector<1x64xf32> to vector<8x64xf32>
    %637 = arith.addf %635, %636 : vector<8x64xf32>
    %638 = arith.mulf %623, %637 : vector<8x64xf32>
    %639 = arith.addf %634, %638 : vector<8x64xf32>
    %640 = math.tanh %639 : vector<8x64xf32>
    %cst_213 = arith.constant 1.000000e+00 : f32
    %641 = vector.broadcast %cst_213 : f32 to vector<8x64xf32>
    %642 = arith.subf %641, %633 : vector<8x64xf32>
    %643 = arith.mulf %642, %640 : vector<8x64xf32>
    %644 = arith.mulf %633, %562 : vector<8x64xf32>
    %645 = arith.addf %643, %644 : vector<8x64xf32>
    %646 = vector.extract_strided_slice %609 {offsets = [0, 0], sizes = [8, 64], strides = [1, 1]} : vector<8x192xf32> to vector<8x64xf32>
    %647 = vector.extract_strided_slice %613 {offsets = [0, 0], sizes = [8, 64], strides = [1, 1]} : vector<8x192xf32> to vector<8x64xf32>
    %648 = arith.addf %646, %647 : vector<8x64xf32>
    %cst_214 = arith.constant 5.000000e-01 : f32
    %649 = vector.broadcast %cst_214 : f32 to vector<8x64xf32>
    %650 = arith.mulf %649, %648 : vector<8x64xf32>
    %651 = math.tanh %650 : vector<8x64xf32>
    %cst_215 = arith.constant 5.000000e-01 : f32
    %652 = vector.broadcast %cst_215 : f32 to vector<8x64xf32>
    %653 = arith.mulf %652, %651 : vector<8x64xf32>
    %cst_216 = arith.constant 5.000000e-01 : f32
    %654 = vector.broadcast %cst_216 : f32 to vector<8x64xf32>
    %655 = arith.addf %653, %654 : vector<8x64xf32>
    %656 = vector.extract_strided_slice %609 {offsets = [0, 64], sizes = [8, 64], strides = [1, 1]} : vector<8x192xf32> to vector<8x64xf32>
    %657 = vector.extract_strided_slice %613 {offsets = [0, 64], sizes = [8, 64], strides = [1, 1]} : vector<8x192xf32> to vector<8x64xf32>
    %658 = arith.addf %656, %657 : vector<8x64xf32>
    %cst_217 = arith.constant 5.000000e-01 : f32
    %659 = vector.broadcast %cst_217 : f32 to vector<8x64xf32>
    %660 = arith.mulf %659, %658 : vector<8x64xf32>
    %661 = math.tanh %660 : vector<8x64xf32>
    %cst_218 = arith.constant 5.000000e-01 : f32
    %662 = vector.broadcast %cst_218 : f32 to vector<8x64xf32>
    %663 = arith.mulf %662, %661 : vector<8x64xf32>
    %cst_219 = arith.constant 5.000000e-01 : f32
    %664 = vector.broadcast %cst_219 : f32 to vector<8x64xf32>
    %665 = arith.addf %663, %664 : vector<8x64xf32>
    %666 = vector.extract_strided_slice %609 {offsets = [0, 128], sizes = [8, 64], strides = [1, 1]} : vector<8x192xf32> to vector<8x64xf32>
    %667 = vector.extract_strided_slice %613 {offsets = [0, 128], sizes = [8, 64], strides = [1, 1]} : vector<8x192xf32> to vector<8x64xf32>
    %668 = vector.broadcast %20 : vector<1x64xf32> to vector<8x64xf32>
    %669 = arith.addf %667, %668 : vector<8x64xf32>
    %670 = arith.mulf %655, %669 : vector<8x64xf32>
    %671 = arith.addf %666, %670 : vector<8x64xf32>
    %672 = math.tanh %671 : vector<8x64xf32>
    %cst_220 = arith.constant 1.000000e+00 : f32
    %673 = vector.broadcast %cst_220 : f32 to vector<8x64xf32>
    %674 = arith.subf %673, %665 : vector<8x64xf32>
    %675 = arith.mulf %674, %672 : vector<8x64xf32>
    %676 = arith.mulf %665, %594 : vector<8x64xf32>
    %677 = arith.addf %675, %676 : vector<8x64xf32>
    %678 = arith.index_cast %c7_i32_199 : i32 to index
    %c0_221 = arith.constant 0 : index
    %c0_222 = arith.constant 0 : index
    %679 = vector.load %arg17[%678, %c0_221, %c0_222] : memref<8x8x128xf32, #tpu.memory_space<vmem>>, vector<1x8x64xf32>
    %680 = vector.shape_cast %679 : vector<1x8x64xf32> to vector<8x64xf32>
    %681 = vector.shape_cast %645 : vector<8x64xf32> to vector<1x8x64xf32>
    tpu.vector_store %arg17[%678, %c0_221, %c0_222], %681 {strides = array<i32>} : memref<8x8x128xf32, #tpu.memory_space<vmem>>, vector<1x8x64xf32>,
    %682 = arith.index_cast %603 : i32 to index
    %c0_223 = arith.constant 0 : index
    %c64_224 = arith.constant 64 : index
    %683 = vector.load %arg17[%682, %c0_223, %c64_224] : memref<8x8x128xf32, #tpu.memory_space<vmem>>, vector<1x8x64xf32>
    %684 = vector.shape_cast %683 : vector<1x8x64xf32> to vector<8x64xf32>
    %685 = vector.shape_cast %677 : vector<8x64xf32> to vector<1x8x64xf32>
    tpu.vector_store %arg17[%682, %c0_223, %c64_224], %685 {strides = array<i32>} : memref<8x8x128xf32, #tpu.memory_space<vmem>>, vector<1x8x64xf32>,
    %c8_i32 = arith.constant 8 : i32
    %c0_225 = arith.constant 0 : index
    %c0_226 = arith.constant 0 : index
    %c0_227 = arith.constant 0 : index
    %686 = vector.load %arg17[%c0_225, %c0_226, %c0_227] : memref<8x8x128xf32, #tpu.memory_space<vmem>>, vector<8x8x128xf32>
    %687 = vector.shape_cast %686 : vector<8x8x128xf32> to vector<64x128xf32>
    %688 = arith.truncf %687 : vector<64x128xf32> to vector<64x128xbf16>
    %c0_228 = arith.constant 0 : index
    %c0_229 = arith.constant 0 : index
    %689 = vector.load %arg11[%c0_228, %c0_229] : memref<128x128xbf16, #tpu.memory_space<vmem>>, vector<128x128xbf16>
    %cst_230 = arith.constant dense<0.000000e+00> : vector<64x128xf32>
    %690 = tpu.matmul %688, %689, %cst_230 {dimension_numbers = #tpu.dot_dimension_numbers<[1], [0], [0], [1], [0, 0, 1, 1], [], []>} : vector<64x128xbf16>, vector<128x128xbf16>, vector<64x128xf32> -> vector<64x128xf32>
    %c0_231 = arith.constant 0 : index
    %c0_232 = arith.constant 0 : index
    %691 = vector.load %arg12[%c0_231, %c0_232] : memref<1x128xf32, #tpu.memory_space<vmem>>, vector<1x128xf32>
    %692 = vector.broadcast %691 : vector<1x128xf32> to vector<64x128xf32>
    %693 = arith.addf %690, %692 : vector<64x128xf32>
    %694 = math.tanh %693 : vector<64x128xf32>
    %c0_233 = arith.constant 0 : index
    %c0_234 = arith.constant 0 : index
    %695 = vector.load %arg13[%c0_233, %c0_234] : memref<1x128xf32, #tpu.memory_space<vmem>>, vector<1x128xf32>
    %696 = vector.broadcast %695 : vector<1x128xf32> to vector<64x128xf32>
    %697 = arith.mulf %694, %696 : vector<64x128xf32>
    %cst_235 = arith.constant dense<0.000000e+00> : vector<64xf32>
    %698 = vector.multi_reduction <add>, %697, %cst_235 [1] : vector<64x128xf32> to vector<64xf32>
    %699 = vector.shape_cast %698 : vector<64xf32> to vector<64x1xf32>
    %700 = vector.shape_cast %699 : vector<64x1xf32> to vector<8x8x1xf32>
    %c0_236 = arith.constant 0 : index
    %c0_237 = arith.constant 0 : index
    %701 = vector.load %arg2[%c0_236, %c0_237] : memref<8x1xi32, #tpu.memory_space<vmem>>, vector<8x1xi32>
    %702 = tpu.iota {dimensions = array<i32: 0>} : vector<8x8x1xi32>
    %703 = vector.shape_cast %701 : vector<8x1xi32> to vector<1x8x1xi32>
    %704 = vector.broadcast %703 : vector<1x8x1xi32> to vector<8x8x1xi32>
    %705 = arith.cmpi slt, %702, %704 : vector<8x8x1xi32>
    %706 = arith.extui %705 : vector<8x8x1xi1> to vector<8x8x1xi32>
    %707 = arith.sitofp %706 : vector<8x8x1xi32> to vector<8x8x1xf32>
    %708 = math.exp %700 : vector<8x8x1xf32>
    %709 = arith.mulf %708, %707 : vector<8x8x1xf32>
    %cst_238 = arith.constant dense<0.000000e+00> : vector<8x1xf32>
    %710 = vector.multi_reduction <add>, %709, %cst_238 [0] : vector<8x8x1xf32> to vector<8x1xf32>
    %711 = vector.shape_cast %710 : vector<8x1xf32> to vector<1x8x1xf32>
    %cst_239 = arith.constant 9.99999974E-5 : f32
    %712 = vector.broadcast %cst_239 : f32 to vector<1x8x1xf32>
    %713 = arith.addf %711, %712 : vector<1x8x1xf32>
    %714 = tpu.reciprocal %713 {approx = true} : vector<1x8x1xf32> -> vector<1x8x1xf32>
    %715 = vector.broadcast %714 : vector<1x8x1xf32> to vector<8x8x1xf32>
    %716 = arith.mulf %709, %715 : vector<8x8x1xf32>
    %717 = vector.broadcast %716 : vector<8x8x1xf32> to vector<8x8x128xf32>
    %718 = arith.mulf %717, %686 : vector<8x8x128xf32>
    %cst_240 = arith.constant dense<0.000000e+00> : vector<8x128xf32>
    %719 = vector.multi_reduction <add>, %718, %cst_240 [0] : vector<8x8x128xf32> to vector<8x128xf32>
    %c0_241 = arith.constant 0 : index
    %c0_242 = arith.constant 0 : index
    %720 = vector.load %arg14[%c0_241, %c0_242] : memref<8x128xf32, #tpu.memory_space<vmem>>, vector<8x128xf32>
    tpu.vector_store %arg14[%c0_241, %c0_242], %719 {strides = array<i32>} : memref<8x128xf32, #tpu.memory_space<vmem>>, vector<8x128xf32>,
    return
  }
  func.func @transform_0(%arg0: i32) -> (i32, i32, i32) {
    %c0_i32 = arith.constant 0 : i32
    %c0_i32_0 = arith.constant 0 : i32
    %c0_i32_1 = arith.constant 0 : i32
    return %c0_i32, %arg0, %c0_i32_0 : i32, i32, i32
  }
  func.func @transform_1(%arg0: i32) -> (i32, i32) {
    %c0_i32 = arith.constant 0 : i32
    %c0_i32_0 = arith.constant 0 : i32
    return %arg0, %c0_i32 : i32, i32
  }
  func.func @transform_2(%arg0: i32) -> (i32, i32) {
    %c0_i32 = arith.constant 0 : i32
    %c0_i32_0 = arith.constant 0 : i32
    %c0_i32_1 = arith.constant 0 : i32
    return %c0_i32, %c0_i32_0 : i32, i32
  }
  func.func @transform_3(%arg0: i32) -> (i32, i32) {
    %c0_i32 = arith.constant 0 : i32
    %c0_i32_0 = arith.constant 0 : i32
    %c0_i32_1 = arith.constant 0 : i32
    return %c0_i32, %c0_i32_0 : i32, i32
  }
  func.func @transform_4(%arg0: i32) -> (i32, i32) {
    %c0_i32 = arith.constant 0 : i32
    %c0_i32_0 = arith.constant 0 : i32
    %c0_i32_1 = arith.constant 0 : i32
    return %c0_i32, %c0_i32_0 : i32, i32
  }
  func.func @transform_5(%arg0: i32) -> (i32, i32) {
    %c0_i32 = arith.constant 0 : i32
    %c0_i32_0 = arith.constant 0 : i32
    %c0_i32_1 = arith.constant 0 : i32
    return %c0_i32, %c0_i32_0 : i32, i32
  }
  func.func @transform_6(%arg0: i32) -> (i32, i32) {
    %c0_i32 = arith.constant 0 : i32
    %c0_i32_0 = arith.constant 0 : i32
    %c0_i32_1 = arith.constant 0 : i32
    return %c0_i32, %c0_i32_0 : i32, i32
  }
  func.func @transform_7(%arg0: i32) -> (i32, i32) {
    %c0_i32 = arith.constant 0 : i32
    %c0_i32_0 = arith.constant 0 : i32
    %c0_i32_1 = arith.constant 0 : i32
    return %c0_i32, %c0_i32_0 : i32, i32
  }
  func.func @transform_8(%arg0: i32) -> (i32, i32) {
    %c0_i32 = arith.constant 0 : i32
    %c0_i32_0 = arith.constant 0 : i32
    %c0_i32_1 = arith.constant 0 : i32
    return %c0_i32, %c0_i32_0 : i32, i32
  }
  func.func @transform_9(%arg0: i32) -> (i32, i32) {
    %c0_i32 = arith.constant 0 : i32
    %c0_i32_0 = arith.constant 0 : i32
    %c0_i32_1 = arith.constant 0 : i32
    return %c0_i32, %c0_i32_0 : i32, i32
  }
  func.func @transform_10(%arg0: i32) -> (i32, i32) {
    %c0_i32 = arith.constant 0 : i32
    %c0_i32_0 = arith.constant 0 : i32
    %c0_i32_1 = arith.constant 0 : i32
    return %c0_i32, %c0_i32_0 : i32, i32
  }
  func.func @transform_11(%arg0: i32) -> (i32, i32) {
    %c0_i32 = arith.constant 0 : i32
    %c0_i32_0 = arith.constant 0 : i32
    %c0_i32_1 = arith.constant 0 : i32
    return %c0_i32, %c0_i32_0 : i32, i32
  }
  func.func @transform_12(%arg0: i32) -> (i32, i32) {
    %c0_i32 = arith.constant 0 : i32
    %c0_i32_0 = arith.constant 0 : i32
    %c0_i32_1 = arith.constant 0 : i32
    return %c0_i32, %c0_i32_0 : i32, i32
  }
  func.func @transform_13(%arg0: i32) -> (i32, i32) {
    %c0_i32 = arith.constant 0 : i32
    %c0_i32_0 = arith.constant 0 : i32
    return %arg0, %c0_i32 : i32, i32
  }
}

</mosaic_0001>

<llo_original>
// kernel: tpu_custom_call.1
$region0: #{tpu_custom_call.1}
  #allocation0 [shape = 'u32[]', space=smem, size = 0x4, offset = 0x4, fixed_abs, tag = 'smem constant byte address 0x4 - core index']
  #allocation1 [shape = 'u32[72,128]{1,0:T(1,128)}', space=vmem, size = 0x9000, scoped, tag = 'internal scratch']
  #allocation2 [shape = 'f32[8,8,192]{2,1,0:T(8,128)}', space=vmem, size = 0x10000, scoped, tag = 'scratch operand']
  #allocation3 [shape = 'f32[8,8,192]{2,1,0:T(8,128)}', space=vmem, size = 0x10000, scoped, tag = 'scratch operand']
  #allocation4 [shape = 'f32[8,8,128]{2,1,0:T(8,128)}', space=vmem, size = 0x8000, scoped, tag = 'scratch operand']
  %s0 = inlined_call_operand.hbm [shape: f32[8,8,32], index: 0, kind: input, shape index: {}]
  %s1 = inlined_call_operand.vmem [shape: s32[8,1], index: 1, kind: input, shape index: {}]
  %s2 = inlined_call_operand.hbm [shape: bf16[32,192], index: 2, kind: input, shape index: {}]
  %s3 = inlined_call_operand.hbm [shape: bf16[32,192], index: 3, kind: input, shape index: {}]
  %s4 = inlined_call_operand.vmem [shape: f32[1,192], index: 4, kind: input, shape index: {}]
  %s5 = inlined_call_operand.vmem [shape: f32[1,192], index: 5, kind: input, shape index: {}]
  %s6 = inlined_call_operand.hbm [shape: bf16[64,192], index: 6, kind: input, shape index: {}]
  %s7 = inlined_call_operand.hbm [shape: bf16[64,192], index: 7, kind: input, shape index: {}]
  %s8 = inlined_call_operand.vmem [shape: f32[1,64], index: 8, kind: input, shape index: {}]
  %s9 = inlined_call_operand.vmem [shape: f32[1,64], index: 9, kind: input, shape index: {}]
  %s10 = inlined_call_operand.hbm [shape: bf16[128,128], index: 10, kind: input, shape index: {}]
  %s11 = inlined_call_operand.vmem [shape: f32[1,128], index: 11, kind: input, shape index: {}]
  %s12 = inlined_call_operand.vmem [shape: f32[1,128], index: 12, kind: input, shape index: {}]
  %s13 = inlined_call_operand.hbm [shape: f32[8,128], index: 13, kind: output, shape index: {}]
  %s14 = sld [smem:[#allocation0]]
  $region86: #{tpu_custom_call.1} parent=0
    _
  %s16 = ssub.s32 1, %s14
  %s17 = scalar_select 0, %s16, %s14
  $region1: #{tpu_custom_call.1} parent=0
    #allocation5 [shape = 'u8[32768]{0}', space=vmem, size = 0x8000, scoped, tag = 'input window, operand 0, single buffered']
    #allocation6 [shape = 's32[1]{0}', space=sflag, size = 0x4, scoped, tag = 'scoped memory for tpu_custom_call.1']
    #allocation7 [shape = 's32[1]{0}', space=sflag, size = 0x4, scoped, tag = 'scoped memory for tpu_custom_call.1']
    #allocation8 [shape = 'u8[16384]{0}', space=vmem, size = 0x4000, scoped, tag = 'input window, operand 2, single buffered']
    #allocation9 [shape = 's32[1]{0}', space=sflag, size = 0x4, scoped, tag = 'scoped memory for tpu_custom_call.1']
    #allocation10 [shape = 'u8[16384]{0}', space=vmem, size = 0x4000, scoped, tag = 'input window, operand 3, single buffered']
    #allocation11 [shape = 'u8[32768]{0}', space=vmem, size = 0x8000, scoped, tag = 'input window, operand 6, single buffered']
    #allocation12 [shape = 's32[1]{0}', space=sflag, size = 0x4, scoped, tag = 'scoped memory for tpu_custom_call.1']
    #allocation13 [shape = 'u8[32768]{0}', space=vmem, size = 0x8000, scoped, tag = 'input window, operand 7, single buffered']
    #allocation14 [shape = 'u8[32768]{0}', space=vmem, size = 0x8000, scoped, tag = 'input window, operand 10, single buffered']
    #allocation15 [shape = 's32[1]{0}', space=sflag, size = 0x4, scoped, tag = 'scoped memory for tpu_custom_call.1']
    #allocation16 [shape = 'u8[4096]{0}', space=vmem, size = 0x1000, scoped, tag = 'output window, operand 0, single buffered']
    %18 = vsyncpa [#allocation6], 0
    %19 = vsyncpa [#allocation9], 0
    %20 = vsyncpa [#allocation12], 0
    %21 = vsyncpa [#allocation15], 0
    %22 = vsyncpa [#allocation7], 0
    // Predicated region
    $region2: #{tpu_custom_call.1} parent=1 // pred_check
      _
    $region3: #{tpu_custom_call.1} parent=1 // pred_check_branch
      %24 = sbr.rel (0) target = $region5
    $region4: #{tpu_custom_call.1} parent=1 // pred_region
      %26 = vsyncadd [#allocation6], 0
      %s27 = sshll.u32 %s0, 4
      %s28 = int_to_ptr.hbm [resolvable:$true] %s27
      %s29 = sshll.u32 [#allocation5], 4
      %s30 = int_to_ptr.vmem [resolvable:$true] %s29
      %35 = dma.hbm_to_vmem [thread:$0]  %s28, 1024, %s30, [#allocation6], 128, 128, 8
    $region5: #{tpu_custom_call.1} parent=1 // pred_fallthru
      _
    // Predicated region
    $region6: #{tpu_custom_call.1} parent=1 // pred_check
      _
    $region7: #{tpu_custom_call.1} parent=1 // pred_check_branch
      %37 = sbr.rel (0) target = $region9
    $region8: #{tpu_custom_call.1} parent=1 // pred_region
      _
    $region9: #{tpu_custom_call.1} parent=1 // pred_fallthru
      _
    // Predicated region
    $region10: #{tpu_custom_call.1} parent=1 // pred_check
      _
    $region11: #{tpu_custom_call.1} parent=1 // pred_check_branch
      %39 = sbr.rel (0) target = $region13
    $region12: #{tpu_custom_call.1} parent=1 // pred_region
      %41 = vsyncadd [#allocation9], 0
      %s42 = sshll.u32 %s2, 4
      %s43 = int_to_ptr.hbm [resolvable:$true] %s42
      %s44 = sshll.u32 [#allocation8], 4
      %s45 = int_to_ptr.vmem [resolvable:$true] %s44
      %50 = dma.hbm_to_vmem [thread:$0]  %s43, 512, %s45, [#allocation9], 128, 128, 8
    $region13: #{tpu_custom_call.1} parent=1 // pred_fallthru
      _
    // Predicated region
    $region14: #{tpu_custom_call.1} parent=1 // pred_check
      _
    $region15: #{tpu_custom_call.1} parent=1 // pred_check_branch
      %52 = sbr.rel (0) target = $region17
    $region16: #{tpu_custom_call.1} parent=1 // pred_region
      %54 = vsyncadd [#allocation9], 0
      %s55 = sshll.u32 %s3, 4
      %s56 = int_to_ptr.hbm [resolvable:$true] %s55
      %s57 = sshll.u32 [#allocation10], 4
      %s58 = int_to_ptr.vmem [resolvable:$true] %s57
      %63 = dma.hbm_to_vmem [thread:$0]  %s56, 512, %s58, [#allocation9], 128, 128, 8
    $region17: #{tpu_custom_call.1} parent=1 // pred_fallthru
      _
    // Predicated region
    $region18: #{tpu_custom_call.1} parent=1 // pred_check
      _
    $region19: #{tpu_custom_call.1} parent=1 // pred_check_branch
      %65 = sbr.rel (0) target = $region21
    $region20: #{tpu_custom_call.1} parent=1 // pred_region
      _
    $region21: #{tpu_custom_call.1} parent=1 // pred_fallthru
      _
    // Predicated region
    $region22: #{tpu_custom_call.1} parent=1 // pred_check
      _
    $region23: #{tpu_custom_call.1} parent=1 // pred_check_branch
      %67 = sbr.rel (0) target = $region25
    $region24: #{tpu_custom_call.1} parent=1 // pred_region
      _
    $region25: #{tpu_custom_call.1} parent=1 // pred_fallthru
      _
    // Predicated region
    $region26: #{tpu_custom_call.1} parent=1 // pred_check
      _
    $region27: #{tpu_custom_call.1} parent=1 // pred_check_branch
      %69 = sbr.rel (0) target = $region29
    $region28: #{tpu_custom_call.1} parent=1 // pred_region
      %71 = vsyncadd [#allocation12], 0
      %s72 = sshll.u32 %s6, 4
      %s73 = int_to_ptr.hbm [resolvable:$true] %s72
      %s74 = sshll.u32 [#allocation11], 4
      %s75 = int_to_ptr.vmem [resolvable:$true] %s74
      %80 = dma.hbm_to_vmem [thread:$0]  %s73, 1024, %s75, [#allocation12], 128, 128, 8
    $region29: #{tpu_custom_call.1} parent=1 // pred_fallthru
      _
    // Predicated region
    $region30: #{tpu_custom_call.1} parent=1 // pred_check
      _
    $region31: #{tpu_custom_call.1} parent=1 // pred_check_branch
      %82 = sbr.rel (0) target = $region33
    $region32: #{tpu_custom_call.1} parent=1 // pred_region
      %84 = vsyncadd [#allocation12], 0
      %s85 = sshll.u32 %s7, 4
      %s86 = int_to_ptr.hbm [resolvable:$true] %s85
      %s87 = sshll.u32 [#allocation13], 4
      %s88 = int_to_ptr.vmem [resolvable:$true] %s87
      %93 = dma.hbm_to_vmem [thread:$0]  %s86, 1024, %s88, [#allocation12], 128, 128, 8
    $region33: #{tpu_custom_call.1} parent=1 // pred_fallthru
      _
    // Predicated region
    $region34: #{tpu_custom_call.1} parent=1 // pred_check
      _
    $region35: #{tpu_custom_call.1} parent=1 // pred_check_branch
      %95 = sbr.rel (0) target = $region37
    $region36: #{tpu_custom_call.1} parent=1 // pred_region
      _
    $region37: #{tpu_custom_call.1} parent=1 // pred_fallthru
      _
    // Predicated region
    $region38: #{tpu_custom_call.1} parent=1 // pred_check
      _
    $region39: #{tpu_custom_call.1} parent=1 // pred_check_branch
      %97 = sbr.rel (0) target = $region41
    $region40: #{tpu_custom_call.1} parent=1 // pred_region
      _
    $region41: #{tpu_custom_call.1} parent=1 // pred_fallthru
      _
    // Predicated region
    $region42: #{tpu_custom_call.1} parent=1 // pred_check
      _
    $region43: #{tpu_custom_call.1} parent=1 // pred_check_branch
      %99 = sbr.rel (0) target = $region45
    $region44: #{tpu_custom_call.1} parent=1 // pred_region
      %101 = vsyncadd [#allocation15], 0
      %s102 = sshll.u32 %s10, 4
      %s103 = int_to_ptr.hbm [resolvable:$true] %s102
      %s104 = sshll.u32 [#allocation14], 4
      %s105 = int_to_ptr.vmem [resolvable:$true] %s104
      %110 = dma.hbm_to_vmem [thread:$0]  %s103, 1024, %s105, [#allocation15], 64, 64, 4
    $region45: #{tpu_custom_call.1} parent=1 // pred_fallthru
      _
    // Predicated region
    $region46: #{tpu_custom_call.1} parent=1 // pred_check
      _
    $region47: #{tpu_custom_call.1} parent=1 // pred_check_branch
      %112 = sbr.rel (0) target = $region49
    $region48: #{tpu_custom_call.1} parent=1 // pred_region
      _
    $region49: #{tpu_custom_call.1} parent=1 // pred_fallthru
      _
    // Predicated region
    $region50: #{tpu_custom_call.1} parent=1 // pred_check
      _
    $region51: #{tpu_custom_call.1} parent=1 // pred_check_branch
      %114 = sbr.rel (0) target = $region53
    $region52: #{tpu_custom_call.1} parent=1 // pred_region
      _
    $region53: #{tpu_custom_call.1} parent=1 // pred_fallthru
      _
    // Predicated region
    $region54: #{tpu_custom_call.1} parent=1 // pred_check
      _
    $region55: #{tpu_custom_call.1} parent=1 // pred_check_branch
      %116 = sbr.rel (0) target = $region57
    $region56: #{tpu_custom_call.1} parent=1 // pred_region
      %118 = dma.done [#allocation6], 1024
    $region57: #{tpu_custom_call.1} parent=1 // pred_fallthru
      _
    // Predicated region
    $region58: #{tpu_custom_call.1} parent=1 // pred_check
      _
    $region59: #{tpu_custom_call.1} parent=1 // pred_check_branch
      %120 = sbr.rel (0) target = $region61
    $region60: #{tpu_custom_call.1} parent=1 // pred_region
      %122 = dma.done [#allocation9], 512
    $region61: #{tpu_custom_call.1} parent=1 // pred_fallthru
      _
    // Predicated region
    $region62: #{tpu_custom_call.1} parent=1 // pred_check
      _
    $region63: #{tpu_custom_call.1} parent=1 // pred_check_branch
      %124 = sbr.rel (0) target = $region65
    $region64: #{tpu_custom_call.1} parent=1 // pred_region
      %126 = dma.done [#allocation9], 512
    $region65: #{tpu_custom_call.1} parent=1 // pred_fallthru
      _
    // Predicated region
    $region66: #{tpu_custom_call.1} parent=1 // pred_check
      _
    $region67: #{tpu_custom_call.1} parent=1 // pred_check_branch
      %128 = sbr.rel (0) target = $region69
    $region68: #{tpu_custom_call.1} parent=1 // pred_region
      %130 = dma.done [#allocation12], 1024
    $region69: #{tpu_custom_call.1} parent=1 // pred_fallthru
      _
    // Predicated region
    $region70: #{tpu_custom_call.1} parent=1 // pred_check
      _
    $region71: #{tpu_custom_call.1} parent=1 // pred_check_branch
      %132 = sbr.rel (0) target = $region73
    $region72: #{tpu_custom_call.1} parent=1 // pred_region
      %134 = dma.done [#allocation12], 1024
    $region73: #{tpu_custom_call.1} parent=1 // pred_fallthru
      _
    // Predicated region
    $region74: #{tpu_custom_call.1} parent=1 // pred_check
      _
    $region75: #{tpu_custom_call.1} parent=1 // pred_check_branch
      %136 = sbr.rel (0) target = $region77
    $region76: #{tpu_custom_call.1} parent=1 // pred_region
      %138 = dma.done [#allocation15], 1024
    $region77: #{tpu_custom_call.1} parent=1 // pred_fallthru
      _
    %v140 = vld [vmem:[#allocation5] sm:$0xff]
    %v141 = vld [vmem:[#allocation5 + $0x8] sm:$0xff]
    %v142 = vld [vmem:[#allocation5 + $0x10] sm:$0xff]
    %v143 = vld [vmem:[#allocation5 + $0x18] sm:$0xff]
    %v144 = vld [vmem:[#allocation5 + $0x20] sm:$0xff]
    %v145 = vld [vmem:[#allocation5 + $0x28] sm:$0xff]
    %v146 = vld [vmem:[#allocation5 + $0x30] sm:$0xff]
    %v147 = vld [vmem:[#allocation5 + $0x38] sm:$0xff]
    %v148 = vpack.c.bf16 %v141, %v140
    %v149 = vpack.c.bf16 %v143, %v142
    %v150 = vpack.c.bf16 %v145, %v144
    %v151 = vpack.c.bf16 %v147, %v146
    %v152 = vld [vmem:[#allocation8] sm:$0xff]
    %v153 = vld [vmem:[#allocation8 + $0x8] sm:$0xff]
    %v154 = vld [vmem:[#allocation8 + $0x10] sm:$0xff]
    %v155 = vld [vmem:[#allocation8 + $0x18] sm:$0xff]
    %v156 = vld [vmem:[%s4] sm:$0x3]
    %v158 = vperm.slane %v156, 0
    %v159 = vperm.slane %v156, 1
    %v166 = vunpack.c.l.b16 %v152
    %v167 = vunpack.c.h.b16 %v152
    %v168 = vunpack.c.l.b16 %v153
    %v169 = vunpack.c.h.b16 %v153
    %v170 = vunpack.c.l.b16 %v154
    %v171 = vunpack.c.h.b16 %v154
    %v172 = vunpack.c.l.b16 %v155
    %v173 = vunpack.c.h.b16 %v155
    %v174 = vpack.c.b16 %v168, %v166
    %v175 = vpack.c.b16 %v169, %v167
    %v176 = vpack.c.b16 %v172, %v170
    %v177 = vpack.c.b16 %v173, %v171
    %vm182 = vcmask 261120
    %v184 = vsel %vm182, %v148, 0
    %v187 = vsel %vm182, %v149, 0
    %v190 = vsel %vm182, %v150, 0
    %v193 = vsel %vm182, %v151, 0
    %195 = vmatpush.bf16.msra.mxu0 0
    %196 = vmatpush.bf16.msra.mxu0 0
    %197 = vmatpush.bf16.msra.mxu0 0
    %198 = vmatpush.bf16.msra.mxu0 0
    %199 = vmatpush.bf16.msra.mxu0 0
    %200 = vmatpush.bf16.msra.mxu0 0
    %201 = vmatpush.bf16.msra.mxu0 %v176
    %202 = vmatpush.bf16.msra.mxu0 %v174
    %203 = vmatmul.bf16.gmra.mxu0 %v184
    %v204 = vpop.f32.mrf.mxu0
    %v205 = vadd.f32 %v158, %v204
    %v206 = vpop.f32.mrf.mxu0
    %v207 = vadd.f32 %v158, %v206
    %208 = vmatmul.bf16.gmra.mxu0 %v187
    %v209 = vpop.f32.mrf.mxu0
    %v210 = vadd.f32 %v158, %v209
    %v211 = vpop.f32.mrf.mxu0
    %v212 = vadd.f32 %v158, %v211
    %213 = vmatmul.bf16.gmra.mxu0 %v190
    %v214 = vpop.f32.mrf.mxu0
    %v215 = vadd.f32 %v158, %v214
    %v216 = vpop.f32.mrf.mxu0
    %v217 = vadd.f32 %v158, %v216
    %218 = vmatmul.bf16.gmra.mxu0 %v193
    %v219 = vpop.f32.mrf.mxu0
    %v220 = vadd.f32 %v158, %v219
    %v221 = vpop.f32.mrf.mxu0
    %v222 = vadd.f32 %v158, %v221
    %223 = vdwg.mxu0
    %224 = vmatpush.bf16.msra.mxu0 0
    %225 = vmatpush.bf16.msra.mxu0 0
    %226 = vmatpush.bf16.msra.mxu0 0
    %227 = vmatpush.bf16.msra.mxu0 0
    %228 = vmatpush.bf16.msra.mxu0 0
    %229 = vmatpush.bf16.msra.mxu0 0
    %230 = vmatpush.bf16.msra.mxu0 %v177
    %231 = vmatpush.bf16.msra.mxu0 %v175
    %232 = vmatmul.bf16.gmra.mxu0 %v184
    %v233 = vpop.f32.mrf.mxu0
    %v234 = vadd.f32 %v159, %v233
    %v235 = vpop.f32.mrf.mxu0
    %v236 = vadd.f32 %v159, %v235
    %237 = vmatmul.bf16.gmra.mxu0 %v187
    %v238 = vpop.f32.mrf.mxu0
    %v239 = vadd.f32 %v159, %v238
    %v240 = vpop.f32.mrf.mxu0
    %v241 = vadd.f32 %v159, %v240
    %242 = vmatmul.bf16.gmra.mxu0 %v190
    %v243 = vpop.f32.mrf.mxu0
    %v244 = vadd.f32 %v159, %v243
    %v245 = vpop.f32.mrf.mxu0
    %v246 = vadd.f32 %v159, %v245
    %247 = vmatmul.bf16.gmra.mxu0 %v193
    %v248 = vpop.f32.mrf.mxu0
    %v249 = vadd.f32 %v159, %v248
    %v250 = vpop.f32.mrf.mxu0
    %v251 = vadd.f32 %v159, %v250
    %252 = vdwg.mxu0
    %253 = vst [vmem:[#allocation2] sm:$0xff] %v205
    %vm254 = vcmask 523264
    %255 = vst.msk [vmem:[#allocation2 + $0x8] sm:$0xff] %vm254, %v234
    %256 = vst [vmem:[#allocation2 + $0x10] sm:$0xff] %v207
    %257 = vst.msk [vmem:[#allocation2 + $0x18] sm:$0xff] %vm254, %v236
    %258 = vst [vmem:[#allocation2 + $0x20] sm:$0xff] %v210
    %259 = vst.msk [vmem:[#allocation2 + $0x28] sm:$0xff] %vm254, %v239
    %260 = vst [vmem:[#allocation2 + $0x30] sm:$0xff] %v212
    %261 = vst.msk [vmem:[#allocation2 + $0x38] sm:$0xff] %vm254, %v241
    %262 = vst [vmem:[#allocation2 + $0x40] sm:$0xff] %v215
    %263 = vst.msk [vmem:[#allocation2 + $0x48] sm:$0xff] %vm254, %v244
    %264 = vst [vmem:[#allocation2 + $0x50] sm:$0xff] %v217
    %265 = vst.msk [vmem:[#allocation2 + $0x58] sm:$0xff] %vm254, %v246
    %266 = vst [vmem:[#allocation2 + $0x60] sm:$0xff] %v220
    %267 = vst.msk [vmem:[#allocation2 + $0x68] sm:$0xff] %vm254, %v249
    %268 = vst [vmem:[#allocation2 + $0x70] sm:$0xff] %v222
    %269 = vst.msk [vmem:[#allocation2 + $0x78] sm:$0xff] %vm254, %v251
    %v270 = vld [vmem:[#allocation10] sm:$0xff]
    %v271 = vld [vmem:[#allocation10 + $0x8] sm:$0xff]
    %v272 = vld [vmem:[#allocation10 + $0x10] sm:$0xff]
    %v273 = vld [vmem:[#allocation10 + $0x18] sm:$0xff]
    %v274 = vld [vmem:[%s5] sm:$0x3]
    %v276 = vperm.slane %v274, 0
    %v277 = vperm.slane %v274, 1
    %v284 = vunpack.c.l.b16 %v270
    %v285 = vunpack.c.h.b16 %v270
    %v286 = vunpack.c.l.b16 %v271
    %v287 = vunpack.c.h.b16 %v271
    %v288 = vunpack.c.l.b16 %v272
    %v289 = vunpack.c.h.b16 %v272
    %v290 = vunpack.c.l.b16 %v273
    %v291 = vunpack.c.h.b16 %v273
    %v292 = vpack.c.b16 %v286, %v284
    %v293 = vpack.c.b16 %v287, %v285
    %v294 = vpack.c.b16 %v290, %v288
    %v295 = vpack.c.b16 %v291, %v289
    %300 = vmatpush.bf16.msra.mxu0 0
    %301 = vmatpush.bf16.msra.mxu0 0
    %302 = vmatpush.bf16.msra.mxu0 0
    %303 = vmatpush.bf16.msra.mxu0 0
    %304 = vmatpush.bf16.msra.mxu0 0
    %305 = vmatpush.bf16.msra.mxu0 0
    %306 = vmatpush.bf16.msra.mxu0 %v294
    %307 = vmatpush.bf16.msra.mxu0 %v292
    %308 = vmatmul.bf16.gmra.mxu0 %v184
    %v309 = vpop.f32.mrf.mxu0
    %v310 = vadd.f32 %v276, %v309
    %v311 = vpop.f32.mrf.mxu0
    %v312 = vadd.f32 %v276, %v311
    %313 = vmatmul.bf16.gmra.mxu0 %v187
    %v314 = vpop.f32.mrf.mxu0
    %v315 = vadd.f32 %v276, %v314
    %v316 = vpop.f32.mrf.mxu0
    %v317 = vadd.f32 %v276, %v316
    %318 = vmatmul.bf16.gmra.mxu0 %v190
    %v319 = vpop.f32.mrf.mxu0
    %v320 = vadd.f32 %v276, %v319
    %v321 = vpop.f32.mrf.mxu0
    %v322 = vadd.f32 %v276, %v321
    %323 = vmatmul.bf16.gmra.mxu0 %v193
    %v324 = vpop.f32.mrf.mxu0
    %v325 = vadd.f32 %v276, %v324
    %v326 = vpop.f32.mrf.mxu0
    %v327 = vadd.f32 %v276, %v326
    %328 = vdwg.mxu0
    %329 = vmatpush.bf16.msra.mxu0 0
    %330 = vmatpush.bf16.msra.mxu0 0
    %331 = vmatpush.bf16.msra.mxu0 0
    %332 = vmatpush.bf16.msra.mxu0 0
    %333 = vmatpush.bf16.msra.mxu0 0
    %334 = vmatpush.bf16.msra.mxu0 0
    %335 = vmatpush.bf16.msra.mxu0 %v295
    %336 = vmatpush.bf16.msra.mxu0 %v293
    %337 = vmatmul.bf16.gmra.mxu0 %v184
    %v338 = vpop.f32.mrf.mxu0
    %v339 = vadd.f32 %v277, %v338
    %v340 = vpop.f32.mrf.mxu0
    %v341 = vadd.f32 %v277, %v340
    %342 = vmatmul.bf16.gmra.mxu0 %v187
    %v343 = vpop.f32.mrf.mxu0
    %v344 = vadd.f32 %v277, %v343
    %v345 = vpop.f32.mrf.mxu0
    %v346 = vadd.f32 %v277, %v345
    %347 = vmatmul.bf16.gmra.mxu0 %v190
    %v348 = vpop.f32.mrf.mxu0
    %v349 = vadd.f32 %v277, %v348
    %v350 = vpop.f32.mrf.mxu0
    %v351 = vadd.f32 %v277, %v350
    %352 = vmatmul.bf16.gmra.mxu0 %v193
    %v353 = vpop.f32.mrf.mxu0
    %v354 = vadd.f32 %v277, %v353
    %v355 = vpop.f32.mrf.mxu0
    %v356 = vadd.f32 %v277, %v355
    %357 = vdwg.mxu0
    %358 = vst [vmem:[#allocation3] sm:$0xff] %v310
    %359 = vst.msk [vmem:[#allocation3 + $0x8] sm:$0xff] %vm254, %v339
    %360 = vst [vmem:[#allocation3 + $0x10] sm:$0xff] %v312
    %361 = vst.msk [vmem:[#allocation3 + $0x18] sm:$0xff] %vm254, %v341
    %362 = vst [vmem:[#allocation3 + $0x20] sm:$0xff] %v315
    %363 = vst.msk [vmem:[#allocation3 + $0x28] sm:$0xff] %vm254, %v344
    %364 = vst [vmem:[#allocation3 + $0x30] sm:$0xff] %v317
    %365 = vst.msk [vmem:[#allocation3 + $0x38] sm:$0xff] %vm254, %v346
    %366 = vst [vmem:[#allocation3 + $0x40] sm:$0xff] %v320
    %367 = vst.msk [vmem:[#allocation3 + $0x48] sm:$0xff] %vm254, %v349
    %368 = vst [vmem:[#allocation3 + $0x50] sm:$0xff] %v322
    %369 = vst.msk [vmem:[#allocation3 + $0x58] sm:$0xff] %vm254, %v351
    %370 = vst [vmem:[#allocation3 + $0x60] sm:$0xff] %v325
    %371 = vst.msk [vmem:[#allocation3 + $0x68] sm:$0xff] %vm254, %v354
    %372 = vst [vmem:[#allocation3 + $0x70] sm:$0xff] %v327
    %373 = vst.msk [vmem:[#allocation3 + $0x78] sm:$0xff] %vm254, %v356
    %v374 = vld [vmem:[#allocation11] sm:$0xff]
    %v375 = vld [vmem:[#allocation11 + $0x8] sm:$0xff]
    %v376 = vld [vmem:[#allocation11 + $0x10] sm:$0xff]
    %v377 = vld [vmem:[#allocation11 + $0x18] sm:$0xff]
    %v378 = vld [vmem:[#allocation11 + $0x20] sm:$0xff]
    %v379 = vld [vmem:[#allocation11 + $0x28] sm:$0xff]
    %v380 = vld [vmem:[#allocation11 + $0x30] sm:$0xff]
    %v381 = vld [vmem:[#allocation11 + $0x38] sm:$0xff]
    %v382 = vld [vmem:[#allocation13] sm:$0xff]
    %v383 = vld [vmem:[#allocation13 + $0x8] sm:$0xff]
    %v384 = vld [vmem:[#allocation13 + $0x10] sm:$0xff]
    %v385 = vld [vmem:[#allocation13 + $0x18] sm:$0xff]
    %v386 = vld [vmem:[#allocation13 + $0x20] sm:$0xff]
    %v387 = vld [vmem:[#allocation13 + $0x28] sm:$0xff]
    %v388 = vld [vmem:[#allocation13 + $0x30] sm:$0xff]
    %v389 = vld [vmem:[#allocation13 + $0x38] sm:$0xff]
    %v390 = vld [vmem:[%s8] sm:$0x1]
    %v391 = vld [vmem:[%s9] sm:$0x1]
    %v392 = vld [vmem:[#allocation2] sm:$0xff]
    %v393 = vld [vmem:[#allocation2 + $0x8] sm:$0xff]
    %s394 = scalar_lea.vmem [#allocation3], 112
    %v395 = vld [vmem:[%s394] sm:$0xff]
    %v396 = vld [vmem:[%s394 + $0x8] sm:$0xff]
    %v405 = vunpack.c.l.b16 %v374
    %v406 = vunpack.c.h.b16 %v374
    %v407 = vunpack.c.l.b16 %v375
    %v408 = vunpack.c.h.b16 %v375
    %v409 = vunpack.c.l.b16 %v376
    %v410 = vunpack.c.h.b16 %v376
    %v411 = vunpack.c.l.b16 %v377
    %v412 = vunpack.c.h.b16 %v377
    %v413 = vunpack.c.l.b16 %v378
    %v414 = vunpack.c.h.b16 %v378
    %v415 = vunpack.c.l.b16 %v379
    %v416 = vunpack.c.h.b16 %v379
    %v417 = vunpack.c.l.b16 %v380
    %v418 = vunpack.c.h.b16 %v380
    %v419 = vunpack.c.l.b16 %v381
    %v420 = vunpack.c.h.b16 %v381
    %v421 = vpack.c.b16 %v407, %v405
    %v422 = vpack.c.b16 %v408, %v406
    %v423 = vpack.c.b16 %v411, %v409
    %v424 = vpack.c.b16 %v412, %v410
    %v425 = vpack.c.b16 %v415, %v413
    %v426 = vpack.c.b16 %v416, %v414
    %v427 = vpack.c.b16 %v419, %v417
    %v428 = vpack.c.b16 %v420, %v418
    %v438 = vsel %vm254, 0, 0
    %440 = vmatpush.bf16.msra.mxu0 0
    %441 = vmatpush.bf16.msra.mxu0 0
    %442 = vmatpush.bf16.msra.mxu0 0
    %443 = vmatpush.bf16.msra.mxu0 0
    %444 = vmatpush.bf16.msra.mxu0 %v427
    %445 = vmatpush.bf16.msra.mxu0 %v425
    %446 = vmatpush.bf16.msra.mxu0 %v423
    %447 = vmatpush.bf16.msra.mxu0 %v421
    %448 = vmatmul.bf16.gmra.mxu0 %v438
    %v449 = vpop.f32.mrf.mxu0
    %v450 = vadd.f32 0.0, %v449
    %v451 = vpop.f32.mrf.mxu0
    %452 = vdwg.mxu0
    %453 = vmatpush.bf16.msra.mxu0 0
    %454 = vmatpush.bf16.msra.mxu0 0
    %455 = vmatpush.bf16.msra.mxu0 0
    %456 = vmatpush.bf16.msra.mxu0 0
    %457 = vmatpush.bf16.msra.mxu0 %v428
    %458 = vmatpush.bf16.msra.mxu0 %v426
    %459 = vmatpush.bf16.msra.mxu0 %v424
    %460 = vmatpush.bf16.msra.mxu0 %v422
    %461 = vmatmul.bf16.gmra.mxu0 %v438
    %v462 = vpop.f32.mrf.mxu0
    %v463 = vadd.f32 0.0, %v462
    %v464 = vpop.f32.mrf.mxu0
    %465 = vdwg.mxu0
    %v474 = vunpack.c.l.b16 %v382
    %v475 = vunpack.c.h.b16 %v382
    %v476 = vunpack.c.l.b16 %v383
    %v477 = vunpack.c.h.b16 %v383
    %v478 = vunpack.c.l.b16 %v384
    %v479 = vunpack.c.h.b16 %v384
    %v480 = vunpack.c.l.b16 %v385
    %v481 = vunpack.c.h.b16 %v385
    %v482 = vunpack.c.l.b16 %v386
    %v483 = vunpack.c.h.b16 %v386
    %v484 = vunpack.c.l.b16 %v387
    %v485 = vunpack.c.h.b16 %v387
    %v486 = vunpack.c.l.b16 %v388
    %v487 = vunpack.c.h.b16 %v388
    %v488 = vunpack.c.l.b16 %v389
    %v489 = vunpack.c.h.b16 %v389
    %v490 = vpack.c.b16 %v476, %v474
    %v491 = vpack.c.b16 %v477, %v475
    %v492 = vpack.c.b16 %v480, %v478
    %v493 = vpack.c.b16 %v481, %v479
    %v494 = vpack.c.b16 %v484, %v482
    %v495 = vpack.c.b16 %v485, %v483
    %v496 = vpack.c.b16 %v488, %v486
    %v497 = vpack.c.b16 %v489, %v487
    %506 = vmatpush.bf16.msra.mxu0 0
    %507 = vmatpush.bf16.msra.mxu0 0
    %508 = vmatpush.bf16.msra.mxu0 0
    %509 = vmatpush.bf16.msra.mxu0 0
    %510 = vmatpush.bf16.msra.mxu0 %v496
    %511 = vmatpush.bf16.msra.mxu0 %v494
    %512 = vmatpush.bf16.msra.mxu0 %v492
    %513 = vmatpush.bf16.msra.mxu0 %v490
    %514 = vmatmul.bf16.gmra.mxu0 %v438
    %v515 = vpop.f32.mrf.mxu0
    %v516 = vadd.f32 0.0, %v515
    %v517 = vpop.f32.mrf.mxu0
    %518 = vdwg.mxu0
    %519 = vmatpush.bf16.msra.mxu0 0
    %520 = vmatpush.bf16.msra.mxu0 0
    %521 = vmatpush.bf16.msra.mxu0 0
    %522 = vmatpush.bf16.msra.mxu0 0
    %523 = vmatpush.bf16.msra.mxu0 %v497
    %524 = vmatpush.bf16.msra.mxu0 %v495
    %525 = vmatpush.bf16.msra.mxu0 %v493
    %526 = vmatpush.bf16.msra.mxu0 %v491
    %527 = vmatmul.bf16.gmra.mxu0 %v438
    %v528 = vpop.f32.mrf.mxu0
    %v529 = vadd.f32 0.0, %v528
    %v530 = vpop.f32.mrf.mxu0
    %531 = vdwg.mxu0
    %v532 = vadd.f32 %v392, %v450
    %v533 = vmul.f32 %v532, 0.5
    %v534 = vtanh.pop %v533
    %v535 = vmul.f32 %v534, 0.5
    %v536 = vadd.f32 %v535, 0.5
    %v538 = vperm.slane %v390, 0
    %v540 = vadd.f32 %v463, %v538
    %v541 = vmul.f32 %v536, %v540
    %v542 = vadd.f32 %v393, %v541
    %v543 = vtanh.pop %v542
    %v544 = vsub.f32 1.0, %v536
    %546 = vrot.lane.b32.xlu0 %v543, 64
    %v547 = vpop.permute.xlu0 %546
    %v549 = vmul.f32 %v544, %v547
    %v550 = vmul.f32 %v536, 0.0
    %v551 = vadd.f32 %v549, %v550
    %v552 = vadd.f32 %v395, %v516
    %v553 = vmul.f32 %v552, 0.5
    %v554 = vtanh.pop %v553
    %v555 = vmul.f32 %v554, 0.5
    %v556 = vadd.f32 %v555, 0.5
    %v558 = vperm.slane %v391, 0
    %v560 = vadd.f32 %v529, %v558
    %v561 = vmul.f32 %v556, %v560
    %v562 = vadd.f32 %v396, %v561
    %v563 = vtanh.pop %v562
    %v564 = vsub.f32 1.0, %v556
    %566 = vrot.lane.b32.xlu0 %v563, 64
    %v567 = vpop.permute.xlu0 %566
    %v569 = vmul.f32 %v564, %v567
    %v570 = vmul.f32 %v556, 0.0
    %v571 = vadd.f32 %v569, %v570
    %573 = vrot.lane.b32.xlu0 %v551, 64
    %v574 = vpop.permute.xlu0 %573
    %576 = vst.msk [vmem:[#allocation4] sm:$0xff] %vm254, %v574
    %s577 = scalar_lea.vmem [#allocation4], 56
    %vm578 = vcmask 1048064
    %579 = vst.msk [vmem:[%s577] sm:$0xff] %vm578, %v571
    %s580 = scalar_lea.vmem [#allocation2], 16
    %v581 = vld [vmem:[%s580] sm:$0xff]
    %v582 = vld [vmem:[%s580 + $0x8] sm:$0xff]
    %s583 = scalar_lea.vmem [#allocation3], 96
    %v584 = vld [vmem:[%s583] sm:$0xff]
    %v585 = vld [vmem:[%s583 + $0x8] sm:$0xff]
    %v586 = vpack.c.bf16 %v551, %v551
    %588 = vrot.lane.b32.xlu0 %v586, 64
    %v589 = vpop.permute.xlu0 %588
    %v591 = vsel %vm254, %v589, 0
    %593 = vmatpush.bf16.msra.mxu0 0
    %594 = vmatpush.bf16.msra.mxu0 0
    %595 = vmatpush.bf16.msra.mxu0 0
    %596 = vmatpush.bf16.msra.mxu0 0
    %597 = vmatpush.bf16.msra.mxu0 %v427
    %598 = vmatpush.bf16.msra.mxu0 %v425
    %599 = vmatpush.bf16.msra.mxu0 %v423
    %600 = vmatpush.bf16.msra.mxu0 %v421
    %601 = vmatmul.bf16.gmra.mxu0 %v591
    %v602 = vpop.f32.mrf.mxu0
    %v603 = vadd.f32 0.0, %v602
    %v604 = vpop.f32.mrf.mxu0
    %605 = vdwg.mxu0
    %606 = vmatpush.bf16.msra.mxu0 0
    %607 = vmatpush.bf16.msra.mxu0 0
    %608 = vmatpush.bf16.msra.mxu0 0
    %609 = vmatpush.bf16.msra.mxu0 0
    %610 = vmatpush.bf16.msra.mxu0 %v428
    %611 = vmatpush.bf16.msra.mxu0 %v426
    %612 = vmatpush.bf16.msra.mxu0 %v424
    %613 = vmatpush.bf16.msra.mxu0 %v422
    %614 = vmatmul.bf16.gmra.mxu0 %v591
    %v615 = vpop.f32.mrf.mxu0
    %v616 = vadd.f32 0.0, %v615
    %v617 = vpop.f32.mrf.mxu0
    %618 = vdwg.mxu0
    %v619 = vpack.c.bf16 %v571, %v571
    %621 = vrot.lane.b32.xlu0 %v619, 64
    %v622 = vpop.permute.xlu0 %621
    %v624 = vsel %vm254, %v622, 0
    %626 = vmatpush.bf16.msra.mxu0 0
    %627 = vmatpush.bf16.msra.mxu0 0
    %628 = vmatpush.bf16.msra.mxu0 0
    %629 = vmatpush.bf16.msra.mxu0 0
    %630 = vmatpush.bf16.msra.mxu0 %v496
    %631 = vmatpush.bf16.msra.mxu0 %v494
    %632 = vmatpush.bf16.msra.mxu0 %v492
    %633 = vmatpush.bf16.msra.mxu0 %v490
    %634 = vmatmul.bf16.gmra.mxu0 %v624
    %v635 = vpop.f32.mrf.mxu0
    %v636 = vadd.f32 0.0, %v635
    %v637 = vpop.f32.mrf.mxu0
    %638 = vdwg.mxu0
    %639 = vmatpush.bf16.msra.mxu0 0
    %640 = vmatpush.bf16.msra.mxu0 0
    %641 = vmatpush.bf16.msra.mxu0 0
    %642 = vmatpush.bf16.msra.mxu0 0
    %643 = vmatpush.bf16.msra.mxu0 %v497
    %644 = vmatpush.bf16.msra.mxu0 %v495
    %645 = vmatpush.bf16.msra.mxu0 %v493
    %646 = vmatpush.bf16.msra.mxu0 %v491
    %647 = vmatmul.bf16.gmra.mxu0 %v624
    %v648 = vpop.f32.mrf.mxu0
    %v649 = vadd.f32 0.0, %v648
    %v650 = vpop.f32.mrf.mxu0
    %651 = vdwg.mxu0
    %v652 = vadd.f32 %v581, %v603
    %v653 = vmul.f32 %v652, 0.5
    %v654 = vtanh.pop %v653
    %v655 = vmul.f32 %v654, 0.5
    %v656 = vadd.f32 %v655, 0.5
    %v657 = vadd.f32 %v616, %v538
    %v658 = vmul.f32 %v656, %v657
    %v659 = vadd.f32 %v582, %v658
    %v660 = vtanh.pop %v659
    %v661 = vsub.f32 1.0, %v656
    %663 = vrot.lane.b32.xlu0 %v660, 64
    %v664 = vpop.permute.xlu0 %663
    %v666 = vmul.f32 %v661, %v664
    %v667 = vmul.f32 %v656, %v551
    %v668 = vadd.f32 %v666, %v667
    %v669 = vadd.f32 %v584, %v636
    %v670 = vmul.f32 %v669, 0.5
    %v671 = vtanh.pop %v670
    %v672 = vmul.f32 %v671, 0.5
    %v673 = vadd.f32 %v672, 0.5
    %v674 = vadd.f32 %v649, %v558
    %v675 = vmul.f32 %v673, %v674
    %v676 = vadd.f32 %v585, %v675
    %v677 = vtanh.pop %v676
    %v678 = vsub.f32 1.0, %v673
    %680 = vrot.lane.b32.xlu0 %v677, 64
    %v681 = vpop.permute.xlu0 %680
    %v683 = vmul.f32 %v678, %v681
    %v684 = vmul.f32 %v673, %v571
    %v685 = vadd.f32 %v683, %v684
    %687 = vrot.lane.b32.xlu0 %v668, 64
    %v688 = vpop.permute.xlu0 %687
    %s690 = scalar_lea.vmem [#allocation4], 8
    %691 = vst.msk [vmem:[%s690] sm:$0xff] %vm254, %v688
    %s692 = scalar_lea.vmem [#allocation4], 48
    %693 = vst.msk [vmem:[%s692] sm:$0xff] %vm578, %v685
    %s694 = scalar_lea.vmem [#allocation2], 32
    %v695 = vld [vmem:[%s694] sm:$0xff]
    %v696 = vld [vmem:[%s694 + $0x8] sm:$0xff]
    %s697 = scalar_lea.vmem [#allocation3], 80
    %v698 = vld [vmem:[%s697] sm:$0xff]
    %v699 = vld [vmem:[%s697 + $0x8] sm:$0xff]
    %v700 = vpack.c.bf16 %v668, %v668
    %702 = vrot.lane.b32.xlu0 %v700, 64
    %v703 = vpop.permute.xlu0 %702
    %v705 = vsel %vm254, %v703, 0
    %707 = vmatpush.bf16.msra.mxu0 0
    %708 = vmatpush.bf16.msra.mxu0 0
    %709 = vmatpush.bf16.msra.mxu0 0
    %710 = vmatpush.bf16.msra.mxu0 0
    %711 = vmatpush.bf16.msra.mxu0 %v427
    %712 = vmatpush.bf16.msra.mxu0 %v425
    %713 = vmatpush.bf16.msra.mxu0 %v423
    %714 = vmatpush.bf16.msra.mxu0 %v421
    %715 = vmatmul.bf16.gmra.mxu0 %v705
    %v716 = vpop.f32.mrf.mxu0
    %v717 = vadd.f32 0.0, %v716
    %v718 = vpop.f32.mrf.mxu0
    %719 = vdwg.mxu0
    %720 = vmatpush.bf16.msra.mxu0 0
    %721 = vmatpush.bf16.msra.mxu0 0
    %722 = vmatpush.bf16.msra.mxu0 0
    %723 = vmatpush.bf16.msra.mxu0 0
    %724 = vmatpush.bf16.msra.mxu0 %v428
    %725 = vmatpush.bf16.msra.mxu0 %v426
    %726 = vmatpush.bf16.msra.mxu0 %v424
    %727 = vmatpush.bf16.msra.mxu0 %v422
    %728 = vmatmul.bf16.gmra.mxu0 %v705
    %v729 = vpop.f32.mrf.mxu0
    %v730 = vadd.f32 0.0, %v729
    %v731 = vpop.f32.mrf.mxu0
    %732 = vdwg.mxu0
    %v733 = vpack.c.bf16 %v685, %v685
    %735 = vrot.lane.b32.xlu0 %v733, 64
    %v736 = vpop.permute.xlu0 %735
    %v738 = vsel %vm254, %v736, 0
    %740 = vmatpush.bf16.msra.mxu0 0
    %741 = vmatpush.bf16.msra.mxu0 0
    %742 = vmatpush.bf16.msra.mxu0 0
    %743 = vmatpush.bf16.msra.mxu0 0
    %744 = vmatpush.bf16.msra.mxu0 %v496
    %745 = vmatpush.bf16.msra.mxu0 %v494
    %746 = vmatpush.bf16.msra.mxu0 %v492
    %747 = vmatpush.bf16.msra.mxu0 %v490
    %748 = vmatmul.bf16.gmra.mxu0 %v738
    %v749 = vpop.f32.mrf.mxu0
    %v750 = vadd.f32 0.0, %v749
    %v751 = vpop.f32.mrf.mxu0
    %752 = vdwg.mxu0
    %753 = vmatpush.bf16.msra.mxu0 0
    %754 = vmatpush.bf16.msra.mxu0 0
    %755 = vmatpush.bf16.msra.mxu0 0
    %756 = vmatpush.bf16.msra.mxu0 0
    %757 = vmatpush.bf16.msra.mxu0 %v497
    %758 = vmatpush.bf16.msra.mxu0 %v495
    %759 = vmatpush.bf16.msra.mxu0 %v493
    %760 = vmatpush.bf16.msra.mxu0 %v491
    %761 = vmatmul.bf16.gmra.mxu0 %v738
    %v762 = vpop.f32.mrf.mxu0
    %v763 = vadd.f32 0.0, %v762
    %v764 = vpop.f32.mrf.mxu0
    %765 = vdwg.mxu0
    %v766 = vadd.f32 %v695, %v717
    %v767 = vmul.f32 %v766, 0.5
    %v768 = vtanh.pop %v767
    %v769 = vmul.f32 %v768, 0.5
    %v770 = vadd.f32 %v769, 0.5
    %v771 = vadd.f32 %v730, %v538
    %v772 = vmul.f32 %v770, %v771
    %v773 = vadd.f32 %v696, %v772
    %v774 = vtanh.pop %v773
    %v775 = vsub.f32 1.0, %v770
    %777 = vrot.lane.b32.xlu0 %v774, 64
    %v778 = vpop.permute.xlu0 %777
    %v780 = vmul.f32 %v775, %v778
    %v781 = vmul.f32 %v770, %v668
    %v782 = vadd.f32 %v780, %v781
    %v783 = vadd.f32 %v698, %v750
    %v784 = vmul.f32 %v783, 0.5
    %v785 = vtanh.pop %v784
    %v786 = vmul.f32 %v785, 0.5
    %v787 = vadd.f32 %v786, 0.5
    %v788 = vadd.f32 %v763, %v558
    %v789 = vmul.f32 %v787, %v788
    %v790 = vadd.f32 %v699, %v789
    %v791 = vtanh.pop %v790
    %v792 = vsub.f32 1.0, %v787
    %794 = vrot.lane.b32.xlu0 %v791, 64
    %v795 = vpop.permute.xlu0 %794
    %v797 = vmul.f32 %v792, %v795
    %v798 = vmul.f32 %v787, %v685
    %v799 = vadd.f32 %v797, %v798
    %801 = vrot.lane.b32.xlu0 %v782, 64
    %v802 = vpop.permute.xlu0 %801
    %s804 = scalar_lea.vmem [#allocation4], 16
    %805 = vst.msk [vmem:[%s804] sm:$0xff] %vm254, %v802
    %s806 = scalar_lea.vmem [#allocation4], 40
    %807 = vst.msk [vmem:[%s806] sm:$0xff] %vm578, %v799
    %s808 = scalar_lea.vmem [#allocation2], 48
    %v809 = vld [vmem:[%s808] sm:$0xff]
    %v810 = vld [vmem:[%s808 + $0x8] sm:$0xff]
    %s811 = scalar_lea.vmem [#allocation3], 64
    %v812 = vld [vmem:[%s811] sm:$0xff]
    %v813 = vld [vmem:[%s811 + $0x8] sm:$0xff]
    %v814 = vpack.c.bf16 %v782, %v782
    %816 = vrot.lane.b32.xlu0 %v814, 64
    %v817 = vpop.permute.xlu0 %816
    %v819 = vsel %vm254, %v817, 0
    %821 = vmatpush.bf16.msra.mxu0 0
    %822 = vmatpush.bf16.msra.mxu0 0
    %823 = vmatpush.bf16.msra.mxu0 0
    %824 = vmatpush.bf16.msra.mxu0 0
    %825 = vmatpush.bf16.msra.mxu0 %v427
    %826 = vmatpush.bf16.msra.mxu0 %v425
    %827 = vmatpush.bf16.msra.mxu0 %v423
    %828 = vmatpush.bf16.msra.mxu0 %v421
    %829 = vmatmul.bf16.gmra.mxu0 %v819
    %v830 = vpop.f32.mrf.mxu0
    %v831 = vadd.f32 0.0, %v830
    %v832 = vpop.f32.mrf.mxu0
    %833 = vdwg.mxu0
    %834 = vmatpush.bf16.msra.mxu0 0
    %835 = vmatpush.bf16.msra.mxu0 0
    %836 = vmatpush.bf16.msra.mxu0 0
    %837 = vmatpush.bf16.msra.mxu0 0
    %838 = vmatpush.bf16.msra.mxu0 %v428
    %839 = vmatpush.bf16.msra.mxu0 %v426
    %840 = vmatpush.bf16.msra.mxu0 %v424
    %841 = vmatpush.bf16.msra.mxu0 %v422
    %842 = vmatmul.bf16.gmra.mxu0 %v819
    %v843 = vpop.f32.mrf.mxu0
    %v844 = vadd.f32 0.0, %v843
    %v845 = vpop.f32.mrf.mxu0
    %846 = vdwg.mxu0
    %v847 = vpack.c.bf16 %v799, %v799
    %849 = vrot.lane.b32.xlu0 %v847, 64
    %v850 = vpop.permute.xlu0 %849
    %v852 = vsel %vm254, %v850, 0
    %854 = vmatpush.bf16.msra.mxu0 0
    %855 = vmatpush.bf16.msra.mxu0 0
    %856 = vmatpush.bf16.msra.mxu0 0
    %857 = vmatpush.bf16.msra.mxu0 0
    %858 = vmatpush.bf16.msra.mxu0 %v496
    %859 = vmatpush.bf16.msra.mxu0 %v494
    %860 = vmatpush.bf16.msra.mxu0 %v492
    %861 = vmatpush.bf16.msra.mxu0 %v490
    %862 = vmatmul.bf16.gmra.mxu0 %v852
    %v863 = vpop.f32.mrf.mxu0
    %v864 = vadd.f32 0.0, %v863
    %v865 = vpop.f32.mrf.mxu0
    %866 = vdwg.mxu0
    %867 = vmatpush.bf16.msra.mxu0 0
    %868 = vmatpush.bf16.msra.mxu0 0
    %869 = vmatpush.bf16.msra.mxu0 0
    %870 = vmatpush.bf16.msra.mxu0 0
    %871 = vmatpush.bf16.msra.mxu0 %v497
    %872 = vmatpush.bf16.msra.mxu0 %v495
    %873 = vmatpush.bf16.msra.mxu0 %v493
    %874 = vmatpush.bf16.msra.mxu0 %v491
    %875 = vmatmul.bf16.gmra.mxu0 %v852
    %v876 = vpop.f32.mrf.mxu0
    %v877 = vadd.f32 0.0, %v876
    %v878 = vpop.f32.mrf.mxu0
    %879 = vdwg.mxu0
    %v880 = vadd.f32 %v809, %v831
    %v881 = vmul.f32 %v880, 0.5
    %v882 = vtanh.pop %v881
    %v883 = vmul.f32 %v882, 0.5
    %v884 = vadd.f32 %v883, 0.5
    %v885 = vadd.f32 %v844, %v538
    %v886 = vmul.f32 %v884, %v885
    %v887 = vadd.f32 %v810, %v886
    %v888 = vtanh.pop %v887
    %v889 = vsub.f32 1.0, %v884
    %891 = vrot.lane.b32.xlu0 %v888, 64
    %v892 = vpop.permute.xlu0 %891
    %v894 = vmul.f32 %v889, %v892
    %v895 = vmul.f32 %v884, %v782
    %v896 = vadd.f32 %v894, %v895
    %v897 = vadd.f32 %v812, %v864
    %v898 = vmul.f32 %v897, 0.5
    %v899 = vtanh.pop %v898
    %v900 = vmul.f32 %v899, 0.5
    %v901 = vadd.f32 %v900, 0.5
    %v902 = vadd.f32 %v877, %v558
    %v903 = vmul.f32 %v901, %v902
    %v904 = vadd.f32 %v813, %v903
    %v905 = vtanh.pop %v904
    %v906 = vsub.f32 1.0, %v901
    %908 = vrot.lane.b32.xlu0 %v905, 64
    %v909 = vpop.permute.xlu0 %908
    %v911 = vmul.f32 %v906, %v909
    %v912 = vmul.f32 %v901, %v799
    %v913 = vadd.f32 %v911, %v912
    %915 = vrot.lane.b32.xlu0 %v896, 64
    %v916 = vpop.permute.xlu0 %915
    %s918 = scalar_lea.vmem [#allocation4], 24
    %919 = vst.msk [vmem:[%s918] sm:$0xff] %vm254, %v916
    %s920 = scalar_lea.vmem [#allocation4], 32
    %921 = vst.msk [vmem:[%s920] sm:$0xff] %vm578, %v913
    %s922 = scalar_lea.vmem [#allocation2], 64
    %v923 = vld [vmem:[%s922] sm:$0xff]
    %v924 = vld [vmem:[%s922 + $0x8] sm:$0xff]
    %s925 = scalar_lea.vmem [#allocation3], 48
    %v926 = vld [vmem:[%s925] sm:$0xff]
    %v927 = vld [vmem:[%s925 + $0x8] sm:$0xff]
    %v928 = vpack.c.bf16 %v896, %v896
    %930 = vrot.lane.b32.xlu0 %v928, 64
    %v931 = vpop.permute.xlu0 %930
    %v933 = vsel %vm254, %v931, 0
    %935 = vmatpush.bf16.msra.mxu0 0
    %936 = vmatpush.bf16.msra.mxu0 0
    %937 = vmatpush.bf16.msra.mxu0 0
    %938 = vmatpush.bf16.msra.mxu0 0
    %939 = vmatpush.bf16.msra.mxu0 %v427
    %940 = vmatpush.bf16.msra.mxu0 %v425
    %941 = vmatpush.bf16.msra.mxu0 %v423
    %942 = vmatpush.bf16.msra.mxu0 %v421
    %943 = vmatmul.bf16.gmra.mxu0 %v933
    %v944 = vpop.f32.mrf.mxu0
    %v945 = vadd.f32 0.0, %v944
    %v946 = vpop.f32.mrf.mxu0
    %947 = vdwg.mxu0
    %948 = vmatpush.bf16.msra.mxu0 0
    %949 = vmatpush.bf16.msra.mxu0 0
    %950 = vmatpush.bf16.msra.mxu0 0
    %951 = vmatpush.bf16.msra.mxu0 0
    %952 = vmatpush.bf16.msra.mxu0 %v428
    %953 = vmatpush.bf16.msra.mxu0 %v426
    %954 = vmatpush.bf16.msra.mxu0 %v424
    %955 = vmatpush.bf16.msra.mxu0 %v422
    %956 = vmatmul.bf16.gmra.mxu0 %v933
    %v957 = vpop.f32.mrf.mxu0
    %v958 = vadd.f32 0.0, %v957
    %v959 = vpop.f32.mrf.mxu0
    %960 = vdwg.mxu0
    %v961 = vpack.c.bf16 %v913, %v913
    %963 = vrot.lane.b32.xlu0 %v961, 64
    %v964 = vpop.permute.xlu0 %963
    %v966 = vsel %vm254, %v964, 0
    %968 = vmatpush.bf16.msra.mxu0 0
    %969 = vmatpush.bf16.msra.mxu0 0
    %970 = vmatpush.bf16.msra.mxu0 0
    %971 = vmatpush.bf16.msra.mxu0 0
    %972 = vmatpush.bf16.msra.mxu0 %v496
    %973 = vmatpush.bf16.msra.mxu0 %v494
    %974 = vmatpush.bf16.msra.mxu0 %v492
    %975 = vmatpush.bf16.msra.mxu0 %v490
    %976 = vmatmul.bf16.gmra.mxu0 %v966
    %v977 = vpop.f32.mrf.mxu0
    %v978 = vadd.f32 0.0, %v977
    %v979 = vpop.f32.mrf.mxu0
    %980 = vdwg.mxu0
    %981 = vmatpush.bf16.msra.mxu0 0
    %982 = vmatpush.bf16.msra.mxu0 0
    %983 = vmatpush.bf16.msra.mxu0 0
    %984 = vmatpush.bf16.msra.mxu0 0
    %985 = vmatpush.bf16.msra.mxu0 %v497
    %986 = vmatpush.bf16.msra.mxu0 %v495
    %987 = vmatpush.bf16.msra.mxu0 %v493
    %988 = vmatpush.bf16.msra.mxu0 %v491
    %989 = vmatmul.bf16.gmra.mxu0 %v966
    %v990 = vpop.f32.mrf.mxu0
    %v991 = vadd.f32 0.0, %v990
    %v992 = vpop.f32.mrf.mxu0
    %993 = vdwg.mxu0
    %v994 = vadd.f32 %v923, %v945
    %v995 = vmul.f32 %v994, 0.5
    %v996 = vtanh.pop %v995
    %v997 = vmul.f32 %v996, 0.5
    %v998 = vadd.f32 %v997, 0.5
    %v999 = vadd.f32 %v958, %v538
    %v1000 = vmul.f32 %v998, %v999
    %v1001 = vadd.f32 %v924, %v1000
    %v1002 = vtanh.pop %v1001
    %v1003 = vsub.f32 1.0, %v998
    %1005 = vrot.lane.b32.xlu0 %v1002, 64
    %v1006 = vpop.permute.xlu0 %1005
    %v1008 = vmul.f32 %v1003, %v1006
    %v1009 = vmul.f32 %v998, %v896
    %v1010 = vadd.f32 %v1008, %v1009
    %v1011 = vadd.f32 %v926, %v978
    %v1012 = vmul.f32 %v1011, 0.5
    %v1013 = vtanh.pop %v1012
    %v1014 = vmul.f32 %v1013, 0.5
    %v1015 = vadd.f32 %v1014, 0.5
    %v1016 = vadd.f32 %v991, %v558
    %v1017 = vmul.f32 %v1015, %v1016
    %v1018 = vadd.f32 %v927, %v1017
    %v1019 = vtanh.pop %v1018
    %v1020 = vsub.f32 1.0, %v1015
    %1022 = vrot.lane.b32.xlu0 %v1019, 64
    %v1023 = vpop.permute.xlu0 %1022
    %v1025 = vmul.f32 %v1020, %v1023
    %v1026 = vmul.f32 %v1015, %v913
    %v1027 = vadd.f32 %v1025, %v1026
    %1029 = vrot.lane.b32.xlu0 %v1010, 64
    %v1030 = vpop.permute.xlu0 %1029
    %1032 = vst.msk [vmem:[%s920] sm:$0xff] %vm254, %v1030
    %1033 = vst.msk [vmem:[%s918] sm:$0xff] %vm578, %v1027
    %s1034 = scalar_lea.vmem [#allocation2], 80
    %v1035 = vld [vmem:[%s1034] sm:$0xff]
    %v1036 = vld [vmem:[%s1034 + $0x8] sm:$0xff]
    %s1037 = scalar_lea.vmem [#allocation3], 32
    %v1038 = vld [vmem:[%s1037] sm:$0xff]
    %v1039 = vld [vmem:[%s1037 + $0x8] sm:$0xff]
    %v1040 = vpack.c.bf16 %v1010, %v1010
    %1042 = vrot.lane.b32.xlu0 %v1040, 64
    %v1043 = vpop.permute.xlu0 %1042
    %v1045 = vsel %vm254, %v1043, 0
    %1047 = vmatpush.bf16.msra.mxu0 0
    %1048 = vmatpush.bf16.msra.mxu0 0
    %1049 = vmatpush.bf16.msra.mxu0 0
    %1050 = vmatpush.bf16.msra.mxu0 0
    %1051 = vmatpush.bf16.msra.mxu0 %v427
    %1052 = vmatpush.bf16.msra.mxu0 %v425
    %1053 = vmatpush.bf16.msra.mxu0 %v423
    %1054 = vmatpush.bf16.msra.mxu0 %v421
    %1055 = vmatmul.bf16.gmra.mxu0 %v1045
    %v1056 = vpop.f32.mrf.mxu0
    %v1057 = vadd.f32 0.0, %v1056
    %v1058 = vpop.f32.mrf.mxu0
    %1059 = vdwg.mxu0
    %1060 = vmatpush.bf16.msra.mxu0 0
    %1061 = vmatpush.bf16.msra.mxu0 0
    %1062 = vmatpush.bf16.msra.mxu0 0
    %1063 = vmatpush.bf16.msra.mxu0 0
    %1064 = vmatpush.bf16.msra.mxu0 %v428
    %1065 = vmatpush.bf16.msra.mxu0 %v426
    %1066 = vmatpush.bf16.msra.mxu0 %v424
    %1067 = vmatpush.bf16.msra.mxu0 %v422
    %1068 = vmatmul.bf16.gmra.mxu0 %v1045
    %v1069 = vpop.f32.mrf.mxu0
    %v1070 = vadd.f32 0.0, %v1069
    %v1071 = vpop.f32.mrf.mxu0
    %1072 = vdwg.mxu0
    %v1073 = vpack.c.bf16 %v1027, %v1027
    %1075 = vrot.lane.b32.xlu0 %v1073, 64
    %v1076 = vpop.permute.xlu0 %1075
    %v1078 = vsel %vm254, %v1076, 0
    %1080 = vmatpush.bf16.msra.mxu0 0
    %1081 = vmatpush.bf16.msra.mxu0 0
    %1082 = vmatpush.bf16.msra.mxu0 0
    %1083 = vmatpush.bf16.msra.mxu0 0
    %1084 = vmatpush.bf16.msra.mxu0 %v496
    %1085 = vmatpush.bf16.msra.mxu0 %v494
    %1086 = vmatpush.bf16.msra.mxu0 %v492
    %1087 = vmatpush.bf16.msra.mxu0 %v490
    %1088 = vmatmul.bf16.gmra.mxu0 %v1078
    %v1089 = vpop.f32.mrf.mxu0
    %v1090 = vadd.f32 0.0, %v1089
    %v1091 = vpop.f32.mrf.mxu0
    %1092 = vdwg.mxu0
    %1093 = vmatpush.bf16.msra.mxu0 0
    %1094 = vmatpush.bf16.msra.mxu0 0
    %1095 = vmatpush.bf16.msra.mxu0 0
    %1096 = vmatpush.bf16.msra.mxu0 0
    %1097 = vmatpush.bf16.msra.mxu0 %v497
    %1098 = vmatpush.bf16.msra.mxu0 %v495
    %1099 = vmatpush.bf16.msra.mxu0 %v493
    %1100 = vmatpush.bf16.msra.mxu0 %v491
    %1101 = vmatmul.bf16.gmra.mxu0 %v1078
    %v1102 = vpop.f32.mrf.mxu0
    %v1103 = vadd.f32 0.0, %v1102
    %v1104 = vpop.f32.mrf.mxu0
    %1105 = vdwg.mxu0
    %v1106 = vadd.f32 %v1035, %v1057
    %v1107 = vmul.f32 %v1106, 0.5
    %v1108 = vtanh.pop %v1107
    %v1109 = vmul.f32 %v1108, 0.5
    %v1110 = vadd.f32 %v1109, 0.5
    %v1111 = vadd.f32 %v1070, %v538
    %v1112 = vmul.f32 %v1110, %v1111
    %v1113 = vadd.f32 %v1036, %v1112
    %v1114 = vtanh.pop %v1113
    %v1115 = vsub.f32 1.0, %v1110
    %1117 = vrot.lane.b32.xlu0 %v1114, 64
    %v1118 = vpop.permute.xlu0 %1117
    %v1120 = vmul.f32 %v1115, %v1118
    %v1121 = vmul.f32 %v1110, %v1010
    %v1122 = vadd.f32 %v1120, %v1121
    %v1123 = vadd.f32 %v1038, %v1090
    %v1124 = vmul.f32 %v1123, 0.5
    %v1125 = vtanh.pop %v1124
    %v1126 = vmul.f32 %v1125, 0.5
    %v1127 = vadd.f32 %v1126, 0.5
    %v1128 = vadd.f32 %v1103, %v558
    %v1129 = vmul.f32 %v1127, %v1128
    %v1130 = vadd.f32 %v1039, %v1129
    %v1131 = vtanh.pop %v1130
    %v1132 = vsub.f32 1.0, %v1127
    %1134 = vrot.lane.b32.xlu0 %v1131, 64
    %v1135 = vpop.permute.xlu0 %1134
    %v1137 = vmul.f32 %v1132, %v1135
    %v1138 = vmul.f32 %v1127, %v1027
    %v1139 = vadd.f32 %v1137, %v1138
    %1141 = vrot.lane.b32.xlu0 %v1122, 64
    %v1142 = vpop.permute.xlu0 %1141
    %1144 = vst.msk [vmem:[%s806] sm:$0xff] %vm254, %v1142
    %1145 = vst.msk [vmem:[%s804] sm:$0xff] %vm578, %v1139
    %s1146 = scalar_lea.vmem [#allocation2], 96
    %v1147 = vld [vmem:[%s1146] sm:$0xff]
    %v1148 = vld [vmem:[%s1146 + $0x8] sm:$0xff]
    %s1149 = scalar_lea.vmem [#allocation3], 16
    %v1150 = vld [vmem:[%s1149] sm:$0xff]
    %v1151 = vld [vmem:[%s1149 + $0x8] sm:$0xff]
    %v1152 = vpack.c.bf16 %v1122, %v1122
    %1154 = vrot.lane.b32.xlu0 %v1152, 64
    %v1155 = vpop.permute.xlu0 %1154
    %v1157 = vsel %vm254, %v1155, 0
    %1159 = vmatpush.bf16.msra.mxu0 0
    %1160 = vmatpush.bf16.msra.mxu0 0
    %1161 = vmatpush.bf16.msra.mxu0 0
    %1162 = vmatpush.bf16.msra.mxu0 0
    %1163 = vmatpush.bf16.msra.mxu0 %v427
    %1164 = vmatpush.bf16.msra.mxu0 %v425
    %1165 = vmatpush.bf16.msra.mxu0 %v423
    %1166 = vmatpush.bf16.msra.mxu0 %v421
    %1167 = vmatmul.bf16.gmra.mxu0 %v1157
    %v1168 = vpop.f32.mrf.mxu0
    %v1169 = vadd.f32 0.0, %v1168
    %v1170 = vpop.f32.mrf.mxu0
    %1171 = vdwg.mxu0
    %1172 = vmatpush.bf16.msra.mxu0 0
    %1173 = vmatpush.bf16.msra.mxu0 0
    %1174 = vmatpush.bf16.msra.mxu0 0
    %1175 = vmatpush.bf16.msra.mxu0 0
    %1176 = vmatpush.bf16.msra.mxu0 %v428
    %1177 = vmatpush.bf16.msra.mxu0 %v426
    %1178 = vmatpush.bf16.msra.mxu0 %v424
    %1179 = vmatpush.bf16.msra.mxu0 %v422
    %1180 = vmatmul.bf16.gmra.mxu0 %v1157
    %v1181 = vpop.f32.mrf.mxu0
    %v1182 = vadd.f32 0.0, %v1181
    %v1183 = vpop.f32.mrf.mxu0
    %1184 = vdwg.mxu0
    %v1185 = vpack.c.bf16 %v1139, %v1139
    %1187 = vrot.lane.b32.xlu0 %v1185, 64
    %v1188 = vpop.permute.xlu0 %1187
    %v1190 = vsel %vm254, %v1188, 0
    %1192 = vmatpush.bf16.msra.mxu0 0
    %1193 = vmatpush.bf16.msra.mxu0 0
    %1194 = vmatpush.bf16.msra.mxu0 0
    %1195 = vmatpush.bf16.msra.mxu0 0
    %1196 = vmatpush.bf16.msra.mxu0 %v496
    %1197 = vmatpush.bf16.msra.mxu0 %v494
    %1198 = vmatpush.bf16.msra.mxu0 %v492
    %1199 = vmatpush.bf16.msra.mxu0 %v490
    %1200 = vmatmul.bf16.gmra.mxu0 %v1190
    %v1201 = vpop.f32.mrf.mxu0
    %v1202 = vadd.f32 0.0, %v1201
    %v1203 = vpop.f32.mrf.mxu0
    %1204 = vdwg.mxu0
    %1205 = vmatpush.bf16.msra.mxu0 0
    %1206 = vmatpush.bf16.msra.mxu0 0
    %1207 = vmatpush.bf16.msra.mxu0 0
    %1208 = vmatpush.bf16.msra.mxu0 0
    %1209 = vmatpush.bf16.msra.mxu0 %v497
    %1210 = vmatpush.bf16.msra.mxu0 %v495
    %1211 = vmatpush.bf16.msra.mxu0 %v493
    %1212 = vmatpush.bf16.msra.mxu0 %v491
    %1213 = vmatmul.bf16.gmra.mxu0 %v1190
    %v1214 = vpop.f32.mrf.mxu0
    %v1215 = vadd.f32 0.0, %v1214
    %v1216 = vpop.f32.mrf.mxu0
    %1217 = vdwg.mxu0
    %v1218 = vadd.f32 %v1147, %v1169
    %v1219 = vmul.f32 %v1218, 0.5
    %v1220 = vtanh.pop %v1219
    %v1221 = vmul.f32 %v1220, 0.5
    %v1222 = vadd.f32 %v1221, 0.5
    %v1223 = vadd.f32 %v1182, %v538
    %v1224 = vmul.f32 %v1222, %v1223
    %v1225 = vadd.f32 %v1148, %v1224
    %v1226 = vtanh.pop %v1225
    %v1227 = vsub.f32 1.0, %v1222
    %1229 = vrot.lane.b32.xlu0 %v1226, 64
    %v1230 = vpop.permute.xlu0 %1229
    %v1232 = vmul.f32 %v1227, %v1230
    %v1233 = vmul.f32 %v1222, %v1122
    %v1234 = vadd.f32 %v1232, %v1233
    %v1235 = vadd.f32 %v1150, %v1202
    %v1236 = vmul.f32 %v1235, 0.5
    %v1237 = vtanh.pop %v1236
    %v1238 = vmul.f32 %v1237, 0.5
    %v1239 = vadd.f32 %v1238, 0.5
    %v1240 = vadd.f32 %v1215, %v558
    %v1241 = vmul.f32 %v1239, %v1240
    %v1242 = vadd.f32 %v1151, %v1241
    %v1243 = vtanh.pop %v1242
    %v1244 = vsub.f32 1.0, %v1239
    %1246 = vrot.lane.b32.xlu0 %v1243, 64
    %v1247 = vpop.permute.xlu0 %1246
    %v1249 = vmul.f32 %v1244, %v1247
    %v1250 = vmul.f32 %v1239, %v1139
    %v1251 = vadd.f32 %v1249, %v1250
    %1253 = vrot.lane.b32.xlu0 %v1234, 64
    %v1254 = vpop.permute.xlu0 %1253
    %1256 = vst.msk [vmem:[%s692] sm:$0xff] %vm254, %v1254
    %1257 = vst.msk [vmem:[%s690] sm:$0xff] %vm578, %v1251
    %s1258 = scalar_lea.vmem [#allocation2], 112
    %v1259 = vld [vmem:[%s1258] sm:$0xff]
    %v1260 = vld [vmem:[%s1258 + $0x8] sm:$0xff]
    %v1261 = vld [vmem:[#allocation3] sm:$0xff]
    %v1262 = vld [vmem:[#allocation3 + $0x8] sm:$0xff]
    %v1263 = vpack.c.bf16 %v1234, %v1234
    %1265 = vrot.lane.b32.xlu0 %v1263, 64
    %v1266 = vpop.permute.xlu0 %1265
    %v1268 = vsel %vm254, %v1266, 0
    %1270 = vmatpush.bf16.msra.mxu0 0
    %1271 = vmatpush.bf16.msra.mxu0 0
    %1272 = vmatpush.bf16.msra.mxu0 0
    %1273 = vmatpush.bf16.msra.mxu0 0
    %1274 = vmatpush.bf16.msra.mxu0 %v427
    %1275 = vmatpush.bf16.msra.mxu0 %v425
    %1276 = vmatpush.bf16.msra.mxu0 %v423
    %1277 = vmatpush.bf16.msra.mxu0 %v421
    %1278 = vmatmul.bf16.gmra.mxu0 %v1268
    %v1279 = vpop.f32.mrf.mxu0
    %v1280 = vadd.f32 0.0, %v1279
    %v1281 = vpop.f32.mrf.mxu0
    %1282 = vdwg.mxu0
    %1283 = vmatpush.bf16.msra.mxu0 0
    %1284 = vmatpush.bf16.msra.mxu0 0
    %1285 = vmatpush.bf16.msra.mxu0 0
    %1286 = vmatpush.bf16.msra.mxu0 0
    %1287 = vmatpush.bf16.msra.mxu0 %v428
    %1288 = vmatpush.bf16.msra.mxu0 %v426
    %1289 = vmatpush.bf16.msra.mxu0 %v424
    %1290 = vmatpush.bf16.msra.mxu0 %v422
    %1291 = vmatmul.bf16.gmra.mxu0 %v1268
    %v1292 = vpop.f32.mrf.mxu0
    %v1293 = vadd.f32 0.0, %v1292
    %v1294 = vpop.f32.mrf.mxu0
    %1295 = vdwg.mxu0
    %v1296 = vpack.c.bf16 %v1251, %v1251
    %1298 = vrot.lane.b32.xlu0 %v1296, 64
    %v1299 = vpop.permute.xlu0 %1298
    %v1301 = vsel %vm254, %v1299, 0
    %1303 = vmatpush.bf16.msra.mxu0 0
    %1304 = vmatpush.bf16.msra.mxu0 0
    %1305 = vmatpush.bf16.msra.mxu0 0
    %1306 = vmatpush.bf16.msra.mxu0 0
    %1307 = vmatpush.bf16.msra.mxu0 %v496
    %1308 = vmatpush.bf16.msra.mxu0 %v494
    %1309 = vmatpush.bf16.msra.mxu0 %v492
    %1310 = vmatpush.bf16.msra.mxu0 %v490
    %1311 = vmatmul.bf16.gmra.mxu0 %v1301
    %v1312 = vpop.f32.mrf.mxu0
    %v1313 = vadd.f32 0.0, %v1312
    %v1314 = vpop.f32.mrf.mxu0
    %1315 = vdwg.mxu0
    %1316 = vmatpush.bf16.msra.mxu0 0
    %1317 = vmatpush.bf16.msra.mxu0 0
    %1318 = vmatpush.bf16.msra.mxu0 0
    %1319 = vmatpush.bf16.msra.mxu0 0
    %1320 = vmatpush.bf16.msra.mxu0 %v497
    %1321 = vmatpush.bf16.msra.mxu0 %v495
    %1322 = vmatpush.bf16.msra.mxu0 %v493
    %1323 = vmatpush.bf16.msra.mxu0 %v491
    %1324 = vmatmul.bf16.gmra.mxu0 %v1301
    %v1325 = vpop.f32.mrf.mxu0
    %v1326 = vadd.f32 0.0, %v1325
    %v1327 = vpop.f32.mrf.mxu0
    %1328 = vdwg.mxu0
    %v1329 = vadd.f32 %v1259, %v1280
    %v1330 = vmul.f32 %v1329, 0.5
    %v1331 = vtanh.pop %v1330
    %v1332 = vmul.f32 %v1331, 0.5
    %v1333 = vadd.f32 %v1332, 0.5
    %v1334 = vadd.f32 %v1293, %v538
    %v1335 = vmul.f32 %v1333, %v1334
    %v1336 = vadd.f32 %v1260, %v1335
    %v1337 = vtanh.pop %v1336
    %v1338 = vsub.f32 1.0, %v1333
    %1340 = vrot.lane.b32.xlu0 %v1337, 64
    %v1341 = vpop.permute.xlu0 %1340
    %v1343 = vmul.f32 %v1338, %v1341
    %v1344 = vmul.f32 %v1333, %v1234
    %v1345 = vadd.f32 %v1343, %v1344
    %v1346 = vadd.f32 %v1261, %v1313
    %v1347 = vmul.f32 %v1346, 0.5
    %v1348 = vtanh.pop %v1347
    %v1349 = vmul.f32 %v1348, 0.5
    %v1350 = vadd.f32 %v1349, 0.5
    %v1351 = vadd.f32 %v1326, %v558
    %v1352 = vmul.f32 %v1350, %v1351
    %v1353 = vadd.f32 %v1262, %v1352
    %v1354 = vtanh.pop %v1353
    %v1355 = vsub.f32 1.0, %v1350
    %1357 = vrot.lane.b32.xlu0 %v1354, 64
    %v1358 = vpop.permute.xlu0 %1357
    %v1360 = vmul.f32 %v1355, %v1358
    %v1361 = vmul.f32 %v1350, %v1251
    %v1362 = vadd.f32 %v1360, %v1361
    %1364 = vrot.lane.b32.xlu0 %v1345, 64
    %v1365 = vpop.permute.xlu0 %1364
    %1367 = vst.msk [vmem:[%s577] sm:$0xff] %vm254, %v1365
    %1368 = vst.msk [vmem:[#allocation4] sm:$0xff] %vm578, %v1362
    %v1369 = vld [vmem:[#allocation4] sm:$0xff]
    %v1370 = vld [vmem:[#allocation4 + $0x8] sm:$0xff]
    %v1371 = vld [vmem:[#allocation4 + $0x10] sm:$0xff]
    %v1372 = vld [vmem:[#allocation4 + $0x18] sm:$0xff]
    %v1373 = vld [vmem:[#allocation4 + $0x20] sm:$0xff]
    %v1374 = vld [vmem:[#allocation4 + $0x28] sm:$0xff]
    %v1375 = vld [vmem:[#allocation4 + $0x30] sm:$0xff]
    %v1376 = vld [vmem:[#allocation4 + $0x38] sm:$0xff]
    %v1377 = vpack.c.bf16 %v1370, %v1369
    %v1378 = vpack.c.bf16 %v1372, %v1371
    %v1379 = vpack.c.bf16 %v1374, %v1373
    %v1380 = vpack.c.bf16 %v1376, %v1375
    %v1381 = vld [vmem:[#allocation14] sm:$0xf]
    %v1382 = vld [vmem:[#allocation14 + $0x4] sm:$0xf]
    %v1383 = vld [vmem:[#allocation14 + $0x8] sm:$0xf]
    %v1384 = vld [vmem:[#allocation14 + $0xc] sm:$0xf]
    %v1385 = vld [vmem:[#allocation14 + $0x10] sm:$0xf]
    %v1386 = vld [vmem:[#allocation14 + $0x14] sm:$0xf]
    %v1387 = vld [vmem:[#allocation14 + $0x18] sm:$0xf]
    %v1388 = vld [vmem:[#allocation14 + $0x1c] sm:$0xf]
    %v1389 = vld [vmem:[#allocation14 + $0x20] sm:$0xf]
    %v1390 = vld [vmem:[#allocation14 + $0x24] sm:$0xf]
    %v1391 = vld [vmem:[#allocation14 + $0x28] sm:$0xf]
    %v1392 = vld [vmem:[#allocation14 + $0x2c] sm:$0xf]
    %v1393 = vld [vmem:[#allocation14 + $0x30] sm:$0xf]
    %v1394 = vld [vmem:[#allocation14 + $0x34] sm:$0xf]
    %v1395 = vld [vmem:[#allocation14 + $0x38] sm:$0xf]
    %v1396 = vld [vmem:[#allocation14 + $0x3c] sm:$0xf]
    %v1397 = vld [vmem:[%s11] sm:$0x1]
    %v1399 = vperm.slane %v1397, 0
    %v1417 = vunpack.c.l.b16 %v1381
    %v1418 = vunpack.c.l.b16 %v1382
    %v1419 = vunpack.c.l.b16 %v1383
    %v1420 = vunpack.c.l.b16 %v1384
    %v1421 = vunpack.c.l.b16 %v1385
    %v1422 = vunpack.c.l.b16 %v1386
    %v1423 = vunpack.c.l.b16 %v1387
    %v1424 = vunpack.c.l.b16 %v1388
    %v1425 = vunpack.c.l.b16 %v1389
    %v1426 = vunpack.c.l.b16 %v1390
    %v1427 = vunpack.c.l.b16 %v1391
    %v1428 = vunpack.c.l.b16 %v1392
    %v1429 = vunpack.c.l.b16 %v1393
    %v1430 = vunpack.c.l.b16 %v1394
    %v1431 = vunpack.c.l.b16 %v1395
    %v1432 = vunpack.c.l.b16 %v1396
    %v1433 = vpack.c.b16 %v1418, %v1417
    %v1434 = vpack.c.b16 %v1420, %v1419
    %v1435 = vpack.c.b16 %v1422, %v1421
    %v1436 = vpack.c.b16 %v1424, %v1423
    %v1437 = vpack.c.b16 %v1426, %v1425
    %v1438 = vpack.c.b16 %v1428, %v1427
    %v1439 = vpack.c.b16 %v1430, %v1429
    %v1440 = vpack.c.b16 %v1432, %v1431
    %1449 = vmatpush.bf16.msra.mxu0 %v1440
    %1450 = vmatpush.bf16.msra.mxu0 %v1439
    %1451 = vmatpush.bf16.msra.mxu0 %v1438
    %1452 = vmatpush.bf16.msra.mxu0 %v1437
    %1453 = vmatpush.bf16.msra.mxu0 %v1436
    %1454 = vmatpush.bf16.msra.mxu0 %v1435
    %1455 = vmatpush.bf16.msra.mxu0 %v1434
    %1456 = vmatpush.bf16.msra.mxu0 %v1433
    %1457 = vmatmul.bf16.gmra.mxu0 %v1377
    %v1458 = vpop.f32.mrf.mxu0
    %v1459 = vadd.f32 %v1399, %v1458
    %v1460 = vpop.f32.mrf.mxu0
    %v1461 = vadd.f32 %v1399, %v1460
    %1462 = vmatmul.bf16.gmra.mxu0 %v1378
    %v1463 = vpop.f32.mrf.mxu0
    %v1464 = vadd.f32 %v1399, %v1463
    %v1465 = vpop.f32.mrf.mxu0
    %v1466 = vadd.f32 %v1399, %v1465
    %1467 = vmatmul.bf16.gmra.mxu0 %v1379
    %v1468 = vpop.f32.mrf.mxu0
    %v1469 = vadd.f32 %v1399, %v1468
    %v1470 = vpop.f32.mrf.mxu0
    %v1471 = vadd.f32 %v1399, %v1470
    %1472 = vmatmul.bf16.gmra.mxu0 %v1380
    %v1473 = vpop.f32.mrf.mxu0
    %v1474 = vadd.f32 %v1399, %v1473
    %v1475 = vpop.f32.mrf.mxu0
    %v1476 = vadd.f32 %v1399, %v1475
    %1477 = vdwg.mxu0
    %v1478 = vtanh.pop %v1459
    %v1479 = vtanh.pop %v1461
    %v1480 = vtanh.pop %v1464
    %v1481 = vtanh.pop %v1466
    %v1482 = vtanh.pop %v1469
    %v1483 = vtanh.pop %v1471
    %v1484 = vtanh.pop %v1474
    %v1485 = vtanh.pop %v1476
    %v1486 = vld [vmem:[%s12] sm:$0x1]
    %v1488 = vperm.slane %v1486, 0
    %v1490 = vmul.f32 %v1478, %v1488
    %v1491 = vmul.f32 %v1479, %v1488
    %v1492 = vmul.f32 %v1480, %v1488
    %v1493 = vmul.f32 %v1481, %v1488
    %v1494 = vmul.f32 %v1482, %v1488
    %v1495 = vmul.f32 %v1483, %v1488
    %v1496 = vmul.f32 %v1484, %v1488
    %v1497 = vmul.f32 %v1485, %v1488
    %1498 = vadd.xlane.f32.xlu0 %v1490
    %v1499 = vpop.xlane.xlu0 %1498
    %1500 = vadd.xlane.f32.xlu0 %v1491
    %v1501 = vpop.xlane.xlu0 %1500
    %1502 = vadd.xlane.f32.xlu0 %v1492
    %v1503 = vpop.xlane.xlu0 %1502
    %1504 = vadd.xlane.f32.xlu0 %v1493
    %v1505 = vpop.xlane.xlu0 %1504
    %1506 = vadd.xlane.f32.xlu0 %v1494
    %v1507 = vpop.xlane.xlu0 %1506
    %1508 = vadd.xlane.f32.xlu0 %v1495
    %v1509 = vpop.xlane.xlu0 %1508
    %1510 = vadd.xlane.f32.xlu0 %v1496
    %v1511 = vpop.xlane.xlu0 %1510
    %1512 = vadd.xlane.f32.xlu0 %v1497
    %v1513 = vpop.xlane.xlu0 %1512
    %v1514 = vld [vmem:[%s1] sm:$0xff]
    %vm1515 = vcmp.gt.s32.totalorder %v1514, 0
    %vm1516 = vcmp.gt.s32.totalorder %v1514, 1
    %vm1517 = vcmp.gt.s32.totalorder %v1514, 2
    %vm1518 = vcmp.gt.s32.totalorder %v1514, 3
    %vm1519 = vcmp.gt.s32.totalorder %v1514, 4
    %vm1520 = vcmp.gt.s32.totalorder %v1514, 5
    %vm1521 = vcmp.gt.s32.totalorder %v1514, 6
    %vm1522 = vcmp.gt.s32.totalorder %v1514, 7
    %v1523 = vsel %vm1515, 1, 0
    %v1524 = vsel %vm1516, 1, 0
    %v1525 = vsel %vm1517, 1, 0
    %v1526 = vsel %vm1518, 1, 0
    %v1527 = vsel %vm1519, 1, 0
    %v1528 = vsel %vm1520, 1, 0
    %v1529 = vsel %vm1521, 1, 0
    %v1530 = vsel %vm1522, 1, 0
    %v1531 = vcvt.s32.f32 %v1523
    %v1532 = vcvt.s32.f32 %v1524
    %v1533 = vcvt.s32.f32 %v1525
    %v1534 = vcvt.s32.f32 %v1526
    %v1535 = vcvt.s32.f32 %v1527
    %v1536 = vcvt.s32.f32 %v1528
    %v1537 = vcvt.s32.f32 %v1529
    %v1538 = vcvt.s32.f32 %v1530
    %v1539 = vmul.f32 %v1499, 1.442695
    %v1540 = vpow.pop %v1539
    %v1541 = vmul.f32 %v1501, 1.442695
    %v1542 = vpow.pop %v1541
    %v1543 = vmul.f32 %v1503, 1.442695
    %v1544 = vpow.pop %v1543
    %v1545 = vmul.f32 %v1505, 1.442695
    %v1546 = vpow.pop %v1545
    %v1547 = vmul.f32 %v1507, 1.442695
    %v1548 = vpow.pop %v1547
    %v1549 = vmul.f32 %v1509, 1.442695
    %v1550 = vpow.pop %v1549
    %v1551 = vmul.f32 %v1511, 1.442695
    %v1552 = vpow.pop %v1551
    %v1553 = vmul.f32 %v1513, 1.442695
    %v1554 = vpow.pop %v1553
    %v1555 = vmul.f32 %v1540, %v1531
    %v1556 = vmul.f32 %v1542, %v1532
    %v1557 = vmul.f32 %v1544, %v1533
    %v1558 = vmul.f32 %v1546, %v1534
    %v1559 = vmul.f32 %v1548, %v1535
    %v1560 = vmul.f32 %v1550, %v1536
    %v1561 = vmul.f32 %v1552, %v1537
    %v1562 = vmul.f32 %v1554, %v1538
    %vm1563 = vcmask 7168
    %v1564 = vsel %vm1563, %v1555, 0.0
    %v1565 = vsel %vm1563, %v1556, 0.0
    %v1566 = vadd.f32 %v1564, %v1565
    %v1567 = vsel %vm1563, %v1557, 0.0
    %v1568 = vadd.f32 %v1566, %v1567
    %v1569 = vsel %vm1563, %v1558, 0.0
    %v1570 = vadd.f32 %v1568, %v1569
    %v1571 = vsel %vm1563, %v1559, 0.0
    %v1572 = vadd.f32 %v1570, %v1571
    %v1573 = vsel %vm1563, %v1560, 0.0
    %v1574 = vadd.f32 %v1572, %v1573
    %v1575 = vsel %vm1563, %v1561, 0.0
    %v1576 = vadd.f32 %v1574, %v1575
    %v1577 = vsel %vm1563, %v1562, 0.0
    %v1578 = vadd.f32 %v1576, %v1577
    %v1579 = vadd.f32 %v1578, 0.0001
    %v1580 = vrcp.pop %v1579
    %v1581 = vmul.f32 %v1555, %v1580
    %v1582 = vmul.f32 %v1556, %v1580
    %v1583 = vmul.f32 %v1557, %v1580
    %v1584 = vmul.f32 %v1558, %v1580
    %v1585 = vmul.f32 %v1559, %v1580
    %v1586 = vmul.f32 %v1560, %v1580
    %v1587 = vmul.f32 %v1561, %v1580
    %v1588 = vmul.f32 %v1562, %v1580
    %1590 = vset.pattern.permute.xlu0 0
    %1591 = vperm.xlu0 %1590, %v1581
    %v1592 = vpop.permute.xlu0 %1591
    %1595 = vset.pattern.permute.xlu0 0
    %1596 = vperm.xlu0 %1595, %v1582
    %v1597 = vpop.permute.xlu0 %1596
    %1600 = vset.pattern.permute.xlu0 0
    %1601 = vperm.xlu0 %1600, %v1583
    %v1602 = vpop.permute.xlu0 %1601
    %1605 = vset.pattern.permute.xlu0 0
    %1606 = vperm.xlu0 %1605, %v1584
    %v1607 = vpop.permute.xlu0 %1606
    %1610 = vset.pattern.permute.xlu0 0
    %1611 = vperm.xlu0 %1610, %v1585
    %v1612 = vpop.permute.xlu0 %1611
    %1615 = vset.pattern.permute.xlu0 0
    %1616 = vperm.xlu0 %1615, %v1586
    %v1617 = vpop.permute.xlu0 %1616
    %1620 = vset.pattern.permute.xlu0 0
    %1621 = vperm.xlu0 %1620, %v1587
    %v1622 = vpop.permute.xlu0 %1621
    %1625 = vset.pattern.permute.xlu0 0
    %1626 = vperm.xlu0 %1625, %v1588
    %v1627 = vpop.permute.xlu0 %1626
    %v1629 = vmul.f32 %v1592, %v1369
    %v1630 = vmul.f32 %v1597, %v1370
    %v1631 = vmul.f32 %v1602, %v1371
    %v1632 = vmul.f32 %v1607, %v1372
    %v1633 = vmul.f32 %v1612, %v1373
    %v1634 = vmul.f32 %v1617, %v1374
    %v1635 = vmul.f32 %v1622, %v1375
    %v1636 = vmul.f32 %v1627, %v1376
    %v1637 = vadd.f32 %v1629, %v1630
    %v1638 = vadd.f32 %v1637, %v1631
    %v1639 = vadd.f32 %v1638, %v1632
    %v1640 = vadd.f32 %v1639, %v1633
    %v1641 = vadd.f32 %v1640, %v1634
    %v1642 = vadd.f32 %v1641, %v1635
    %v1643 = vadd.f32 %v1642, %v1636
    %1644 = vst [vmem:[#allocation16] sm:$0xff] %v1643
    // Predicated region
    $region78: #{tpu_custom_call.1} parent=1 // pred_check
      _
    $region79: #{tpu_custom_call.1} parent=1 // pred_check_branch
      %1646 = sbr.rel (0) target = $region81
    $region80: #{tpu_custom_call.1} parent=1 // pred_region
      %1648 = vsyncadd [#allocation7], 0
      %s1650 = sshll.u32 [#allocation16], 4
      %s1651 = int_to_ptr.vmem [resolvable:$true] %s1650
      %s1652 = sshll.u32 %s13, 4
      %s1653 = int_to_ptr.hbm [resolvable:$true] %s1652
      %1655 = dma.vmem_to_hbm [thread:$0]  %s1651, 128, %s1653, [#allocation7]
    $region81: #{tpu_custom_call.1} parent=1 // pred_fallthru
      _
    // Predicated region
    $region82: #{tpu_custom_call.1} parent=1 // pred_check
      _
    $region83: #{tpu_custom_call.1} parent=1 // pred_check_branch
      %1657 = sbr.rel (0) target = $region85
    $region84: #{tpu_custom_call.1} parent=1 // pred_region
      %1659 = dma.done [#allocation7], 128
    $region85: #{tpu_custom_call.1} parent=1 // pred_fallthru
      _
    %1660 = vsyncpa [#allocation6], 1
    %1661 = vsyncpa [#allocation9], 1
    %1662 = vsyncpa [#allocation12], 1
    %1663 = vsyncpa [#allocation15], 1
    %1664 = vsyncpa [#allocation7], 1

</llo_original>
